<compile_context>
chip_gen: v6e
topology: v6e:2x2x1
jax: 0.10.0
libtpu: 0.0.40
codegen_flags: <defaults>
</compile_context>

<pallas_src>
import functools
import math

import jax
import jax.numpy as jnp
from jax.experimental import pallas as pl
from jax.experimental.pallas import tpu as pltpu


# ----------------------------------------------------------------------------
# Pallas kernel: K-tiled conv-as-matmul + fused bias / BatchNorm / LeakyReLU
# ----------------------------------------------------------------------------
def _make_fused_conv_kernel(use_bias, use_bn, use_lrelu,
                            neg_slope=0.2, eps=1e-5):
    def kernel(*refs):
        it = iter(refs)
        p_ref = next(it)                        # (M, tk)   bf16 patches
        w_ref = next(it)                        # (tk, tc)  bf16 weights
        b_ref = next(it) if use_bias else None  # (1, tc)   f32
        g_ref = next(it) if use_bn else None    # (1, tc)   f32
        bt_ref = next(it) if use_bn else None   # (1, tc)   f32
        o_ref = next(it)                        # (M, tc)   f32
        acc_ref = next(it)                      # (M, tc)   f32 scratch

        k = pl.program_id(1)

        @pl.when(k == 0)
        def _init():
            acc_ref[...] = jnp.zeros_like(acc_ref)

        # bf16 x bf16 -> f32 accumulate on the MXU
        acc_ref[...] += jnp.dot(p_ref[...], w_ref[...],
                                preferred_element_type=jnp.float32)

        @pl.when(k == pl.num_programs(1) - 1)
        def _epilogue():
            acc = acc_ref[...]
            if use_bias:
                acc = acc + b_ref[...]
            if use_bn:
                # Training-mode BatchNorm2d: per-channel stats over the M rows
                # (M == N*OH*OW). One pass: sum and sum-of-squares.
                inv_m = 1.0 / acc.shape[0]
                mean = jnp.sum(acc, axis=0, keepdims=True) * inv_m
                ex2 = jnp.sum(acc * acc, axis=0, keepdims=True) * inv_m
                var = ex2 - mean * mean
                acc = (acc - mean) * jax.lax.rsqrt(var + eps)
                acc = acc * g_ref[...] + bt_ref[...]
            if use_lrelu:
                acc = jnp.where(acc >= 0.0, acc, acc * neg_slope)
            o_ref[...] = acc

    return kernel


def fused_conv_layer(patches, w_mat, bias=None, gamma=None, beta=None,
                     *, use_bn, use_lrelu):
    """patches: (M, K) f32/bf16; w_mat: (K, Cout) bf16; bias/gamma/beta: (Cout,)."""
    M, K = patches.shape
    Cout = w_mat.shape[1]
    use_bias = bias is not None

    # K tiles: multiples of 512 stream through the pipeline; tiny K stays whole.
    tk = K if K <= 512 else 512
    # Cout tiles of 128 -> lane-dense stores + megacore split on v7x.
    tc = Cout if Cout <= 128 else 128
    nk = K // tk
    nc = Cout // tc

    operands = [patches.astype(jnp.bfloat16), w_mat.astype(jnp.bfloat16)]
    in_specs = [
        pl.BlockSpec((M, tk), lambda c, k: (0, k)),
        pl.BlockSpec((tk, tc), lambda c, k: (k, c)),
    ]
    if use_bias:
        operands.append(bias.reshape(1, Cout).astype(jnp.float32))
        in_specs.append(pl.BlockSpec((1, tc), lambda c, k: (0, c)))
    if use_bn:
        operands.append(gamma.reshape(1, Cout).astype(jnp.float32))
        operands.append(beta.reshape(1, Cout).astype(jnp.float32))
        in_specs.append(pl.BlockSpec((1, tc), lambda c, k: (0, c)))
        in_specs.append(pl.BlockSpec((1, tc), lambda c, k: (0, c)))

    kernel = _make_fused_conv_kernel(use_bias, use_bn, use_lrelu)
    return pl.pallas_call(
        kernel,
        out_shape=jax.ShapeDtypeStruct((M, Cout), jnp.float32),
        grid_spec=pltpu.PrefetchScalarGridSpec(
            num_scalar_prefetch=0,
            grid=(nc, nk),
            in_specs=in_specs,
            out_specs=pl.BlockSpec((M, tc), lambda c, k: (0, c)),
            scratch_shapes=[pltpu.VMEM((M, tc), jnp.float32)],
        ),
        compiler_params=pltpu.CompilerParams(
            dimension_semantics=("parallel", "arbitrary")),
    )(*operands)


# ----------------------------------------------------------------------------
# Glue: NHWC im2col (pure reshuffling, fused by jit), parameter setup
# ----------------------------------------------------------------------------
def im2col_nhwc(x, k, stride, pad):
    """x: (N, H, W, C) -> patches (N*OH*OW, k*k*C), feature order (KH, KW, C)."""
    N, H, W, C = x.shape
    xp = jnp.pad(x, ((0, 0), (pad, pad), (pad, pad), (0, 0)))
    OH = (H + 2 * pad - k) // stride + 1
    OW = (W + 2 * pad - k) // stride + 1
    cols = []
    for i in range(k):
        for j in range(k):
            cols.append(xp[:, i:i + stride * OH:stride,
                           j:j + stride * OW:stride, :])   # (N, OH, OW, C)
    cols = jnp.concatenate(cols, axis=-1)                   # (N, OH, OW, k*k*C)
    return cols.reshape(N * OH * OW, k * k * C), N, OH, OW


def xavier_normal(key, shape, gain=0.02):
    cout, cin, kh, kw = shape
    fan_in, fan_out = cin * kh * kw, cout * kh * kw
    std = gain * math.sqrt(2.0 / (fan_in + fan_out))
    return (std * jax.random.normal(key, shape)).astype(jnp.float32)


def spectral_normalize(w, key, n_iter=1, eps=1e-12):
    """Deterministic spectral normalization folded into the weight at init."""
    w_mat = w.reshape(w.shape[0], -1)
    u = jax.random.normal(key, (w.shape[0],), dtype=jnp.float32)
    u = u / (jnp.linalg.norm(u) + eps)
    v = None
    for _ in range(n_iter):
        v = w_mat.T @ u
        v = v / (jnp.linalg.norm(v) + eps)
        u = w_mat @ v
        u = u / (jnp.linalg.norm(u) + eps)
    sigma = u @ (w_mat @ v)
    return w / sigma


def _to_matmul_weight(w):
    """(Cout, Cin, KH, KW) -> (KH*KW*Cin, Cout) bf16, matching NHWC im2col order."""
    cout = w.shape[0]
    return jnp.transpose(w, (2, 3, 1, 0)).reshape(-1, cout).astype(jnp.bfloat16)


def init_discriminator(key, conv_dim=64, c_dim=1, repeat_num=4, norm="batch"):
    layers = []
    config = []
    curr_dim = c_dim
    out_dim = conv_dim
    for i in range(repeat_num):
        key, kw_, kb_, kg_, ks_ = jax.random.split(key, 5)
        if i == 0:
            stride = 2
        else:
            stride = 1 if i == repeat_num - 1 else 2
        w = xavier_normal(kw_, (out_dim, curr_dim, 4, 4))
        if i > 0:
            w = spectral_normalize(w, ks_)
        use_bn = (i > 0) and (norm == "batch")
        w_mat = _to_matmul_weight(w)
        if use_bn:
            # train-mode BN subtracts the column mean, cancelling a per-channel
            # conv bias exactly -> skip the bias operand/add entirely.
            bias = None
            gamma = (1.0 + 0.02 * jax.random.normal(kg_, (out_dim,))
                     ).astype(jnp.float32)
            beta = jnp.zeros((out_dim,), jnp.float32)
        else:
            fan_in = curr_dim * 16
            bound = 1.0 / math.sqrt(fan_in)
            bias = jax.random.uniform(kb_, (out_dim,), minval=-bound,
                                      maxval=bound, dtype=jnp.float32)
            gamma = None
            beta = None
        layers.append(dict(w_mat=w_mat, bias=bias, gamma=gamma, beta=beta))
        config.append((stride, use_bn))
        curr_dim = out_dim
        out_dim = min(curr_dim * 2, 512)

    key, kw1 = jax.random.split(key)
    w1 = xavier_normal(kw1, (1, curr_dim, 4, 4))            # conv1, bias=False
    w1_mat = jnp.transpose(w1, (2, 3, 1, 0)).reshape(-1, 1)
    # Pad Cout 1 -> 128 so the head's matmul / store stay lane-dense.
    w1_mat = jnp.pad(w1_mat, ((0, 0), (0, 127))).astype(jnp.bfloat16)
    params = dict(main=layers, conv1_w_mat=w1_mat)
    return params, tuple(config)


# ----------------------------------------------------------------------------
# Forward (jitted; config is static so strides / flags stay Python values)
# ----------------------------------------------------------------------------
@functools.partial(jax.jit, static_argnums=2)
def discriminator_forward(x, params, config):
    out = jnp.transpose(x.astype(jnp.float32), (0, 2, 3, 1))     # NCHW -> NHWC
    for (stride, use_bn), layer in zip(config, params["main"]):
        patches, N, OH, OW = im2col_nhwc(out, 4, stride, 2)
        y = fused_conv_layer(patches, layer["w_mat"],
                             bias=layer["bias"],
                             gamma=layer["gamma"],
                             beta=layer["beta"],
                             use_bn=use_bn, use_lrelu=True)
        out = y.reshape(N, OH, OW, -1)                            # stays NHWC
    # final 1-channel PatchGAN head (no bias, no norm, no activation)
    patches, N, OH, OW = im2col_nhwc(out, 4, 1, 2)
    y = fused_conv_layer(patches, params["conv1_w_mat"],
                         use_bn=False, use_lrelu=False)           # (M, 128)
    y = y[:, :1]                                                  # real channel
    return y.reshape(N, OH, OW, 1).transpose(0, 3, 1, 2)          # NCHW output


if __name__ == "__main__":
    key = jax.random.PRNGKey(0)
    k_param, k_x = jax.random.split(key)
    params, config = init_discriminator(k_param, conv_dim=64, c_dim=1,
                                        repeat_num=4, norm="batch")
    x = jax.random.normal(k_x, (2, 1, 16, 16), dtype=jnp.float32)   # NCHW
    out = discriminator_forward(x, params, config)
    out = jax.block_until_ready(out)
    assert out.shape == (2, 1, 5, 5), out.shape
    print("KERNEL_OK")
</pallas_src>

<mosaic_0001>
module attributes {stable_mosaic.version = 11 : i64} {
  func.func @kernel(%arg0: i32, %arg1: i32, %arg2: memref<162x16xbf16, #tpu.memory_space<vmem>>, %arg3: memref<16x64xbf16, #tpu.memory_space<vmem>>, %arg4: memref<1x64xf32, #tpu.memory_space<vmem>>, %arg5: memref<162x64xf32, #tpu.memory_space<vmem>>, %arg6: memref<162x64xf32, #tpu.memory_space<vmem>>) attributes {dimension_semantics = [#tpu.dimension_semantics<parallel>, #tpu.dimension_semantics<arbitrary>], iteration_bounds = array<i64: 1, 1>, scalar_prefetch = 0 : i64, scratch_operands = 1 : i64, tpu.core_type = #tpu.core_type<tc>, window_params = [{transform_indices = @transform_0, window_bounds = array<i64: 162, 16>}, {transform_indices = @transform_1, window_bounds = array<i64: 16, 64>}, {transform_indices = @transform_2, window_bounds = array<i64: 1, 64>}, {transform_indices = @transform_3, window_bounds = array<i64: 162, 64>}]} {
    %c0_i32 = arith.constant 0 : i32
    %0 = arith.cmpi eq, %arg1, %c0_i32 : i32
    %1 = arith.extui %0 : i1 to i32
    %c0_i32_0 = arith.constant 0 : i32
    %2 = arith.cmpi ne, %1, %c0_i32_0 : i32
    scf.if %2 {
      %cst_10 = arith.constant 0.000000e+00 : f32
      %12 = vector.broadcast %cst_10 : f32 to vector<162x64xf32>
      %c0_11 = arith.constant 0 : index
      %c0_12 = arith.constant 0 : index
      %13 = vector.load %arg6[%c0_11, %c0_12] : memref<162x64xf32, #tpu.memory_space<vmem>>, vector<162x64xf32>
      tpu.vector_store %arg6[%c0_11, %c0_12], %12 {strides = array<i32>} : memref<162x64xf32, #tpu.memory_space<vmem>>, vector<162x64xf32>,
    } else {
    }
    %c0 = arith.constant 0 : index
    %c0_1 = arith.constant 0 : index
    %3 = vector.load %arg6[%c0, %c0_1] : memref<162x64xf32, #tpu.memory_space<vmem>>, vector<162x64xf32>
    %c0_2 = arith.constant 0 : index
    %c0_3 = arith.constant 0 : index
    %4 = vector.load %arg2[%c0_2, %c0_3] : memref<162x16xbf16, #tpu.memory_space<vmem>>, vector<162x16xbf16>
    %c0_4 = arith.constant 0 : index
    %c0_5 = arith.constant 0 : index
    %5 = vector.load %arg3[%c0_4, %c0_5] : memref<16x64xbf16, #tpu.memory_space<vmem>>, vector<16x64xbf16>
    %cst = arith.constant dense<0.000000e+00> : vector<162x64xf32>
    %6 = tpu.matmul %4, %5, %cst {dimension_numbers = #tpu.dot_dimension_numbers<[1], [0], [0], [1], [0, 0, 1, 1], [], []>} : vector<162x16xbf16>, vector<16x64xbf16>, vector<162x64xf32> -> vector<162x64xf32>
    %7 = arith.addf %3, %6 : vector<162x64xf32>
    %c0_6 = arith.constant 0 : index
    %c0_7 = arith.constant 0 : index
    %8 = vector.load %arg6[%c0_6, %c0_7] : memref<162x64xf32, #tpu.memory_space<vmem>>, vector<162x64xf32>
    tpu.vector_store %arg6[%c0_6, %c0_7], %7 {strides = array<i32>} : memref<162x64xf32, #tpu.memory_space<vmem>>, vector<162x64xf32>,
    %c0_i32_8 = arith.constant 0 : i32
    %9 = arith.cmpi eq, %arg1, %c0_i32_8 : i32
    %10 = arith.extui %9 : i1 to i32
    %c0_i32_9 = arith.constant 0 : i32
    %11 = arith.cmpi ne, %10, %c0_i32_9 : i32
    scf.if %11 {
      %c0_10 = arith.constant 0 : index
      %c0_11 = arith.constant 0 : index
      %12 = vector.load %arg6[%c0_10, %c0_11] : memref<162x64xf32, #tpu.memory_space<vmem>>, vector<162x64xf32>
      %c0_12 = arith.constant 0 : index
      %c0_13 = arith.constant 0 : index
      %13 = vector.load %arg4[%c0_12, %c0_13] : memref<1x64xf32, #tpu.memory_space<vmem>>, vector<1x64xf32>
      %14 = vector.broadcast %13 : vector<1x64xf32> to vector<162x64xf32>
      %15 = arith.addf %12, %14 : vector<162x64xf32>
      %cst_14 = arith.constant 0.000000e+00 : f32
      %16 = vector.broadcast %cst_14 : f32 to vector<162x64xf32>
      %17 = arith.cmpf oge, %15, %16 : vector<162x64xf32>
      %cst_15 = arith.constant 2.000000e-01 : f32
      %18 = vector.broadcast %cst_15 : f32 to vector<162x64xf32>
      %19 = arith.mulf %15, %18 : vector<162x64xf32>
      %20 = arith.select %17, %15, %19 : vector<162x64xi1>, vector<162x64xf32>
      %c0_16 = arith.constant 0 : index
      %c0_17 = arith.constant 0 : index
      %21 = vector.load %arg5[%c0_16, %c0_17] : memref<162x64xf32, #tpu.memory_space<vmem>>, vector<162x64xf32>
      tpu.vector_store %arg5[%c0_16, %c0_17], %20 {strides = array<i32>} : memref<162x64xf32, #tpu.memory_space<vmem>>, vector<162x64xf32>,
    } else {
    }
    return
  }
  func.func @transform_0(%arg0: i32, %arg1: i32) -> (i32, i32) {
    %c0_i32 = arith.constant 0 : i32
    %c0_i32_0 = arith.constant 0 : i32
    return %c0_i32, %arg1 : i32, i32
  }
  func.func @transform_1(%arg0: i32, %arg1: i32) -> (i32, i32) {
    %c0_i32 = arith.constant 0 : i32
    return %arg1, %arg0 : i32, i32
  }
  func.func @transform_2(%arg0: i32, %arg1: i32) -> (i32, i32) {
    %c0_i32 = arith.constant 0 : i32
    %c0_i32_0 = arith.constant 0 : i32
    return %c0_i32, %arg0 : i32, i32
  }
  func.func @transform_3(%arg0: i32, %arg1: i32) -> (i32, i32) {
    %c0_i32 = arith.constant 0 : i32
    %c0_i32_0 = arith.constant 0 : i32
    return %c0_i32, %arg0 : i32, i32
  }
}

module attributes {stable_mosaic.version = 11 : i64} {
  func.func @kernel(%arg0: i32, %arg1: i32, %arg2: memref<50x512xbf16, #tpu.memory_space<vmem>>, %arg3: memref<512x128xbf16, #tpu.memory_space<vmem>>, %arg4: memref<1x128xf32, #tpu.memory_space<vmem>>, %arg5: memref<1x128xf32, #tpu.memory_space<vmem>>, %arg6: memref<50x128xf32, #tpu.memory_space<vmem>>, %arg7: memref<50x128xf32, #tpu.memory_space<vmem>>) attributes {dimension_semantics = [#tpu.dimension_semantics<parallel>, #tpu.dimension_semantics<arbitrary>], iteration_bounds = array<i64: 1, 2>, scalar_prefetch = 0 : i64, scratch_operands = 1 : i64, tpu.core_type = #tpu.core_type<tc>, window_params = [{transform_indices = @transform_0, window_bounds = array<i64: 50, 512>}, {transform_indices = @transform_1, window_bounds = array<i64: 512, 128>}, {transform_indices = @transform_2, window_bounds = array<i64: 1, 128>}, {transform_indices = @transform_3, window_bounds = array<i64: 1, 128>}, {transform_indices = @transform_4, window_bounds = array<i64: 50, 128>}]} {
    %c0_i32 = arith.constant 0 : i32
    %0 = arith.cmpi eq, %arg1, %c0_i32 : i32
    %1 = arith.extui %0 : i1 to i32
    %c0_i32_0 = arith.constant 0 : i32
    %2 = arith.cmpi ne, %1, %c0_i32_0 : i32
    scf.if %2 {
      %cst_9 = arith.constant 0.000000e+00 : f32
      %12 = vector.broadcast %cst_9 : f32 to vector<50x128xf32>
      %c0_10 = arith.constant 0 : index
      %c0_11 = arith.constant 0 : index
      %13 = vector.load %arg7[%c0_10, %c0_11] : memref<50x128xf32, #tpu.memory_space<vmem>>, vector<50x128xf32>
      tpu.vector_store %arg7[%c0_10, %c0_11], %12 {strides = array<i32>} : memref<50x128xf32, #tpu.memory_space<vmem>>, vector<50x128xf32>,
    } else {
    }
    %c0 = arith.constant 0 : index
    %c0_1 = arith.constant 0 : index
    %3 = vector.load %arg7[%c0, %c0_1] : memref<50x128xf32, #tpu.memory_space<vmem>>, vector<50x128xf32>
    %c0_2 = arith.constant 0 : index
    %c0_3 = arith.constant 0 : index
    %4 = vector.load %arg2[%c0_2, %c0_3] : memref<50x512xbf16, #tpu.memory_space<vmem>>, vector<50x512xbf16>
    %c0_4 = arith.constant 0 : index
    %c0_5 = arith.constant 0 : index
    %5 = vector.load %arg3[%c0_4, %c0_5] : memref<512x128xbf16, #tpu.memory_space<vmem>>, vector<512x128xbf16>
    %cst = arith.constant dense<0.000000e+00> : vector<50x128xf32>
    %6 = tpu.matmul %4, %5, %cst {dimension_numbers = #tpu.dot_dimension_numbers<[1], [0], [0], [1], [0, 0, 1, 1], [], []>} : vector<50x512xbf16>, vector<512x128xbf16>, vector<50x128xf32> -> vector<50x128xf32>
    %7 = arith.addf %3, %6 : vector<50x128xf32>
    %c0_6 = arith.constant 0 : index
    %c0_7 = arith.constant 0 : index
    %8 = vector.load %arg7[%c0_6, %c0_7] : memref<50x128xf32, #tpu.memory_space<vmem>>, vector<50x128xf32>
    tpu.vector_store %arg7[%c0_6, %c0_7], %7 {strides = array<i32>} : memref<50x128xf32, #tpu.memory_space<vmem>>, vector<50x128xf32>,
    %c1_i32 = arith.constant 1 : i32
    %9 = arith.cmpi eq, %arg1, %c1_i32 : i32
    %10 = arith.extui %9 : i1 to i32
    %c0_i32_8 = arith.constant 0 : i32
    %11 = arith.cmpi ne, %10, %c0_i32_8 : i32
    scf.if %11 {
      %c0_9 = arith.constant 0 : index
      %c0_10 = arith.constant 0 : index
      %12 = vector.load %arg7[%c0_9, %c0_10] : memref<50x128xf32, #tpu.memory_space<vmem>>, vector<50x128xf32>
      %cst_11 = arith.constant dense<0.000000e+00> : vector<128xf32>
      %13 = vector.multi_reduction <add>, %12, %cst_11 [0] : vector<50x128xf32> to vector<128xf32>
      %14 = vector.shape_cast %13 : vector<128xf32> to vector<1x128xf32>
      %cst_12 = arith.constant 2.000000e-02 : f32
      %15 = vector.broadcast %cst_12 : f32 to vector<1x128xf32>
      %16 = arith.mulf %14, %15 : vector<1x128xf32>
      %17 = arith.mulf %12, %12 : vector<50x128xf32>
      %cst_13 = arith.constant dense<0.000000e+00> : vector<128xf32>
      %18 = vector.multi_reduction <add>, %17, %cst_13 [0] : vector<50x128xf32> to vector<128xf32>
      %19 = vector.shape_cast %18 : vector<128xf32> to vector<1x128xf32>
      %cst_14 = arith.constant 2.000000e-02 : f32
      %20 = vector.broadcast %cst_14 : f32 to vector<1x128xf32>
      %21 = arith.mulf %19, %20 : vector<1x128xf32>
      %22 = arith.mulf %16, %16 : vector<1x128xf32>
      %23 = arith.subf %21, %22 : vector<1x128xf32>
      %24 = vector.broadcast %16 : vector<1x128xf32> to vector<50x128xf32>
      %25 = arith.subf %12, %24 : vector<50x128xf32>
      %cst_15 = arith.constant 9.99999974E-6 : f32
      %26 = vector.broadcast %cst_15 : f32 to vector<1x128xf32>
      %27 = arith.addf %23, %26 : vector<1x128xf32>
      %28 = math.rsqrt %27 : vector<1x128xf32>
      %29 = vector.broadcast %28 : vector<1x128xf32> to vector<50x128xf32>
      %30 = arith.mulf %25, %29 : vector<50x128xf32>
      %c0_16 = arith.constant 0 : index
      %c0_17 = arith.constant 0 : index
      %31 = vector.load %arg4[%c0_16, %c0_17] : memref<1x128xf32, #tpu.memory_space<vmem>>, vector<1x128xf32>
      %32 = vector.broadcast %31 : vector<1x128xf32> to vector<50x128xf32>
      %33 = arith.mulf %30, %32 : vector<50x128xf32>
      %c0_18 = arith.constant 0 : index
      %c0_19 = arith.constant 0 : index
      %34 = vector.load %arg5[%c0_18, %c0_19] : memref<1x128xf32, #tpu.memory_space<vmem>>, vector<1x128xf32>
      %35 = vector.broadcast %34 : vector<1x128xf32> to vector<50x128xf32>
      %36 = arith.addf %33, %35 : vector<50x128xf32>
      %cst_20 = arith.constant 0.000000e+00 : f32
      %37 = vector.broadcast %cst_20 : f32 to vector<50x128xf32>
      %38 = arith.cmpf oge, %36, %37 : vector<50x128xf32>
      %cst_21 = arith.constant 2.000000e-01 : f32
      %39 = vector.broadcast %cst_21 : f32 to vector<50x128xf32>
      %40 = arith.mulf %36, %39 : vector<50x128xf32>
      %41 = arith.select %38, %36, %40 : vector<50x128xi1>, vector<50x128xf32>
      %c0_22 = arith.constant 0 : index
      %c0_23 = arith.constant 0 : index
      %42 = vector.load %arg6[%c0_22, %c0_23] : memref<50x128xf32, #tpu.memory_space<vmem>>, vector<50x128xf32>
      tpu.vector_store %arg6[%c0_22, %c0_23], %41 {strides = array<i32>} : memref<50x128xf32, #tpu.memory_space<vmem>>, vector<50x128xf32>,
    } else {
    }
    return
  }
  func.func @transform_0(%arg0: i32, %arg1: i32) -> (i32, i32) {
    %c0_i32 = arith.constant 0 : i32
    %c0_i32_0 = arith.constant 0 : i32
    return %c0_i32, %arg1 : i32, i32
  }
  func.func @transform_1(%arg0: i32, %arg1: i32) -> (i32, i32) {
    %c0_i32 = arith.constant 0 : i32
    return %arg1, %arg0 : i32, i32
  }
  func.func @transform_2(%arg0: i32, %arg1: i32) -> (i32, i32) {
    %c0_i32 = arith.constant 0 : i32
    %c0_i32_0 = arith.constant 0 : i32
    return %c0_i32, %arg0 : i32, i32
  }
  func.func @transform_3(%arg0: i32, %arg1: i32) -> (i32, i32) {
    %c0_i32 = arith.constant 0 : i32
    %c0_i32_0 = arith.constant 0 : i32
    return %c0_i32, %arg0 : i32, i32
  }
  func.func @transform_4(%arg0: i32, %arg1: i32) -> (i32, i32) {
    %c0_i32 = arith.constant 0 : i32
    %c0_i32_0 = arith.constant 0 : i32
    return %c0_i32, %arg0 : i32, i32
  }
}

module attributes {stable_mosaic.version = 11 : i64} {
  func.func @kernel(%arg0: i32, %arg1: i32, %arg2: memref<18x512xbf16, #tpu.memory_space<vmem>>, %arg3: memref<512x128xbf16, #tpu.memory_space<vmem>>, %arg4: memref<1x128xf32, #tpu.memory_space<vmem>>, %arg5: memref<1x128xf32, #tpu.memory_space<vmem>>, %arg6: memref<18x128xf32, #tpu.memory_space<vmem>>, %arg7: memref<18x128xf32, #tpu.memory_space<vmem>>) attributes {dimension_semantics = [#tpu.dimension_semantics<parallel>, #tpu.dimension_semantics<arbitrary>], iteration_bounds = array<i64: 2, 4>, scalar_prefetch = 0 : i64, scratch_operands = 1 : i64, tpu.core_type = #tpu.core_type<tc>, window_params = [{transform_indices = @transform_0, window_bounds = array<i64: 18, 512>}, {transform_indices = @transform_1, window_bounds = array<i64: 512, 128>}, {transform_indices = @transform_2, window_bounds = array<i64: 1, 128>}, {transform_indices = @transform_3, window_bounds = array<i64: 1, 128>}, {transform_indices = @transform_4, window_bounds = array<i64: 18, 128>}]} {
    %c0_i32 = arith.constant 0 : i32
    %0 = arith.cmpi eq, %arg1, %c0_i32 : i32
    %1 = arith.extui %0 : i1 to i32
    %c0_i32_0 = arith.constant 0 : i32
    %2 = arith.cmpi ne, %1, %c0_i32_0 : i32
    scf.if %2 {
      %cst_9 = arith.constant 0.000000e+00 : f32
      %12 = vector.broadcast %cst_9 : f32 to vector<18x128xf32>
      %c0_10 = arith.constant 0 : index
      %c0_11 = arith.constant 0 : index
      %13 = vector.load %arg7[%c0_10, %c0_11] : memref<18x128xf32, #tpu.memory_space<vmem>>, vector<18x128xf32>
      tpu.vector_store %arg7[%c0_10, %c0_11], %12 {strides = array<i32>} : memref<18x128xf32, #tpu.memory_space<vmem>>, vector<18x128xf32>,
    } else {
    }
    %c0 = arith.constant 0 : index
    %c0_1 = arith.constant 0 : index
    %3 = vector.load %arg7[%c0, %c0_1] : memref<18x128xf32, #tpu.memory_space<vmem>>, vector<18x128xf32>
    %c0_2 = arith.constant 0 : index
    %c0_3 = arith.constant 0 : index
    %4 = vector.load %arg2[%c0_2, %c0_3] : memref<18x512xbf16, #tpu.memory_space<vmem>>, vector<18x512xbf16>
    %c0_4 = arith.constant 0 : index
    %c0_5 = arith.constant 0 : index
    %5 = vector.load %arg3[%c0_4, %c0_5] : memref<512x128xbf16, #tpu.memory_space<vmem>>, vector<512x128xbf16>
    %cst = arith.constant dense<0.000000e+00> : vector<18x128xf32>
    %6 = tpu.matmul %4, %5, %cst {dimension_numbers = #tpu.dot_dimension_numbers<[1], [0], [0], [1], [0, 0, 1, 1], [], []>} : vector<18x512xbf16>, vector<512x128xbf16>, vector<18x128xf32> -> vector<18x128xf32>
    %7 = arith.addf %3, %6 : vector<18x128xf32>
    %c0_6 = arith.constant 0 : index
    %c0_7 = arith.constant 0 : index
    %8 = vector.load %arg7[%c0_6, %c0_7] : memref<18x128xf32, #tpu.memory_space<vmem>>, vector<18x128xf32>
    tpu.vector_store %arg7[%c0_6, %c0_7], %7 {strides = array<i32>} : memref<18x128xf32, #tpu.memory_space<vmem>>, vector<18x128xf32>,
    %c3_i32 = arith.constant 3 : i32
    %9 = arith.cmpi eq, %arg1, %c3_i32 : i32
    %10 = arith.extui %9 : i1 to i32
    %c0_i32_8 = arith.constant 0 : i32
    %11 = arith.cmpi ne, %10, %c0_i32_8 : i32
    scf.if %11 {
      %c0_9 = arith.constant 0 : index
      %c0_10 = arith.constant 0 : index
      %12 = vector.load %arg7[%c0_9, %c0_10] : memref<18x128xf32, #tpu.memory_space<vmem>>, vector<18x128xf32>
      %cst_11 = arith.constant dense<0.000000e+00> : vector<128xf32>
      %13 = vector.multi_reduction <add>, %12, %cst_11 [0] : vector<18x128xf32> to vector<128xf32>
      %14 = vector.shape_cast %13 : vector<128xf32> to vector<1x128xf32>
      %cst_12 = arith.constant 0.055555556 : f32
      %15 = vector.broadcast %cst_12 : f32 to vector<1x128xf32>
      %16 = arith.mulf %14, %15 : vector<1x128xf32>
      %17 = arith.mulf %12, %12 : vector<18x128xf32>
      %cst_13 = arith.constant dense<0.000000e+00> : vector<128xf32>
      %18 = vector.multi_reduction <add>, %17, %cst_13 [0] : vector<18x128xf32> to vector<128xf32>
      %19 = vector.shape_cast %18 : vector<128xf32> to vector<1x128xf32>
      %cst_14 = arith.constant 0.055555556 : f32
      %20 = vector.broadcast %cst_14 : f32 to vector<1x128xf32>
      %21 = arith.mulf %19, %20 : vector<1x128xf32>
      %22 = arith.mulf %16, %16 : vector<1x128xf32>
      %23 = arith.subf %21, %22 : vector<1x128xf32>
      %24 = vector.broadcast %16 : vector<1x128xf32> to vector<18x128xf32>
      %25 = arith.subf %12, %24 : vector<18x128xf32>
      %cst_15 = arith.constant 9.99999974E-6 : f32
      %26 = vector.broadcast %cst_15 : f32 to vector<1x128xf32>
      %27 = arith.addf %23, %26 : vector<1x128xf32>
      %28 = math.rsqrt %27 : vector<1x128xf32>
      %29 = vector.broadcast %28 : vector<1x128xf32> to vector<18x128xf32>
      %30 = arith.mulf %25, %29 : vector<18x128xf32>
      %c0_16 = arith.constant 0 : index
      %c0_17 = arith.constant 0 : index
      %31 = vector.load %arg4[%c0_16, %c0_17] : memref<1x128xf32, #tpu.memory_space<vmem>>, vector<1x128xf32>
      %32 = vector.broadcast %31 : vector<1x128xf32> to vector<18x128xf32>
      %33 = arith.mulf %30, %32 : vector<18x128xf32>
      %c0_18 = arith.constant 0 : index
      %c0_19 = arith.constant 0 : index
      %34 = vector.load %arg5[%c0_18, %c0_19] : memref<1x128xf32, #tpu.memory_space<vmem>>, vector<1x128xf32>
      %35 = vector.broadcast %34 : vector<1x128xf32> to vector<18x128xf32>
      %36 = arith.addf %33, %35 : vector<18x128xf32>
      %cst_20 = arith.constant 0.000000e+00 : f32
      %37 = vector.broadcast %cst_20 : f32 to vector<18x128xf32>
      %38 = arith.cmpf oge, %36, %37 : vector<18x128xf32>
      %cst_21 = arith.constant 2.000000e-01 : f32
      %39 = vector.broadcast %cst_21 : f32 to vector<18x128xf32>
      %40 = arith.mulf %36, %39 : vector<18x128xf32>
      %41 = arith.select %38, %36, %40 : vector<18x128xi1>, vector<18x128xf32>
      %c0_22 = arith.constant 0 : index
      %c0_23 = arith.constant 0 : index
      %42 = vector.load %arg6[%c0_22, %c0_23] : memref<18x128xf32, #tpu.memory_space<vmem>>, vector<18x128xf32>
      tpu.vector_store %arg6[%c0_22, %c0_23], %41 {strides = array<i32>} : memref<18x128xf32, #tpu.memory_space<vmem>>, vector<18x128xf32>,
    } else {
    }
    return
  }
  func.func @transform_0(%arg0: i32, %arg1: i32) -> (i32, i32) {
    %c0_i32 = arith.constant 0 : i32
    %c0_i32_0 = arith.constant 0 : i32
    return %c0_i32, %arg1 : i32, i32
  }
  func.func @transform_1(%arg0: i32, %arg1: i32) -> (i32, i32) {
    %c0_i32 = arith.constant 0 : i32
    return %arg1, %arg0 : i32, i32
  }
  func.func @transform_2(%arg0: i32, %arg1: i32) -> (i32, i32) {
    %c0_i32 = arith.constant 0 : i32
    %c0_i32_0 = arith.constant 0 : i32
    return %c0_i32, %arg0 : i32, i32
  }
  func.func @transform_3(%arg0: i32, %arg1: i32) -> (i32, i32) {
    %c0_i32 = arith.constant 0 : i32
    %c0_i32_0 = arith.constant 0 : i32
    return %c0_i32, %arg0 : i32, i32
  }
  func.func @transform_4(%arg0: i32, %arg1: i32) -> (i32, i32) {
    %c0_i32 = arith.constant 0 : i32
    %c0_i32_0 = arith.constant 0 : i32
    return %c0_i32, %arg0 : i32, i32
  }
}

module attributes {stable_mosaic.version = 11 : i64} {
  func.func @kernel(%arg0: i32, %arg1: i32, %arg2: memref<32x512xbf16, #tpu.memory_space<vmem>>, %arg3: memref<512x128xbf16, #tpu.memory_space<vmem>>, %arg4: memref<1x128xf32, #tpu.memory_space<vmem>>, %arg5: memref<1x128xf32, #tpu.memory_space<vmem>>, %arg6: memref<32x128xf32, #tpu.memory_space<vmem>>, %arg7: memref<32x128xf32, #tpu.memory_space<vmem>>) attributes {dimension_semantics = [#tpu.dimension_semantics<parallel>, #tpu.dimension_semantics<arbitrary>], iteration_bounds = array<i64: 4, 8>, scalar_prefetch = 0 : i64, scratch_operands = 1 : i64, tpu.core_type = #tpu.core_type<tc>, window_params = [{transform_indices = @transform_0, window_bounds = array<i64: 32, 512>}, {transform_indices = @transform_1, window_bounds = array<i64: 512, 128>}, {transform_indices = @transform_2, window_bounds = array<i64: 1, 128>}, {transform_indices = @transform_3, window_bounds = array<i64: 1, 128>}, {transform_indices = @transform_4, window_bounds = array<i64: 32, 128>}]} {
    %c0_i32 = arith.constant 0 : i32
    %0 = arith.cmpi eq, %arg1, %c0_i32 : i32
    %1 = arith.extui %0 : i1 to i32
    %c0_i32_0 = arith.constant 0 : i32
    %2 = arith.cmpi ne, %1, %c0_i32_0 : i32
    scf.if %2 {
      %cst_9 = arith.constant 0.000000e+00 : f32
      %12 = vector.broadcast %cst_9 : f32 to vector<32x128xf32>
      %c0_10 = arith.constant 0 : index
      %c0_11 = arith.constant 0 : index
      %13 = vector.load %arg7[%c0_10, %c0_11] : memref<32x128xf32, #tpu.memory_space<vmem>>, vector<32x128xf32>
      tpu.vector_store %arg7[%c0_10, %c0_11], %12 {strides = array<i32>} : memref<32x128xf32, #tpu.memory_space<vmem>>, vector<32x128xf32>,
    } else {
    }
    %c0 = arith.constant 0 : index
    %c0_1 = arith.constant 0 : index
    %3 = vector.load %arg7[%c0, %c0_1] : memref<32x128xf32, #tpu.memory_space<vmem>>, vector<32x128xf32>
    %c0_2 = arith.constant 0 : index
    %c0_3 = arith.constant 0 : index
    %4 = vector.load %arg2[%c0_2, %c0_3] : memref<32x512xbf16, #tpu.memory_space<vmem>>, vector<32x512xbf16>
    %c0_4 = arith.constant 0 : index
    %c0_5 = arith.constant 0 : index
    %5 = vector.load %arg3[%c0_4, %c0_5] : memref<512x128xbf16, #tpu.memory_space<vmem>>, vector<512x128xbf16>
    %cst = arith.constant dense<0.000000e+00> : vector<32x128xf32>
    %6 = tpu.matmul %4, %5, %cst {dimension_numbers = #tpu.dot_dimension_numbers<[1], [0], [0], [1], [0, 0, 1, 1], [], []>} : vector<32x512xbf16>, vector<512x128xbf16>, vector<32x128xf32> -> vector<32x128xf32>
    %7 = arith.addf %3, %6 : vector<32x128xf32>
    %c0_6 = arith.constant 0 : index
    %c0_7 = arith.constant 0 : index
    %8 = vector.load %arg7[%c0_6, %c0_7] : memref<32x128xf32, #tpu.memory_space<vmem>>, vector<32x128xf32>
    tpu.vector_store %arg7[%c0_6, %c0_7], %7 {strides = array<i32>} : memref<32x128xf32, #tpu.memory_space<vmem>>, vector<32x128xf32>,
    %c7_i32 = arith.constant 7 : i32
    %9 = arith.cmpi eq, %arg1, %c7_i32 : i32
    %10 = arith.extui %9 : i1 to i32
    %c0_i32_8 = arith.constant 0 : i32
    %11 = arith.cmpi ne, %10, %c0_i32_8 : i32
    scf.if %11 {
      %c0_9 = arith.constant 0 : index
      %c0_10 = arith.constant 0 : index
      %12 = vector.load %arg7[%c0_9, %c0_10] : memref<32x128xf32, #tpu.memory_space<vmem>>, vector<32x128xf32>
      %cst_11 = arith.constant dense<0.000000e+00> : vector<128xf32>
      %13 = vector.multi_reduction <add>, %12, %cst_11 [0] : vector<32x128xf32> to vector<128xf32>
      %14 = vector.shape_cast %13 : vector<128xf32> to vector<1x128xf32>
      %cst_12 = arith.constant 3.125000e-02 : f32
      %15 = vector.broadcast %cst_12 : f32 to vector<1x128xf32>
      %16 = arith.mulf %14, %15 : vector<1x128xf32>
      %17 = arith.mulf %12, %12 : vector<32x128xf32>
      %cst_13 = arith.constant dense<0.000000e+00> : vector<128xf32>
      %18 = vector.multi_reduction <add>, %17, %cst_13 [0] : vector<32x128xf32> to vector<128xf32>
      %19 = vector.shape_cast %18 : vector<128xf32> to vector<1x128xf32>
      %cst_14 = arith.constant 3.125000e-02 : f32
      %20 = vector.broadcast %cst_14 : f32 to vector<1x128xf32>
      %21 = arith.mulf %19, %20 : vector<1x128xf32>
      %22 = arith.mulf %16, %16 : vector<1x128xf32>
      %23 = arith.subf %21, %22 : vector<1x128xf32>
      %24 = vector.broadcast %16 : vector<1x128xf32> to vector<32x128xf32>
      %25 = arith.subf %12, %24 : vector<32x128xf32>
      %cst_15 = arith.constant 9.99999974E-6 : f32
      %26 = vector.broadcast %cst_15 : f32 to vector<1x128xf32>
      %27 = arith.addf %23, %26 : vector<1x128xf32>
      %28 = math.rsqrt %27 : vector<1x128xf32>
      %29 = vector.broadcast %28 : vector<1x128xf32> to vector<32x128xf32>
      %30 = arith.mulf %25, %29 : vector<32x128xf32>
      %c0_16 = arith.constant 0 : index
      %c0_17 = arith.constant 0 : index
      %31 = vector.load %arg4[%c0_16, %c0_17] : memref<1x128xf32, #tpu.memory_space<vmem>>, vector<1x128xf32>
      %32 = vector.broadcast %31 : vector<1x128xf32> to vector<32x128xf32>
      %33 = arith.mulf %30, %32 : vector<32x128xf32>
      %c0_18 = arith.constant 0 : index
      %c0_19 = arith.constant 0 : index
      %34 = vector.load %arg5[%c0_18, %c0_19] : memref<1x128xf32, #tpu.memory_space<vmem>>, vector<1x128xf32>
      %35 = vector.broadcast %34 : vector<1x128xf32> to vector<32x128xf32>
      %36 = arith.addf %33, %35 : vector<32x128xf32>
      %cst_20 = arith.constant 0.000000e+00 : f32
      %37 = vector.broadcast %cst_20 : f32 to vector<32x128xf32>
      %38 = arith.cmpf oge, %36, %37 : vector<32x128xf32>
      %cst_21 = arith.constant 2.000000e-01 : f32
      %39 = vector.broadcast %cst_21 : f32 to vector<32x128xf32>
      %40 = arith.mulf %36, %39 : vector<32x128xf32>
      %41 = arith.select %38, %36, %40 : vector<32x128xi1>, vector<32x128xf32>
      %c0_22 = arith.constant 0 : index
      %c0_23 = arith.constant 0 : index
      %42 = vector.load %arg6[%c0_22, %c0_23] : memref<32x128xf32, #tpu.memory_space<vmem>>, vector<32x128xf32>
      tpu.vector_store %arg6[%c0_22, %c0_23], %41 {strides = array<i32>} : memref<32x128xf32, #tpu.memory_space<vmem>>, vector<32x128xf32>,
    } else {
    }
    return
  }
  func.func @transform_0(%arg0: i32, %arg1: i32) -> (i32, i32) {
    %c0_i32 = arith.constant 0 : i32
    %c0_i32_0 = arith.constant 0 : i32
    return %c0_i32, %arg1 : i32, i32
  }
  func.func @transform_1(%arg0: i32, %arg1: i32) -> (i32, i32) {
    %c0_i32 = arith.constant 0 : i32
    return %arg1, %arg0 : i32, i32
  }
  func.func @transform_2(%arg0: i32, %arg1: i32) -> (i32, i32) {
    %c0_i32 = arith.constant 0 : i32
    %c0_i32_0 = arith.constant 0 : i32
    return %c0_i32, %arg0 : i32, i32
  }
  func.func @transform_3(%arg0: i32, %arg1: i32) -> (i32, i32) {
    %c0_i32 = arith.constant 0 : i32
    %c0_i32_0 = arith.constant 0 : i32
    return %c0_i32, %arg0 : i32, i32
  }
  func.func @transform_4(%arg0: i32, %arg1: i32) -> (i32, i32) {
    %c0_i32 = arith.constant 0 : i32
    %c0_i32_0 = arith.constant 0 : i32
    return %c0_i32, %arg0 : i32, i32
  }
}

module attributes {stable_mosaic.version = 11 : i64} {
  func.func @kernel(%arg0: i32, %arg1: i32, %arg2: memref<50x512xbf16, #tpu.memory_space<vmem>>, %arg3: memref<512x128xbf16, #tpu.memory_space<vmem>>, %arg4: memref<50x128xf32, #tpu.memory_space<vmem>>, %arg5: memref<50x128xf32, #tpu.memory_space<vmem>>) attributes {dimension_semantics = [#tpu.dimension_semantics<parallel>, #tpu.dimension_semantics<arbitrary>], iteration_bounds = array<i64: 1, 16>, scalar_prefetch = 0 : i64, scratch_operands = 1 : i64, tpu.core_type = #tpu.core_type<tc>, window_params = [{transform_indices = @transform_0, window_bounds = array<i64: 50, 512>}, {transform_indices = @transform_1, window_bounds = array<i64: 512, 128>}, {transform_indices = @transform_2, window_bounds = array<i64: 50, 128>}]} {
    %c0_i32 = arith.constant 0 : i32
    %0 = arith.cmpi eq, %arg1, %c0_i32 : i32
    %1 = arith.extui %0 : i1 to i32
    %c0_i32_0 = arith.constant 0 : i32
    %2 = arith.cmpi ne, %1, %c0_i32_0 : i32
    scf.if %2 {
      %cst_9 = arith.constant 0.000000e+00 : f32
      %12 = vector.broadcast %cst_9 : f32 to vector<50x128xf32>
      %c0_10 = arith.constant 0 : index
      %c0_11 = arith.constant 0 : index
      %13 = vector.load %arg5[%c0_10, %c0_11] : memref<50x128xf32, #tpu.memory_space<vmem>>, vector<50x128xf32>
      tpu.vector_store %arg5[%c0_10, %c0_11], %12 {strides = array<i32>} : memref<50x128xf32, #tpu.memory_space<vmem>>, vector<50x128xf32>,
    } else {
    }
    %c0 = arith.constant 0 : index
    %c0_1 = arith.constant 0 : index
    %3 = vector.load %arg5[%c0, %c0_1] : memref<50x128xf32, #tpu.memory_space<vmem>>, vector<50x128xf32>
    %c0_2 = arith.constant 0 : index
    %c0_3 = arith.constant 0 : index
    %4 = vector.load %arg2[%c0_2, %c0_3] : memref<50x512xbf16, #tpu.memory_space<vmem>>, vector<50x512xbf16>
    %c0_4 = arith.constant 0 : index
    %c0_5 = arith.constant 0 : index
    %5 = vector.load %arg3[%c0_4, %c0_5] : memref<512x128xbf16, #tpu.memory_space<vmem>>, vector<512x128xbf16>
    %cst = arith.constant dense<0.000000e+00> : vector<50x128xf32>
    %6 = tpu.matmul %4, %5, %cst {dimension_numbers = #tpu.dot_dimension_numbers<[1], [0], [0], [1], [0, 0, 1, 1], [], []>} : vector<50x512xbf16>, vector<512x128xbf16>, vector<50x128xf32> -> vector<50x128xf32>
    %7 = arith.addf %3, %6 : vector<50x128xf32>
    %c0_6 = arith.constant 0 : index
    %c0_7 = arith.constant 0 : index
    %8 = vector.load %arg5[%c0_6, %c0_7] : memref<50x128xf32, #tpu.memory_space<vmem>>, vector<50x128xf32>
    tpu.vector_store %arg5[%c0_6, %c0_7], %7 {strides = array<i32>} : memref<50x128xf32, #tpu.memory_space<vmem>>, vector<50x128xf32>,
    %c15_i32 = arith.constant 15 : i32
    %9 = arith.cmpi eq, %arg1, %c15_i32 : i32
    %10 = arith.extui %9 : i1 to i32
    %c0_i32_8 = arith.constant 0 : i32
    %11 = arith.cmpi ne, %10, %c0_i32_8 : i32
    scf.if %11 {
      %c0_9 = arith.constant 0 : index
      %c0_10 = arith.constant 0 : index
      %12 = vector.load %arg5[%c0_9, %c0_10] : memref<50x128xf32, #tpu.memory_space<vmem>>, vector<50x128xf32>
      %c0_11 = arith.constant 0 : index
      %c0_12 = arith.constant 0 : index
      %13 = vector.load %arg4[%c0_11, %c0_12] : memref<50x128xf32, #tpu.memory_space<vmem>>, vector<50x128xf32>
      tpu.vector_store %arg4[%c0_11, %c0_12], %12 {strides = array<i32>} : memref<50x128xf32, #tpu.memory_space<vmem>>, vector<50x128xf32>,
    } else {
    }
    return
  }
  func.func @transform_0(%arg0: i32, %arg1: i32) -> (i32, i32) {
    %c0_i32 = arith.constant 0 : i32
    %c0_i32_0 = arith.constant 0 : i32
    return %c0_i32, %arg1 : i32, i32
  }
  func.func @transform_1(%arg0: i32, %arg1: i32) -> (i32, i32) {
    %c0_i32 = arith.constant 0 : i32
    return %arg1, %arg0 : i32, i32
  }
  func.func @transform_2(%arg0: i32, %arg1: i32) -> (i32, i32) {
    %c0_i32 = arith.constant 0 : i32
    %c0_i32_0 = arith.constant 0 : i32
    return %c0_i32, %arg0 : i32, i32
  }
}

</mosaic_0001>

<llo_original>
// kernel: discriminator_forward.5
$region0: #{discriminator_forward.5}
  #allocation0 [shape = 'u32[]', space=smem, size = 0x4, offset = 0x4, fixed_abs, tag = 'smem constant byte address 0x4 - core index']
  #allocation1 [shape = 'u32[144,128]{1,0:T(1,128)}', space=vmem, size = 0x12000, scoped, tag = 'internal scratch']
  #allocation2 [shape = 'f32[162,64]{1,0:T(8,128)}', space=vmem, size = 0x15000, scoped, tag = 'scratch operand']
  %s0 = inlined_call_operand.vmem [shape: bf16[162,16], index: 0, kind: input, shape index: {}]
  %s1 = inlined_call_operand.hbm [shape: bf16[16,64], index: 1, kind: input, shape index: {}]
  %s2 = inlined_call_operand.hbm [shape: f32[1,64], index: 2, kind: input, shape index: {}]
  %s3 = inlined_call_operand.vmem [shape: f32[162,64], index: 3, kind: output, shape index: {}]
  %s4 = sld [smem:[#allocation0]]
  $region38: #{discriminator_forward.5} parent=0
    _
  %s6 = ssub.s32 1, %s4
  %s7 = scalar_select 0, %s6, %s4
  $region1: #{discriminator_forward.5} parent=0
    #allocation3 [shape = 'u8[4096]{0}', space=vmem, size = 0x1000, scoped, tag = 'input window, operand 1, single buffered']
    #allocation4 [shape = 's32[1]{0}', space=sflag, size = 0x4, scoped, tag = 'scoped memory for discriminator_forward.5']
    #allocation5 [shape = 'u8[512]{0}', space=vmem, size = 0x400, scoped, tag = 'input window, operand 2, single buffered']
    #allocation6 [shape = 's32[1]{0}', space=sflag, size = 0x4, scoped, tag = 'scoped memory for discriminator_forward.5']
    %8 = vsyncpa [#allocation4], 0
    %9 = vsyncpa [#allocation6], 0
    // Predicated region
    $region2: #{discriminator_forward.5} parent=1 // pred_check
      _
    $region3: #{discriminator_forward.5} parent=1 // pred_check_branch
      %11 = sbr.rel (0) target = $region5
    $region4: #{discriminator_forward.5} parent=1 // pred_region
      _
    $region5: #{discriminator_forward.5} parent=1 // pred_fallthru
      _
    // Predicated region
    $region6: #{discriminator_forward.5} parent=1 // pred_check
      _
    $region7: #{discriminator_forward.5} parent=1 // pred_check_branch
      %13 = sbr.rel (0) target = $region9
    $region8: #{discriminator_forward.5} parent=1 // pred_region
      %s15 = ssub.s32 128, 128
      %16 = vsyncadd [#allocation4], %s15
      %s17 = sshll.u32 [#allocation3], 4
      %s18 = int_to_ptr.vmem [resolvable:$true] %s17
      %23 = dma.hbm_to_vmem [thread:$0]  %s1, 128, %s18, [#allocation4], 64, 64, 4
    $region9: #{discriminator_forward.5} parent=1 // pred_fallthru
      _
    // Predicated region
    $region10: #{discriminator_forward.5} parent=1 // pred_check
      _
    $region11: #{discriminator_forward.5} parent=1 // pred_check_branch
      %25 = sbr.rel (0) target = $region13
    $region12: #{discriminator_forward.5} parent=1 // pred_region
      %s27 = ssub.s32 16, 16
      %28 = vsyncadd [#allocation6], %s27
      %s30 = sshll.u32 [#allocation5], 4
      %s31 = int_to_ptr.vmem [resolvable:$true] %s30
      %33 = dma.hbm_to_vmem [thread:$0]  %s2, 16, %s31, [#allocation6]
    $region13: #{discriminator_forward.5} parent=1 // pred_fallthru
      _
    // Predicated region
    $region14: #{discriminator_forward.5} parent=1 // pred_check
      _
    $region15: #{discriminator_forward.5} parent=1 // pred_check_branch
      %35 = sbr.rel (0) target = $region17
    $region16: #{discriminator_forward.5} parent=1 // pred_region
      %36 = dma.done [#allocation4], 128
    $region17: #{discriminator_forward.5} parent=1 // pred_fallthru
      _
    // Predicated region
    $region18: #{discriminator_forward.5} parent=1 // pred_check
      _
    $region19: #{discriminator_forward.5} parent=1 // pred_check_branch
      %38 = sbr.rel (0) target = $region21
    $region20: #{discriminator_forward.5} parent=1 // pred_region
      %39 = dma.done [#allocation6], 16
    $region21: #{discriminator_forward.5} parent=1 // pred_fallthru
      _
    %p41 = scmp.eq.s32.totalorder 0, 0
    // Predicated region
    $region22: #{discriminator_forward.5} parent=1 // pred_check
      %p42 = pneg %p41
    $region23: #{discriminator_forward.5} parent=1 // pred_check_branch
      %44 = sbr.rel (%p42) target = $region25
    $region24: #{discriminator_forward.5} parent=1 // pred_region
      %vm45 = vcmask 523264
      %46 = vst.msk [vmem:[#allocation2] sm:$0xff] %vm45, 0.0
      %47 = vst.msk [vmem:[#allocation2 + $0x8] sm:$0xff] %vm45, 0.0
      %48 = vst.msk [vmem:[#allocation2 + $0x10] sm:$0xff] %vm45, 0.0
      %49 = vst.msk [vmem:[#allocation2 + $0x18] sm:$0xff] %vm45, 0.0
      %50 = vst.msk [vmem:[#allocation2 + $0x20] sm:$0xff] %vm45, 0.0
      %51 = vst.msk [vmem:[#allocation2 + $0x28] sm:$0xff] %vm45, 0.0
      %52 = vst.msk [vmem:[#allocation2 + $0x30] sm:$0xff] %vm45, 0.0
      %53 = vst.msk [vmem:[#allocation2 + $0x38] sm:$0xff] %vm45, 0.0
      %54 = vst.msk [vmem:[#allocation2 + $0x40] sm:$0xff] %vm45, 0.0
      %55 = vst.msk [vmem:[#allocation2 + $0x48] sm:$0xff] %vm45, 0.0
      %56 = vst.msk [vmem:[#allocation2 + $0x50] sm:$0xff] %vm45, 0.0
      %57 = vst.msk [vmem:[#allocation2 + $0x58] sm:$0xff] %vm45, 0.0
      %58 = vst.msk [vmem:[#allocation2 + $0x60] sm:$0xff] %vm45, 0.0
      %59 = vst.msk [vmem:[#allocation2 + $0x68] sm:$0xff] %vm45, 0.0
      %60 = vst.msk [vmem:[#allocation2 + $0x70] sm:$0xff] %vm45, 0.0
      %61 = vst.msk [vmem:[#allocation2 + $0x78] sm:$0xff] %vm45, 0.0
      %62 = vst.msk [vmem:[#allocation2 + $0x80] sm:$0xff] %vm45, 0.0
      %63 = vst.msk [vmem:[#allocation2 + $0x88] sm:$0xff] %vm45, 0.0
      %64 = vst.msk [vmem:[#allocation2 + $0x90] sm:$0xff] %vm45, 0.0
      %65 = vst.msk [vmem:[#allocation2 + $0x98] sm:$0xff] %vm45, 0.0
      %vm66 = vcmask 517120
      %67 = vst.msk [vmem:[#allocation2 + $0xa0] sm:$0x3] %vm66, 0.0
    $region25: #{discriminator_forward.5} parent=1 // pred_fallthru
      _
    %v68 = vld [vmem:[#allocation2] sm:$0xff]
    %v69 = vld [vmem:[#allocation2 + $0x8] sm:$0xff]
    %v70 = vld [vmem:[#allocation2 + $0x10] sm:$0xff]
    %v71 = vld [vmem:[#allocation2 + $0x18] sm:$0xff]
    %v72 = vld [vmem:[#allocation2 + $0x20] sm:$0xff]
    %v73 = vld [vmem:[#allocation2 + $0x28] sm:$0xff]
    %v74 = vld [vmem:[#allocation2 + $0x30] sm:$0xff]
    %v75 = vld [vmem:[#allocation2 + $0x38] sm:$0xff]
    %v76 = vld [vmem:[#allocation2 + $0x40] sm:$0xff]
    %v77 = vld [vmem:[#allocation2 + $0x48] sm:$0xff]
    %v78 = vld [vmem:[#allocation2 + $0x50] sm:$0xff]
    %v79 = vld [vmem:[#allocation2 + $0x58] sm:$0xff]
    %v80 = vld [vmem:[#allocation2 + $0x60] sm:$0xff]
    %v81 = vld [vmem:[#allocation2 + $0x68] sm:$0xff]
    %v82 = vld [vmem:[#allocation2 + $0x70] sm:$0xff]
    %v83 = vld [vmem:[#allocation2 + $0x78] sm:$0xff]
    %v84 = vld [vmem:[#allocation2 + $0x80] sm:$0xff]
    %v85 = vld [vmem:[#allocation2 + $0x88] sm:$0xff]
    %v86 = vld [vmem:[#allocation2 + $0x90] sm:$0xff]
    %v87 = vld [vmem:[#allocation2 + $0x98] sm:$0xff]
    %v88 = vld [vmem:[#allocation2 + $0xa0] sm:$0x3]
    %v89 = vld [vmem:[%s0] sm:$0xf]
    %v90 = vld [vmem:[%s0 + $0x4] sm:$0xf]
    %v91 = vld [vmem:[%s0 + $0x8] sm:$0xf]
    %v92 = vld [vmem:[%s0 + $0xc] sm:$0xf]
    %v93 = vld [vmem:[%s0 + $0x10] sm:$0xf]
    %v94 = vld [vmem:[%s0 + $0x14] sm:$0xf]
    %v95 = vld [vmem:[%s0 + $0x18] sm:$0xf]
    %v96 = vld [vmem:[%s0 + $0x1c] sm:$0xf]
    %v97 = vld [vmem:[%s0 + $0x20] sm:$0xf]
    %v98 = vld [vmem:[%s0 + $0x24] sm:$0xf]
    %v99 = vld [vmem:[%s0 + $0x28] sm:$0xf]
    %v100 = vld [vmem:[%s0 + $0x2c] sm:$0xf]
    %v101 = vld [vmem:[%s0 + $0x30] sm:$0xf]
    %v102 = vld [vmem:[%s0 + $0x34] sm:$0xf]
    %v103 = vld [vmem:[%s0 + $0x38] sm:$0xf]
    %v104 = vld [vmem:[%s0 + $0x3c] sm:$0xf]
    %v105 = vld [vmem:[%s0 + $0x40] sm:$0xf]
    %v106 = vld [vmem:[%s0 + $0x44] sm:$0xf]
    %v107 = vld [vmem:[%s0 + $0x48] sm:$0xf]
    %v108 = vld [vmem:[%s0 + $0x4c] sm:$0xf]
    %v109 = vld [vmem:[%s0 + $0x50] sm:$0x1]
    %v110 = vld [vmem:[#allocation3] sm:$0xf]
    %v111 = vld [vmem:[#allocation3 + $0x4] sm:$0xf]
    %v133 = vunpack.c.l.b16 %v89
    %v134 = vunpack.c.l.b16 %v90
    %v135 = vunpack.c.l.b16 %v91
    %v136 = vunpack.c.l.b16 %v92
    %v137 = vunpack.c.l.b16 %v93
    %v138 = vunpack.c.l.b16 %v94
    %v139 = vunpack.c.l.b16 %v95
    %v140 = vunpack.c.l.b16 %v96
    %v141 = vunpack.c.l.b16 %v97
    %v142 = vunpack.c.l.b16 %v98
    %v143 = vunpack.c.l.b16 %v99
    %v144 = vunpack.c.l.b16 %v100
    %v145 = vunpack.c.l.b16 %v101
    %v146 = vunpack.c.l.b16 %v102
    %v147 = vunpack.c.l.b16 %v103
    %v148 = vunpack.c.l.b16 %v104
    %v149 = vunpack.c.l.b16 %v105
    %v150 = vunpack.c.l.b16 %v106
    %v151 = vunpack.c.l.b16 %v107
    %v152 = vunpack.c.l.b16 %v108
    %v153 = vunpack.c.l.b16 %v109
    %v154 = vpack.c.b16 %v134, %v133
    %v155 = vpack.c.b16 %v136, %v135
    %v156 = vpack.c.b16 %v138, %v137
    %v157 = vpack.c.b16 %v140, %v139
    %v158 = vpack.c.b16 %v142, %v141
    %v159 = vpack.c.b16 %v144, %v143
    %v160 = vpack.c.b16 %v146, %v145
    %v161 = vpack.c.b16 %v148, %v147
    %v162 = vpack.c.b16 %v150, %v149
    %v163 = vpack.c.b16 %v152, %v151
    %v164 = vpack.c.b16 %v153, %v153
    %v167 = vunpack.c.l.b16 %v110
    %v168 = vunpack.c.l.b16 %v111
    %v169 = vpack.c.b16 %v168, %v167
    %vm171 = vcmask 130048
    %v173 = vsel %vm171, %v154, 0
    %v176 = vsel %vm171, %v155, 0
    %v179 = vsel %vm171, %v156, 0
    %v182 = vsel %vm171, %v157, 0
    %v185 = vsel %vm171, %v158, 0
    %v188 = vsel %vm171, %v159, 0
    %v191 = vsel %vm171, %v160, 0
    %v194 = vsel %vm171, %v161, 0
    %v197 = vsel %vm171, %v162, 0
    %v200 = vsel %vm171, %v163, 0
    %v203 = vsel %vm171, %v164, 0
    %205 = vmatprep.subr.bf16.mxu0 0
    %206 = vmatpush1.bf16.msra.mxu0 0
    %207 = vmatprep.subr.bf16.mxu0 0
    %208 = vmatpush1.bf16.msra.mxu0 0
    %209 = vmatprep.subr.bf16.mxu0 0
    %210 = vmatpush1.bf16.msra.mxu0 0
    %211 = vmatprep.subr.bf16.mxu0 0
    %212 = vmatpush1.bf16.msra.mxu0 0
    %213 = vmatprep.subr.bf16.mxu0 0
    %214 = vmatpush1.bf16.msra.mxu0 0
    %215 = vmatprep.subr.bf16.mxu0 0
    %216 = vmatpush1.bf16.msra.mxu0 0
    %217 = vmatprep.subr.bf16.mxu0 0
    %218 = vmatpush1.bf16.msra.mxu0 0
    %219 = vmatprep.subr.bf16.mxu0 0
    %220 = vmatpush1.bf16.msra.mxu0 %v169
    %221 = vmatprep.subr.bf16.mxu0 0
    %222 = vmatpush2.bf16.msra.mxu0 0
    %223 = vmatprep.subr.bf16.mxu0 0
    %224 = vmatpush2.bf16.msra.mxu0 0
    %225 = vmatprep.subr.bf16.mxu0 0
    %226 = vmatpush2.bf16.msra.mxu0 0
    %227 = vmatprep.subr.bf16.mxu0 0
    %228 = vmatpush2.bf16.msra.mxu0 0
    %229 = vmatprep.subr.bf16.mxu0 0
    %230 = vmatpush2.bf16.msra.mxu0 0
    %231 = vmatprep.subr.bf16.mxu0 0
    %232 = vmatpush2.bf16.msra.mxu0 0
    %233 = vmatprep.subr.bf16.mxu0 0
    %234 = vmatpush2.bf16.msra.mxu0 0
    %235 = vmatprep.subr.bf16.mxu0 0
    %236 = vmatpush2.bf16.msra.mxu0 0
    %237 = vmatprep.mubr.bf16.mxu0 0
    %238 = vmatmul.mubr.bf16.gmra.mxu0 %v173
    %v239 = vpop.f32.mrf.mxu0
    %v240 = vadd.f32 0.0, %v239
    %v241 = vpop.f32.mrf.mxu0
    %v242 = vpop.f32.mrf.mxu0
    %v243 = vadd.f32 0.0, %v242
    %v244 = vpop.f32.mrf.mxu0
    %245 = vmatprep.mubr.bf16.mxu0 0
    %246 = vmatmul.mubr.bf16.gmra.mxu0 %v176
    %v247 = vpop.f32.mrf.mxu0
    %v248 = vadd.f32 0.0, %v247
    %v249 = vpop.f32.mrf.mxu0
    %v250 = vpop.f32.mrf.mxu0
    %v251 = vadd.f32 0.0, %v250
    %v252 = vpop.f32.mrf.mxu0
    %253 = vmatprep.mubr.bf16.mxu0 0
    %254 = vmatmul.mubr.bf16.gmra.mxu0 %v179
    %v255 = vpop.f32.mrf.mxu0
    %v256 = vadd.f32 0.0, %v255
    %v257 = vpop.f32.mrf.mxu0
    %v258 = vpop.f32.mrf.mxu0
    %v259 = vadd.f32 0.0, %v258
    %v260 = vpop.f32.mrf.mxu0
    %261 = vmatprep.mubr.bf16.mxu0 0
    %262 = vmatmul.mubr.bf16.gmra.mxu0 %v182
    %v263 = vpop.f32.mrf.mxu0
    %v264 = vadd.f32 0.0, %v263
    %v265 = vpop.f32.mrf.mxu0
    %v266 = vpop.f32.mrf.mxu0
    %v267 = vadd.f32 0.0, %v266
    %v268 = vpop.f32.mrf.mxu0
    %269 = vmatprep.mubr.bf16.mxu0 0
    %270 = vmatmul.mubr.bf16.gmra.mxu0 %v185
    %v271 = vpop.f32.mrf.mxu0
    %v272 = vadd.f32 0.0, %v271
    %v273 = vpop.f32.mrf.mxu0
    %v274 = vpop.f32.mrf.mxu0
    %v275 = vadd.f32 0.0, %v274
    %v276 = vpop.f32.mrf.mxu0
    %277 = vmatprep.mubr.bf16.mxu0 0
    %278 = vmatmul.mubr.bf16.gmra.mxu0 %v188
    %v279 = vpop.f32.mrf.mxu0
    %v280 = vadd.f32 0.0, %v279
    %v281 = vpop.f32.mrf.mxu0
    %v282 = vpop.f32.mrf.mxu0
    %v283 = vadd.f32 0.0, %v282
    %v284 = vpop.f32.mrf.mxu0
    %285 = vmatprep.mubr.bf16.mxu0 0
    %286 = vmatmul.mubr.bf16.gmra.mxu0 %v191
    %v287 = vpop.f32.mrf.mxu0
    %v288 = vadd.f32 0.0, %v287
    %v289 = vpop.f32.mrf.mxu0
    %v290 = vpop.f32.mrf.mxu0
    %v291 = vadd.f32 0.0, %v290
    %v292 = vpop.f32.mrf.mxu0
    %293 = vmatprep.mubr.bf16.mxu0 0
    %294 = vmatmul.mubr.bf16.gmra.mxu0 %v194
    %v295 = vpop.f32.mrf.mxu0
    %v296 = vadd.f32 0.0, %v295
    %v297 = vpop.f32.mrf.mxu0
    %v298 = vpop.f32.mrf.mxu0
    %v299 = vadd.f32 0.0, %v298
    %v300 = vpop.f32.mrf.mxu0
    %301 = vmatprep.mubr.bf16.mxu0 0
    %302 = vmatmul.mubr.bf16.gmra.mxu0 %v197
    %v303 = vpop.f32.mrf.mxu0
    %v304 = vadd.f32 0.0, %v303
    %v305 = vpop.f32.mrf.mxu0
    %v306 = vpop.f32.mrf.mxu0
    %v307 = vadd.f32 0.0, %v306
    %v308 = vpop.f32.mrf.mxu0
    %309 = vmatprep.mubr.bf16.mxu0 0
    %310 = vmatmul.mubr.bf16.gmra.mxu0 %v200
    %v311 = vpop.f32.mrf.mxu0
    %v312 = vadd.f32 0.0, %v311
    %v313 = vpop.f32.mrf.mxu0
    %v314 = vpop.f32.mrf.mxu0
    %v315 = vadd.f32 0.0, %v314
    %v316 = vpop.f32.mrf.mxu0
    %317 = vmatprep.mubr.bf16.mxu0 0
    %318 = vmatmul.mubr.bf16.gmra.mxu0 %v203
    %v319 = vpop.f32.mrf.mxu0
    %v320 = vadd.f32 0.0, %v319
    %v321 = vpop.f32.mrf.mxu0
    %v322 = vpop.f32.mrf.mxu0
    %v323 = vpop.f32.mrf.mxu0
    %324 = vdwg.mxu0
    %v325 = vadd.f32 %v68, %v240
    %v326 = vadd.f32 %v69, %v243
    %v327 = vadd.f32 %v70, %v248
    %v328 = vadd.f32 %v71, %v251
    %v329 = vadd.f32 %v72, %v256
    %v330 = vadd.f32 %v73, %v259
    %v331 = vadd.f32 %v74, %v264
    %v332 = vadd.f32 %v75, %v267
    %v333 = vadd.f32 %v76, %v272
    %v334 = vadd.f32 %v77, %v275
    %v335 = vadd.f32 %v78, %v280
    %v336 = vadd.f32 %v79, %v283
    %v337 = vadd.f32 %v80, %v288
    %v338 = vadd.f32 %v81, %v291
    %v339 = vadd.f32 %v82, %v296
    %v340 = vadd.f32 %v83, %v299
    %v341 = vadd.f32 %v84, %v304
    %v342 = vadd.f32 %v85, %v307
    %v343 = vadd.f32 %v86, %v312
    %v344 = vadd.f32 %v87, %v315
    %v345 = vadd.f32 %v88, %v320
    %vm346 = vcmask 523264
    %347 = vst.msk [vmem:[#allocation2] sm:$0xff] %vm346, %v325
    %348 = vst.msk [vmem:[#allocation2 + $0x8] sm:$0xff] %vm346, %v326
    %349 = vst.msk [vmem:[#allocation2 + $0x10] sm:$0xff] %vm346, %v327
    %350 = vst.msk [vmem:[#allocation2 + $0x18] sm:$0xff] %vm346, %v328
    %351 = vst.msk [vmem:[#allocation2 + $0x20] sm:$0xff] %vm346, %v329
    %352 = vst.msk [vmem:[#allocation2 + $0x28] sm:$0xff] %vm346, %v330
    %353 = vst.msk [vmem:[#allocation2 + $0x30] sm:$0xff] %vm346, %v331
    %354 = vst.msk [vmem:[#allocation2 + $0x38] sm:$0xff] %vm346, %v332
    %355 = vst.msk [vmem:[#allocation2 + $0x40] sm:$0xff] %vm346, %v333
    %356 = vst.msk [vmem:[#allocation2 + $0x48] sm:$0xff] %vm346, %v334
    %357 = vst.msk [vmem:[#allocation2 + $0x50] sm:$0xff] %vm346, %v335
    %358 = vst.msk [vmem:[#allocation2 + $0x58] sm:$0xff] %vm346, %v336
    %359 = vst.msk [vmem:[#allocation2 + $0x60] sm:$0xff] %vm346, %v337
    %360 = vst.msk [vmem:[#allocation2 + $0x68] sm:$0xff] %vm346, %v338
    %361 = vst.msk [vmem:[#allocation2 + $0x70] sm:$0xff] %vm346, %v339
    %362 = vst.msk [vmem:[#allocation2 + $0x78] sm:$0xff] %vm346, %v340
    %363 = vst.msk [vmem:[#allocation2 + $0x80] sm:$0xff] %vm346, %v341
    %364 = vst.msk [vmem:[#allocation2 + $0x88] sm:$0xff] %vm346, %v342
    %365 = vst.msk [vmem:[#allocation2 + $0x90] sm:$0xff] %vm346, %v343
    %366 = vst.msk [vmem:[#allocation2 + $0x98] sm:$0xff] %vm346, %v344
    %vm367 = vcmask 517120
    %368 = vst.msk [vmem:[#allocation2 + $0xa0] sm:$0x3] %vm367, %v345
    // Predicated region
    $region26: #{discriminator_forward.5} parent=1 // pred_check
      %p369 = pneg %p41
    $region27: #{discriminator_forward.5} parent=1 // pred_check_branch
      %371 = sbr.rel (%p369) target = $region29
    $region28: #{discriminator_forward.5} parent=1 // pred_region
      %v372 = vld [vmem:[#allocation2] sm:$0xff]
      %v373 = vld [vmem:[#allocation2 + $0x8] sm:$0xff]
      %v374 = vld [vmem:[#allocation2 + $0x10] sm:$0xff]
      %v375 = vld [vmem:[#allocation2 + $0x18] sm:$0xff]
      %v376 = vld [vmem:[#allocation2 + $0x20] sm:$0xff]
      %v377 = vld [vmem:[#allocation2 + $0x28] sm:$0xff]
      %v378 = vld [vmem:[#allocation2 + $0x30] sm:$0xff]
      %v379 = vld [vmem:[#allocation2 + $0x38] sm:$0xff]
      %v380 = vld [vmem:[#allocation2 + $0x40] sm:$0xff]
      %v381 = vld [vmem:[#allocation2 + $0x48] sm:$0xff]
      %v382 = vld [vmem:[#allocation2 + $0x50] sm:$0xff]
      %v383 = vld [vmem:[#allocation2 + $0x58] sm:$0xff]
      %v384 = vld [vmem:[#allocation2 + $0x60] sm:$0xff]
      %v385 = vld [vmem:[#allocation2 + $0x68] sm:$0xff]
      %v386 = vld [vmem:[#allocation2 + $0x70] sm:$0xff]
      %v387 = vld [vmem:[#allocation2 + $0x78] sm:$0xff]
      %v388 = vld [vmem:[#allocation2 + $0x80] sm:$0xff]
      %v389 = vld [vmem:[#allocation2 + $0x88] sm:$0xff]
      %v390 = vld [vmem:[#allocation2 + $0x90] sm:$0xff]
      %v391 = vld [vmem:[#allocation2 + $0x98] sm:$0xff]
      %v392 = vld [vmem:[#allocation2 + $0xa0] sm:$0x3]
      %v393 = vld [vmem:[#allocation5] sm:$0x1]
      %v395 = vlaneseq
      %v396 = vshrl.u32 %v395, 7
      %v397 = vsub.s32 0, %v396
      %v398 = vrot.slane %v393, %v397
      %v400 = vadd.f32 %v372, %v398
      %v401 = vadd.f32 %v373, %v398
      %v402 = vadd.f32 %v374, %v398
      %v403 = vadd.f32 %v375, %v398
      %v404 = vadd.f32 %v376, %v398
      %v405 = vadd.f32 %v377, %v398
      %v406 = vadd.f32 %v378, %v398
      %v407 = vadd.f32 %v379, %v398
      %v408 = vadd.f32 %v380, %v398
      %v409 = vadd.f32 %v381, %v398
      %v410 = vadd.f32 %v382, %v398
      %v411 = vadd.f32 %v383, %v398
      %v412 = vadd.f32 %v384, %v398
      %v413 = vadd.f32 %v385, %v398
      %v414 = vadd.f32 %v386, %v398
      %v415 = vadd.f32 %v387, %v398
      %v416 = vadd.f32 %v388, %v398
      %v417 = vadd.f32 %v389, %v398
      %v418 = vadd.f32 %v390, %v398
      %v419 = vadd.f32 %v391, %v398
      %v420 = vadd.f32 %v392, %v398
      %vm421 = vcmp.ge.f32.partialorder %v400, 0.0
      %vm422 = vcmp.ge.f32.partialorder %v401, 0.0
      %vm423 = vcmp.ge.f32.partialorder %v402, 0.0
      %vm424 = vcmp.ge.f32.partialorder %v403, 0.0
      %vm425 = vcmp.ge.f32.partialorder %v404, 0.0
      %vm426 = vcmp.ge.f32.partialorder %v405, 0.0
      %vm427 = vcmp.ge.f32.partialorder %v406, 0.0
      %vm428 = vcmp.ge.f32.partialorder %v407, 0.0
      %vm429 = vcmp.ge.f32.partialorder %v408, 0.0
      %vm430 = vcmp.ge.f32.partialorder %v409, 0.0
      %vm431 = vcmp.ge.f32.partialorder %v410, 0.0
      %vm432 = vcmp.ge.f32.partialorder %v411, 0.0
      %vm433 = vcmp.ge.f32.partialorder %v412, 0.0
      %vm434 = vcmp.ge.f32.partialorder %v413, 0.0
      %vm435 = vcmp.ge.f32.partialorder %v414, 0.0
      %vm436 = vcmp.ge.f32.partialorder %v415, 0.0
      %vm437 = vcmp.ge.f32.partialorder %v416, 0.0
      %vm438 = vcmp.ge.f32.partialorder %v417, 0.0
      %vm439 = vcmp.ge.f32.partialorder %v418, 0.0
      %vm440 = vcmp.ge.f32.partialorder %v419, 0.0
      %vm441 = vcmp.ge.f32.partialorder %v420, 0.0
      %v442 = vmul.f32 %v400, 0.2
      %v443 = vmul.f32 %v401, 0.2
      %v444 = vmul.f32 %v402, 0.2
      %v445 = vmul.f32 %v403, 0.2
      %v446 = vmul.f32 %v404, 0.2
      %v447 = vmul.f32 %v405, 0.2
      %v448 = vmul.f32 %v406, 0.2
      %v449 = vmul.f32 %v407, 0.2
      %v450 = vmul.f32 %v408, 0.2
      %v451 = vmul.f32 %v409, 0.2
      %v452 = vmul.f32 %v410, 0.2
      %v453 = vmul.f32 %v411, 0.2
      %v454 = vmul.f32 %v412, 0.2
      %v455 = vmul.f32 %v413, 0.2
      %v456 = vmul.f32 %v414, 0.2
      %v457 = vmul.f32 %v415, 0.2
      %v458 = vmul.f32 %v416, 0.2
      %v459 = vmul.f32 %v417, 0.2
      %v460 = vmul.f32 %v418, 0.2
      %v461 = vmul.f32 %v419, 0.2
      %v462 = vmul.f32 %v420, 0.2
      %v463 = vsel %vm421, %v400, %v442
      %v464 = vsel %vm422, %v401, %v443
      %v465 = vsel %vm423, %v402, %v444
      %v466 = vsel %vm424, %v403, %v445
      %v467 = vsel %vm425, %v404, %v446
      %v468 = vsel %vm426, %v405, %v447
      %v469 = vsel %vm427, %v406, %v448
      %v470 = vsel %vm428, %v407, %v449
      %v471 = vsel %vm429, %v408, %v450
      %v472 = vsel %vm430, %v409, %v451
      %v473 = vsel %vm431, %v410, %v452
      %v474 = vsel %vm432, %v411, %v453
      %v475 = vsel %vm433, %v412, %v454
      %v476 = vsel %vm434, %v413, %v455
      %v477 = vsel %vm435, %v414, %v456
      %v478 = vsel %vm436, %v415, %v457
      %v479 = vsel %vm437, %v416, %v458
      %v480 = vsel %vm438, %v417, %v459
      %v481 = vsel %vm439, %v418, %v460
      %v482 = vsel %vm440, %v419, %v461
      %v483 = vsel %vm441, %v420, %v462
      %484 = vst.msk [vmem:[%s3] sm:$0xff] %vm346, %v463
      %485 = vst.msk [vmem:[%s3 + $0x8] sm:$0xff] %vm346, %v464
      %486 = vst.msk [vmem:[%s3 + $0x10] sm:$0xff] %vm346, %v465
      %487 = vst.msk [vmem:[%s3 + $0x18] sm:$0xff] %vm346, %v466
      %488 = vst.msk [vmem:[%s3 + $0x20] sm:$0xff] %vm346, %v467
      %489 = vst.msk [vmem:[%s3 + $0x28] sm:$0xff] %vm346, %v468
      %490 = vst.msk [vmem:[%s3 + $0x30] sm:$0xff] %vm346, %v469
      %491 = vst.msk [vmem:[%s3 + $0x38] sm:$0xff] %vm346, %v470
      %492 = vst.msk [vmem:[%s3 + $0x40] sm:$0xff] %vm346, %v471
      %493 = vst.msk [vmem:[%s3 + $0x48] sm:$0xff] %vm346, %v472
      %494 = vst.msk [vmem:[%s3 + $0x50] sm:$0xff] %vm346, %v473
      %495 = vst.msk [vmem:[%s3 + $0x58] sm:$0xff] %vm346, %v474
      %496 = vst.msk [vmem:[%s3 + $0x60] sm:$0xff] %vm346, %v475
      %497 = vst.msk [vmem:[%s3 + $0x68] sm:$0xff] %vm346, %v476
      %498 = vst.msk [vmem:[%s3 + $0x70] sm:$0xff] %vm346, %v477
      %499 = vst.msk [vmem:[%s3 + $0x78] sm:$0xff] %vm346, %v478
      %500 = vst.msk [vmem:[%s3 + $0x80] sm:$0xff] %vm346, %v479
      %501 = vst.msk [vmem:[%s3 + $0x88] sm:$0xff] %vm346, %v480
      %502 = vst.msk [vmem:[%s3 + $0x90] sm:$0xff] %vm346, %v481
      %503 = vst.msk [vmem:[%s3 + $0x98] sm:$0xff] %vm346, %v482
      %504 = vst.msk [vmem:[%s3 + $0xa0] sm:$0x3] %vm367, %v483
    $region29: #{discriminator_forward.5} parent=1 // pred_fallthru
      _
    // Predicated region
    $region30: #{discriminator_forward.5} parent=1 // pred_check
      _
    $region31: #{discriminator_forward.5} parent=1 // pred_check_branch
      %506 = sbr.rel (0) target = $region33
    $region32: #{discriminator_forward.5} parent=1 // pred_region
      _
    $region33: #{discriminator_forward.5} parent=1 // pred_fallthru
      _
    // Predicated region
    $region34: #{discriminator_forward.5} parent=1 // pred_check
      _
    $region35: #{discriminator_forward.5} parent=1 // pred_check_branch
      %508 = sbr.rel (0) target = $region37
    $region36: #{discriminator_forward.5} parent=1 // pred_region
      _
    $region37: #{discriminator_forward.5} parent=1 // pred_fallthru
      _
    %509 = vsyncpa [#allocation4], 1
    %510 = vsyncpa [#allocation6], 1

// kernel: discriminator_forward.6
$region0: #{discriminator_forward.6}
  #allocation0 [shape = 'u32[]', space=smem, size = 0x4, offset = 0x4, fixed_abs, tag = 'smem constant byte address 0x4 - core index']
  #allocation1 [shape = 'u32[144,128]{1,0:T(1,128)}', space=vmem, size = 0x12000, scoped, tag = 'internal scratch']
  #allocation2 [shape = 'f32[50,128]{1,0:T(8,128)}', space=vmem, size = 0x7000, scoped, tag = 'scratch operand']
  %s0 = inlined_call_operand.vmem [shape: bf16[50,1024], index: 0, kind: input, shape index: {}]
  %s1 = inlined_call_operand.vmem [shape: bf16[1024,128], index: 1, kind: input, shape index: {}]
  %s2 = inlined_call_operand.vmem [shape: f32[1,128], index: 2, kind: input, shape index: {}]
  %s3 = inlined_call_operand.vmem [shape: f32[1,128], index: 3, kind: input, shape index: {}]
  %s4 = inlined_call_operand.vmem [shape: f32[50,128], index: 4, kind: output, shape index: {}]
  %s5 = sld [smem:[#allocation0]]
  $region80: #{discriminator_forward.6} parent=0
    _
  %s7 = ssub.s32 1, %s5
  %s8 = scalar_select 0, %s7, %s5
  $region1: #{discriminator_forward.6} parent=0
    #allocation3 [shape = 'u8[114688]{0}', space=vmem, size = 0x1c000, scoped, tag = 'input window, operand 0']
    loop: start=0, step=1, limit=4
    $region2: #{discriminator_forward.6} parent=1 // loop_pre_header
      _
    $region3: #{discriminator_forward.6} parent=1 // loop_header
      %s10 = sphi 0, %s14
      %p11 = scmp.ge.s32.totalorder %s10, 4
      %s17 = sphi 0, %s29
      %s18 = sphi 0, %s25
      %s19 = sphi 0, %s17
      %s20 = sphi 0, %s18
      %s21 = sphi 0, %s19
      %s22 = sphi 0, %s20
      %s32 = sphi 0, %s34
      %s35 = sphi 0, %s32
      %s36 = sphi 0, %s35
      %s52 = sphi 0, %s36
      %s60 = sphi 0, %s62
      %s63 = sphi 0, %s60
      %s64 = sphi 0, %s63
      %s80 = sphi 0, %s64
      %s86 = sphi 0, %s88
      %s89 = sphi 0, %s86
      %s90 = sphi 0, %s89
      %s106 = sphi 0, %s90
      %s112 = sphi 0, %s114
      %s115 = sphi 0, %s112
      %s116 = sphi 0, %s115
      %s132 = sphi 0, %s116
      %s138 = sphi 0, %s140
      %s141 = sphi 0, %s138
      %s142 = sphi 0, %s141
      %s158 = sphi 0, %s142
    $region4: #{discriminator_forward.6} parent=1 // loop_header_branch
      %13 = sbr.rel (%p11) target = $region8
    $region5: #{discriminator_forward.6} parent=1 // loop_body
      %s15 = ssub.s32 %s10, 1
      %s16 = ssub.s32 %s10, 2
      %s23 = sadd.s32 1, %s18
      %p24 = scmp.ge.s32.totalorder %s23, 2
      %s25 = scalar_select %p24, 0, %s23
      %s26 = sadd.s32 1, %s17
      %s27 = scalar_select %p24, %s26, %s17
      %p28 = scmp.ge.s32.totalorder %s27, 1
      %s29 = scalar_select %p28, 0, %s27
      %s30 = ssub.s32 %s18, %s25
      %p31 = scmp.eq.s32.totalorder %s30, 0
      %s33 = sadd.s32 %s32, 1
      %s34 = scalar_select %p31, %s32, %s33
      %p37 = pneg %p31
      %p38 = scmp.eq.s32.totalorder %s10, 1
      %p39 = por %p37, %p38
      %p40 = scmp.ne.s32.totalorder %s32, %s35
      %p41 = scmp.eq.s32.totalorder %s10, 0
      %p42 = por %p40, %p41
      %p43 = scmp.ne.s32.totalorder %s32, %s35
      %p44 = scmp.eq.s32.totalorder %s15, 1
      %p45 = por %p43, %p44
      %p46 = scmp.ne.s32.totalorder %s35, %s36
      %p47 = scmp.eq.s32.totalorder %s15, 0
      %p48 = por %p46, %p47
      %p49 = scmp.ne.s32.totalorder %s35, %s36
      %p50 = scmp.eq.s32.totalorder %s16, 1
      %p51 = por %p49, %p50
      %p53 = scmp.ne.s32.totalorder %s36, %s52
      %p54 = scmp.eq.s32.totalorder %s16, 0
      %p55 = por %p53, %p54
      %s56 = ssub.s32 %s18, %s25
      %s57 = ssub.s32 %s17, %s29
      %s58 = sor.u32 %s56, %s57
      %p59 = scmp.eq.s32.totalorder %s58, 0
      %s61 = sadd.s32 %s60, 1
      %s62 = scalar_select %p59, %s60, %s61
      %p65 = pneg %p59
      %p66 = scmp.eq.s32.totalorder %s10, 1
      %p67 = por %p65, %p66
      %p68 = scmp.ne.s32.totalorder %s60, %s63
      %p69 = scmp.eq.s32.totalorder %s10, 0
      %p70 = por %p68, %p69
      %p71 = scmp.ne.s32.totalorder %s60, %s63
      %p72 = scmp.eq.s32.totalorder %s15, 1
      %p73 = por %p71, %p72
      %p74 = scmp.ne.s32.totalorder %s63, %s64
      %p75 = scmp.eq.s32.totalorder %s15, 0
      %p76 = por %p74, %p75
      %p77 = scmp.ne.s32.totalorder %s63, %s64
      %p78 = scmp.eq.s32.totalorder %s16, 1
      %p79 = por %p77, %p78
      %p81 = scmp.ne.s32.totalorder %s64, %s80
      %p82 = scmp.eq.s32.totalorder %s16, 0
      %p83 = por %p81, %p82
      %s84 = ssub.s32 %s17, %s29
      %p85 = scmp.eq.s32.totalorder %s84, 0
      %s87 = sadd.s32 %s86, 1
      %s88 = scalar_select %p85, %s86, %s87
      %p91 = pneg %p85
      %p92 = scmp.eq.s32.totalorder %s10, 1
      %p93 = por %p91, %p92
      %p94 = scmp.ne.s32.totalorder %s86, %s89
      %p95 = scmp.eq.s32.totalorder %s10, 0
      %p96 = por %p94, %p95
      %p97 = scmp.ne.s32.totalorder %s86, %s89
      %p98 = scmp.eq.s32.totalorder %s15, 1
      %p99 = por %p97, %p98
      %p100 = scmp.ne.s32.totalorder %s89, %s90
      %p101 = scmp.eq.s32.totalorder %s15, 0
      %p102 = por %p100, %p101
      %p103 = scmp.ne.s32.totalorder %s89, %s90
      %p104 = scmp.eq.s32.totalorder %s16, 1
      %p105 = por %p103, %p104
      %p107 = scmp.ne.s32.totalorder %s90, %s106
      %p108 = scmp.eq.s32.totalorder %s16, 0
      %p109 = por %p107, %p108
      %s110 = ssub.s32 %s17, %s29
      %p111 = scmp.eq.s32.totalorder %s110, 0
      %s113 = sadd.s32 %s112, 1
      %s114 = scalar_select %p111, %s112, %s113
      %p117 = pneg %p111
      %p118 = scmp.eq.s32.totalorder %s10, 1
      %p119 = por %p117, %p118
      %p120 = scmp.ne.s32.totalorder %s112, %s115
      %p121 = scmp.eq.s32.totalorder %s10, 0
      %p122 = por %p120, %p121
      %p123 = scmp.ne.s32.totalorder %s112, %s115
      %p124 = scmp.eq.s32.totalorder %s15, 1
      %p125 = por %p123, %p124
      %p126 = scmp.ne.s32.totalorder %s115, %s116
      %p127 = scmp.eq.s32.totalorder %s15, 0
      %p128 = por %p126, %p127
      %p129 = scmp.ne.s32.totalorder %s115, %s116
      %p130 = scmp.eq.s32.totalorder %s16, 1
      %p131 = por %p129, %p130
      %p133 = scmp.ne.s32.totalorder %s116, %s132
      %p134 = scmp.eq.s32.totalorder %s16, 0
      %p135 = por %p133, %p134
      %s136 = ssub.s32 %s17, %s29
      %p137 = scmp.eq.s32.totalorder %s136, 0
      %s139 = sadd.s32 %s138, 1
      %s140 = scalar_select %p137, %s138, %s139
      %p143 = pneg %p137
      %p144 = scmp.eq.s32.totalorder %s10, 1
      %p145 = por %p143, %p144
      %p146 = scmp.ne.s32.totalorder %s138, %s141
      %p147 = scmp.eq.s32.totalorder %s10, 0
      %p148 = por %p146, %p147
      %p149 = scmp.ne.s32.totalorder %s138, %s141
      %p150 = scmp.eq.s32.totalorder %s15, 1
      %p151 = por %p149, %p150
      %p152 = scmp.ne.s32.totalorder %s141, %s142
      %p153 = scmp.eq.s32.totalorder %s15, 0
      %p154 = por %p152, %p153
      %p155 = scmp.ne.s32.totalorder %s141, %s142
      %p156 = scmp.eq.s32.totalorder %s16, 1
      %p157 = por %p155, %p156
      %p159 = scmp.ne.s32.totalorder %s142, %s158
      %p160 = scmp.eq.s32.totalorder %s16, 0
      %p161 = por %p159, %p160
      %p162 = scmp.le.s32.totalorder 1, %s10
      %p163 = scmp.lt.s32.totalorder %s10, 3
      %p164 = pnand %p162, %p163
      %p165 = pneg %p164
      // Predicated region
      $region9: #{discriminator_forward.6} parent=5 // pred_check
        _
      $region10: #{discriminator_forward.6} parent=5 // pred_check_branch
        %167 = sbr.rel (%p164) target = $region12
      $region11: #{discriminator_forward.6} parent=5 // pred_region
        %s168 = ssub.s32 %s10, 1
        // Predicated region
        $region13: #{discriminator_forward.6} parent=11 // pred_check
          %p169 = pneg %p102
        $region14: #{discriminator_forward.6} parent=11 // pred_check_branch
          %171 = sbr.rel (%p169) target = $region16
        $region15: #{discriminator_forward.6} parent=11 // pred_region
          %p172 = scmp.lt.s32.totalorder %s19, 0
          %s173 = scalar_select %p172, %s19, 0
          %s174 = scalar_lea.vmem %s2, %s173
        $region16: #{discriminator_forward.6} parent=11 // pred_fallthru
          _
        // Predicated region
        $region17: #{discriminator_forward.6} parent=11 // pred_check
          %p175 = pneg %p128
        $region18: #{discriminator_forward.6} parent=11 // pred_check_branch
          %177 = sbr.rel (%p175) target = $region20
        $region19: #{discriminator_forward.6} parent=11 // pred_region
          %p178 = scmp.lt.s32.totalorder %s19, 0
          %s179 = scalar_select %p178, %s19, 0
          %s180 = scalar_lea.vmem %s3, %s179
        $region20: #{discriminator_forward.6} parent=11 // pred_fallthru
          _
      $region12: #{discriminator_forward.6} parent=5 // pred_fallthru
        _
      %p181 = scmp.lt.s32.totalorder %s10, 2
      // Predicated region
      $region21: #{discriminator_forward.6} parent=5 // pred_check
        %p182 = pneg %p181
      $region22: #{discriminator_forward.6} parent=5 // pred_check_branch
        %184 = sbr.rel (%p182) target = $region24
      $region23: #{discriminator_forward.6} parent=5 // pred_region
        // Predicated region
        $region25: #{discriminator_forward.6} parent=23 // pred_check
          %p185 = pneg %p42
        $region26: #{discriminator_forward.6} parent=23 // pred_check_branch
          %187 = sbr.rel (%p185) target = $region28
        $region27: #{discriminator_forward.6} parent=23 // pred_region
          %s188 = sand.u32 %s32, 1
          %s189 = sand.u32 %s32, 1
          %s190 = smul.addr %s189, 112
          %s191 = scalar_lea.vmem [#allocation3], %s190
          %s192 = smul.u32 4, %s18
          %s193 = smul.addr %s192, 4
          %s194 = scalar_lea.vmem %s0, %s193
          // Predicated region
          $region29: #{discriminator_forward.6} parent=27 // pred_check
            _
          $region30: #{discriminator_forward.6} parent=27 // pred_check_branch
            %196 = sbr.rel (0) target = $region32
          $region31: #{discriminator_forward.6} parent=27 // pred_region
            // Predicated region
            $region33: #{discriminator_forward.6} parent=31 // pred_check
              _
            $region34: #{discriminator_forward.6} parent=31 // pred_check_branch
              %198 = sbr.rel (0) target = $region36
            $region35: #{discriminator_forward.6} parent=31 // pred_region
              loop: start=0, step=1, limit=1
              $region37: #{discriminator_forward.6} parent=35 // loop_pre_header
                _
              $region38: #{discriminator_forward.6} parent=35 // loop_header
                %s200 = sphi 0, %s204
                %p201 = scmp.ge.s32.totalorder %s200, 1
                %s205 = sphi %s194, %s194
                %s206 = sphi %s191, %s191
              $region39: #{discriminator_forward.6} parent=35 // loop_header_branch
                %203 = sbr.rel (%p201) target = $region43
              $region40: #{discriminator_forward.6} parent=35 // loop_body
                %v207 = vld [vmem:[%s205] sm:$0xff]
                %208 = vst [vmem:[%s206] sm:$0xff] %v207
                %v209 = vld [vmem:[%s205 + $0x8] sm:$0xff]
                %210 = vst [vmem:[%s206 + $0x8] sm:$0xff] %v209
                %v211 = vld [vmem:[%s205 + $0x20] sm:$0xff]
                %212 = vst [vmem:[%s206 + $0x10] sm:$0xff] %v211
                %v213 = vld [vmem:[%s205 + $0x28] sm:$0xff]
                %214 = vst [vmem:[%s206 + $0x18] sm:$0xff] %v213
                %v215 = vld [vmem:[%s205 + $0x40] sm:$0xff]
                %216 = vst [vmem:[%s206 + $0x20] sm:$0xff] %v215
                %v217 = vld [vmem:[%s205 + $0x48] sm:$0xff]
                %218 = vst [vmem:[%s206 + $0x28] sm:$0xff] %v217
                %v219 = vld [vmem:[%s205 + $0x60] sm:$0xff]
                %220 = vst [vmem:[%s206 + $0x30] sm:$0xff] %v219
                %v221 = vld [vmem:[%s205 + $0x68] sm:$0xff]
                %222 = vst [vmem:[%s206 + $0x38] sm:$0xff] %v221
                %v223 = vld [vmem:[%s205 + $0x80] sm:$0xff]
                %224 = vst [vmem:[%s206 + $0x40] sm:$0xff] %v223
                %v225 = vld [vmem:[%s205 + $0x88] sm:$0xff]
                %226 = vst [vmem:[%s206 + $0x48] sm:$0xff] %v225
                %v227 = vld [vmem:[%s205 + $0xa0] sm:$0xff]
                %228 = vst [vmem:[%s206 + $0x50] sm:$0xff] %v227
                %v229 = vld [vmem:[%s205 + $0xa8] sm:$0xff]
                %230 = vst [vmem:[%s206 + $0x58] sm:$0xff] %v229
                %v231 = vld [vmem:[%s205 + $0xc0] sm:$0xff]
                %232 = vst [vmem:[%s206 + $0x60] sm:$0xff] %v231
                %v233 = vld [vmem:[%s205 + $0xc8] sm:$0xff]
                %234 = vst [vmem:[%s206 + $0x68] sm:$0xff] %v233
              $region41: #{discriminator_forward.6} parent=35 // loop_footer
                %s204 = sadd.s32 1, %s200
              $region42: #{discriminator_forward.6} parent=35 // loop_footer_branch
                %199 = sbr.rel target = $region38
              $region43: #{discriminator_forward.6} parent=35 // loop_exit
                _
            $region36: #{discriminator_forward.6} parent=31 // pred_fallthru
              _
            // Predicated region
            $region44: #{discriminator_forward.6} parent=31 // pred_check
              _
            $region45: #{discriminator_forward.6} parent=31 // pred_check_branch
              %236 = sbr.rel target = $region47
            $region46: #{discriminator_forward.6} parent=31 // pred_region
              _
            $region47: #{discriminator_forward.6} parent=31 // pred_fallthru
              _
          $region32: #{discriminator_forward.6} parent=27 // pred_fallthru
            _
          %237 = vnop
        $region28: #{discriminator_forward.6} parent=23 // pred_fallthru
          _
        // Predicated region
        $region48: #{discriminator_forward.6} parent=23 // pred_check
          %p238 = pneg %p70
        $region49: #{discriminator_forward.6} parent=23 // pred_check_branch
          %240 = sbr.rel (%p238) target = $region51
        $region50: #{discriminator_forward.6} parent=23 // pred_region
          %s241 = smul.u32 64, %s18
          %p242 = scmp.lt.s32.totalorder %s241, 127
          %s243 = scalar_select %p242, %s241, 127
          %p244 = scmp.lt.s32.totalorder %s17, 0
          %s245 = scalar_select %p244, %s17, 0
          %s246 = sadd.s32 %s245, %s243
          %s247 = smul.addr %s246, 4
          %s248 = scalar_lea.vmem %s1, %s247
          %s249 = smul.u32 64, %s18
        $region51: #{discriminator_forward.6} parent=23 // pred_fallthru
          _
      $region24: #{discriminator_forward.6} parent=5 // pred_fallthru
        _
      %p250 = scmp.le.s32.totalorder 1, %s10
      %p251 = scmp.lt.s32.totalorder %s10, 3
      %p252 = pnand %p250, %p251
      %p253 = pneg %p252
      // Predicated region
      $region52: #{discriminator_forward.6} parent=5 // pred_check
        _
      $region53: #{discriminator_forward.6} parent=5 // pred_check_branch
        %255 = sbr.rel (%p252) target = $region55
      $region54: #{discriminator_forward.6} parent=5 // pred_region
        %s256 = ssub.s32 %s10, 1
        %s257 = sand.u32 %s35, 1
        %s258 = sand.u32 %s35, 1
        %s259 = smul.addr %s258, 112
        %s260 = scalar_lea.vmem [#allocation3], %s259
        // Predicated region
        $region56: #{discriminator_forward.6} parent=54 // pred_check
          %p261 = pneg %p48
        $region57: #{discriminator_forward.6} parent=54 // pred_check_branch
          %263 = sbr.rel (%p261) target = $region59
        $region58: #{discriminator_forward.6} parent=54 // pred_region
          _
        $region59: #{discriminator_forward.6} parent=54 // pred_fallthru
          _
        %s264 = sand.u32 %s35, 1
        %s265 = sand.u32 %s35, 1
        %s266 = smul.addr %s265, 112
        %s267 = scalar_lea.vmem [#allocation3], %s266
        %p268 = pneg %p48
        %p269 = pneg %p45
        %s270 = smul.u32 64, %s20
        %p271 = scmp.lt.s32.totalorder %s270, 127
        %s272 = scalar_select %p271, %s270, 127
        %p273 = scmp.lt.s32.totalorder %s19, 0
        %s274 = scalar_select %p273, %s19, 0
        %s275 = sadd.s32 %s274, %s272
        %s276 = smul.addr %s275, 4
        %s277 = scalar_lea.vmem %s1, %s276
        %p278 = pneg %p76
        %p279 = pneg %p73
        %p280 = scmp.lt.s32.totalorder %s19, 0
        %s281 = scalar_select %p280, %s19, 0
        %s282 = scalar_lea.vmem %s2, %s281
        %p283 = pneg %p102
        %p284 = pneg %p99
        %p285 = scmp.lt.s32.totalorder %s19, 0
        %s286 = scalar_select %p285, %s19, 0
        %s287 = scalar_lea.vmem %s3, %s286
        %p288 = pneg %p128
        %p289 = pneg %p125
        %p290 = pneg %p154
        %p291 = pneg %p151
        %p292 = scmp.lt.s32.totalorder %s19, 0
        %s293 = scalar_select %p292, %s19, 0
        %s294 = smul.addr %s293, 8
        %s295 = scalar_lea.vmem %s4, %s294
        %s296 = smul.u32 4, %s20
        %s297 = smul.u32 64, %s20
        %p298 = scmp.lt.s32.totalorder %s297, 127
        %s299 = scalar_select %p298, %s297, 127
        %p300 = scmp.lt.s32.totalorder %s19, 0
        %s301 = scalar_select %p300, %s19, 0
        %s302 = sadd.s32 %s301, %s299
        %s303 = smul.addr %s302, 4
        %s304 = scalar_lea.vmem %s1, %s303
        %s305 = smul.u32 64, %s20
        %p306 = scmp.lt.s32.totalorder %s19, 0
        %s307 = scalar_select %p306, %s19, 0
        %s308 = scalar_lea.vmem %s2, %s307
        %p309 = scmp.lt.s32.totalorder %s19, 0
        %s310 = scalar_select %p309, %s19, 0
        %s311 = scalar_lea.vmem %s3, %s310
        %p312 = scmp.lt.s32.totalorder %s19, 0
        %s313 = scalar_select %p312, %s19, 0
        %s314 = smul.addr %s313, 8
        %s315 = scalar_lea.vmem %s4, %s314
        %p317 = scmp.eq.s32.totalorder %s20, 0
        // Predicated region
        $region60: #{discriminator_forward.6} parent=54 // pred_check
          %p318 = pneg %p317
        $region61: #{discriminator_forward.6} parent=54 // pred_check_branch
          %320 = sbr.rel (%p318) target = $region63
        $region62: #{discriminator_forward.6} parent=54 // pred_region
          %321 = vst [vmem:[#allocation2] sm:$0xff] 0.0
          %322 = vst [vmem:[#allocation2 + $0x8] sm:$0xff] 0.0
          %323 = vst [vmem:[#allocation2 + $0x10] sm:$0xff] 0.0
          %324 = vst [vmem:[#allocation2 + $0x18] sm:$0xff] 0.0
          %325 = vst [vmem:[#allocation2 + $0x20] sm:$0xff] 0.0
          %326 = vst [vmem:[#allocation2 + $0x28] sm:$0xff] 0.0
          %327 = vst [vmem:[#allocation2 + $0x30] sm:$0x3] 0.0
        $region63: #{discriminator_forward.6} parent=54 // pred_fallthru
          _
        %v328 = vld [vmem:[#allocation2] sm:$0xff]
        %v329 = vld [vmem:[#allocation2 + $0x8] sm:$0xff]
        %v330 = vld [vmem:[#allocation2 + $0x10] sm:$0xff]
        %v331 = vld [vmem:[#allocation2 + $0x18] sm:$0xff]
        %v332 = vld [vmem:[#allocation2 + $0x20] sm:$0xff]
        %v333 = vld [vmem:[#allocation2 + $0x28] sm:$0xff]
        %v334 = vld [vmem:[#allocation2 + $0x30] sm:$0x3]
        %v335 = vld [vmem:[%s260] sm:$0xff]
        %v336 = vld [vmem:[%s260 + $0x8] sm:$0xff]
        %v337 = vld [vmem:[%s260 + $0x10] sm:$0xff]
        %v338 = vld [vmem:[%s260 + $0x18] sm:$0xff]
        %v339 = vld [vmem:[%s260 + $0x20] sm:$0xff]
        %v340 = vld [vmem:[%s260 + $0x28] sm:$0xff]
        %v341 = vld [vmem:[%s260 + $0x30] sm:$0xff]
        %v342 = vld [vmem:[%s260 + $0x38] sm:$0xff]
        %v343 = vld [vmem:[%s260 + $0x40] sm:$0xff]
        %v344 = vld [vmem:[%s260 + $0x48] sm:$0xff]
        %v345 = vld [vmem:[%s260 + $0x50] sm:$0xff]
        %v346 = vld [vmem:[%s260 + $0x58] sm:$0xff]
        %v347 = vld [vmem:[%s260 + $0x60] sm:$0x11]
        %v348 = vld [vmem:[%s260 + $0x68] sm:$0x11]
        %v349 = vld [vmem:[%s304] sm:$0xf]
        %v350 = vld [vmem:[%s304 + $0x4] sm:$0xf]
        %v351 = vld [vmem:[%s304 + $0x8] sm:$0xf]
        %v352 = vld [vmem:[%s304 + $0xc] sm:$0xf]
        %v353 = vld [vmem:[%s304 + $0x10] sm:$0xf]
        %v354 = vld [vmem:[%s304 + $0x14] sm:$0xf]
        %v355 = vld [vmem:[%s304 + $0x18] sm:$0xf]
        %v356 = vld [vmem:[%s304 + $0x1c] sm:$0xf]
        %v357 = vld [vmem:[%s304 + $0x20] sm:$0xf]
        %v358 = vld [vmem:[%s304 + $0x24] sm:$0xf]
        %v359 = vld [vmem:[%s304 + $0x28] sm:$0xf]
        %v360 = vld [vmem:[%s304 + $0x2c] sm:$0xf]
        %v361 = vld [vmem:[%s304 + $0x30] sm:$0xf]
        %v362 = vld [vmem:[%s304 + $0x34] sm:$0xf]
        %v363 = vld [vmem:[%s304 + $0x38] sm:$0xf]
        %v364 = vld [vmem:[%s304 + $0x3c] sm:$0xf]
        %v365 = vld [vmem:[%s304 + $0x40] sm:$0xf]
        %v366 = vld [vmem:[%s304 + $0x44] sm:$0xf]
        %v367 = vld [vmem:[%s304 + $0x48] sm:$0xf]
        %v368 = vld [vmem:[%s304 + $0x4c] sm:$0xf]
        %v369 = vld [vmem:[%s304 + $0x50] sm:$0xf]
        %v370 = vld [vmem:[%s304 + $0x54] sm:$0xf]
        %v371 = vld [vmem:[%s304 + $0x58] sm:$0xf]
        %v372 = vld [vmem:[%s304 + $0x5c] sm:$0xf]
        %v373 = vld [vmem:[%s304 + $0x60] sm:$0xf]
        %v374 = vld [vmem:[%s304 + $0x64] sm:$0xf]
        %v375 = vld [vmem:[%s304 + $0x68] sm:$0xf]
        %v376 = vld [vmem:[%s304 + $0x6c] sm:$0xf]
        %v377 = vld [vmem:[%s304 + $0x70] sm:$0xf]
        %v378 = vld [vmem:[%s304 + $0x74] sm:$0xf]
        %v379 = vld [vmem:[%s304 + $0x78] sm:$0xf]
        %v380 = vld [vmem:[%s304 + $0x7c] sm:$0xf]
        %v381 = vld [vmem:[%s304 + $0x80] sm:$0xf]
        %v382 = vld [vmem:[%s304 + $0x84] sm:$0xf]
        %v383 = vld [vmem:[%s304 + $0x88] sm:$0xf]
        %v384 = vld [vmem:[%s304 + $0x8c] sm:$0xf]
        %v385 = vld [vmem:[%s304 + $0x90] sm:$0xf]
        %v386 = vld [vmem:[%s304 + $0x94] sm:$0xf]
        %v387 = vld [vmem:[%s304 + $0x98] sm:$0xf]
        %v388 = vld [vmem:[%s304 + $0x9c] sm:$0xf]
        %v389 = vld [vmem:[%s304 + $0xa0] sm:$0xf]
        %v390 = vld [vmem:[%s304 + $0xa4] sm:$0xf]
        %v391 = vld [vmem:[%s304 + $0xa8] sm:$0xf]
        %v392 = vld [vmem:[%s304 + $0xac] sm:$0xf]
        %v393 = vld [vmem:[%s304 + $0xb0] sm:$0xf]
        %v394 = vld [vmem:[%s304 + $0xb4] sm:$0xf]
        %v395 = vld [vmem:[%s304 + $0xb8] sm:$0xf]
        %v396 = vld [vmem:[%s304 + $0xbc] sm:$0xf]
        %v397 = vld [vmem:[%s304 + $0xc0] sm:$0xf]
        %v398 = vld [vmem:[%s304 + $0xc4] sm:$0xf]
        %v399 = vld [vmem:[%s304 + $0xc8] sm:$0xf]
        %v400 = vld [vmem:[%s304 + $0xcc] sm:$0xf]
        %v401 = vld [vmem:[%s304 + $0xd0] sm:$0xf]
        %v402 = vld [vmem:[%s304 + $0xd4] sm:$0xf]
        %v403 = vld [vmem:[%s304 + $0xd8] sm:$0xf]
        %v404 = vld [vmem:[%s304 + $0xdc] sm:$0xf]
        %v405 = vld [vmem:[%s304 + $0xe0] sm:$0xf]
        %v406 = vld [vmem:[%s304 + $0xe4] sm:$0xf]
        %v407 = vld [vmem:[%s304 + $0xe8] sm:$0xf]
        %v408 = vld [vmem:[%s304 + $0xec] sm:$0xf]
        %v409 = vld [vmem:[%s304 + $0xf0] sm:$0xf]
        %v410 = vld [vmem:[%s304 + $0xf4] sm:$0xf]
        %v411 = vld [vmem:[%s304 + $0xf8] sm:$0xf]
        %v412 = vld [vmem:[%s304 + $0xfc] sm:$0xf]
        %v427 = vunpack.c.l.b16 %v335
        %v428 = vunpack.c.h.b16 %v335
        %v429 = vunpack.c.l.b16 %v336
        %v430 = vunpack.c.h.b16 %v336
        %v431 = vunpack.c.l.b16 %v337
        %v432 = vunpack.c.h.b16 %v337
        %v433 = vunpack.c.l.b16 %v338
        %v434 = vunpack.c.h.b16 %v338
        %v435 = vunpack.c.l.b16 %v339
        %v436 = vunpack.c.h.b16 %v339
        %v437 = vunpack.c.l.b16 %v340
        %v438 = vunpack.c.h.b16 %v340
        %v439 = vunpack.c.l.b16 %v341
        %v440 = vunpack.c.h.b16 %v341
        %v441 = vunpack.c.l.b16 %v342
        %v442 = vunpack.c.h.b16 %v342
        %v443 = vunpack.c.l.b16 %v343
        %v444 = vunpack.c.h.b16 %v343
        %v445 = vunpack.c.l.b16 %v344
        %v446 = vunpack.c.h.b16 %v344
        %v447 = vunpack.c.l.b16 %v345
        %v448 = vunpack.c.h.b16 %v345
        %v449 = vunpack.c.l.b16 %v346
        %v450 = vunpack.c.h.b16 %v346
        %v451 = vunpack.c.l.b16 %v347
        %v452 = vunpack.c.h.b16 %v347
        %v453 = vunpack.c.l.b16 %v348
        %v454 = vunpack.c.h.b16 %v348
        %v455 = vpack.c.b16 %v431, %v427
        %v456 = vpack.c.b16 %v432, %v428
        %v457 = vpack.c.b16 %v433, %v429
        %v458 = vpack.c.b16 %v434, %v430
        %v459 = vpack.c.b16 %v439, %v435
        %v460 = vpack.c.b16 %v440, %v436
        %v461 = vpack.c.b16 %v441, %v437
        %v462 = vpack.c.b16 %v442, %v438
        %v463 = vpack.c.b16 %v447, %v443
        %v464 = vpack.c.b16 %v448, %v444
        %v465 = vpack.c.b16 %v449, %v445
        %v466 = vpack.c.b16 %v450, %v446
        %v467 = vpack.c.b16 %v451, %v451
        %v468 = vpack.c.b16 %v452, %v452
        %v469 = vpack.c.b16 %v453, %v453
        %v470 = vpack.c.b16 %v454, %v454
        %v551 = vunpack.c.l.b16 %v349
        %v552 = vunpack.c.l.b16 %v350
        %v553 = vunpack.c.l.b16 %v351
        %v554 = vunpack.c.l.b16 %v352
        %v555 = vunpack.c.l.b16 %v353
        %v556 = vunpack.c.l.b16 %v354
        %v557 = vunpack.c.l.b16 %v355
        %v558 = vunpack.c.l.b16 %v356
        %v559 = vunpack.c.l.b16 %v357
        %v560 = vunpack.c.l.b16 %v358
        %v561 = vunpack.c.l.b16 %v359
        %v562 = vunpack.c.l.b16 %v360
        %v563 = vunpack.c.l.b16 %v361
        %v564 = vunpack.c.l.b16 %v362
        %v565 = vunpack.c.l.b16 %v363
        %v566 = vunpack.c.l.b16 %v364
        %v567 = vunpack.c.l.b16 %v365
        %v568 = vunpack.c.l.b16 %v366
        %v569 = vunpack.c.l.b16 %v367
        %v570 = vunpack.c.l.b16 %v368
        %v571 = vunpack.c.l.b16 %v369
        %v572 = vunpack.c.l.b16 %v370
        %v573 = vunpack.c.l.b16 %v371
        %v574 = vunpack.c.l.b16 %v372
        %v575 = vunpack.c.l.b16 %v373
        %v576 = vunpack.c.l.b16 %v374
        %v577 = vunpack.c.l.b16 %v375
        %v578 = vunpack.c.l.b16 %v376
        %v579 = vunpack.c.l.b16 %v377
        %v580 = vunpack.c.l.b16 %v378
        %v581 = vunpack.c.l.b16 %v379
        %v582 = vunpack.c.l.b16 %v380
        %v583 = vunpack.c.l.b16 %v381
        %v584 = vunpack.c.l.b16 %v382
        %v585 = vunpack.c.l.b16 %v383
        %v586 = vunpack.c.l.b16 %v384
        %v587 = vunpack.c.l.b16 %v385
        %v588 = vunpack.c.l.b16 %v386
        %v589 = vunpack.c.l.b16 %v387
        %v590 = vunpack.c.l.b16 %v388
        %v591 = vunpack.c.l.b16 %v389
        %v592 = vunpack.c.l.b16 %v390
        %v593 = vunpack.c.l.b16 %v391
        %v594 = vunpack.c.l.b16 %v392
        %v595 = vunpack.c.l.b16 %v393
        %v596 = vunpack.c.l.b16 %v394
        %v597 = vunpack.c.l.b16 %v395
        %v598 = vunpack.c.l.b16 %v396
        %v599 = vunpack.c.l.b16 %v397
        %v600 = vunpack.c.l.b16 %v398
        %v601 = vunpack.c.l.b16 %v399
        %v602 = vunpack.c.l.b16 %v400
        %v603 = vunpack.c.l.b16 %v401
        %v604 = vunpack.c.l.b16 %v402
        %v605 = vunpack.c.l.b16 %v403
        %v606 = vunpack.c.l.b16 %v404
        %v607 = vunpack.c.l.b16 %v405
        %v608 = vunpack.c.l.b16 %v406
        %v609 = vunpack.c.l.b16 %v407
        %v610 = vunpack.c.l.b16 %v408
        %v611 = vunpack.c.l.b16 %v409
        %v612 = vunpack.c.l.b16 %v410
        %v613 = vunpack.c.l.b16 %v411
        %v614 = vunpack.c.l.b16 %v412
        %v615 = vpack.c.b16 %v552, %v551
        %v616 = vpack.c.b16 %v554, %v553
        %v617 = vpack.c.b16 %v556, %v555
        %v618 = vpack.c.b16 %v558, %v557
        %v619 = vpack.c.b16 %v560, %v559
        %v620 = vpack.c.b16 %v562, %v561
        %v621 = vpack.c.b16 %v564, %v563
        %v622 = vpack.c.b16 %v566, %v565
        %v623 = vpack.c.b16 %v568, %v567
        %v624 = vpack.c.b16 %v570, %v569
        %v625 = vpack.c.b16 %v572, %v571
        %v626 = vpack.c.b16 %v574, %v573
        %v627 = vpack.c.b16 %v576, %v575
        %v628 = vpack.c.b16 %v578, %v577
        %v629 = vpack.c.b16 %v580, %v579
        %v630 = vpack.c.b16 %v582, %v581
        %v631 = vpack.c.b16 %v584, %v583
        %v632 = vpack.c.b16 %v586, %v585
        %v633 = vpack.c.b16 %v588, %v587
        %v634 = vpack.c.b16 %v590, %v589
        %v635 = vpack.c.b16 %v592, %v591
        %v636 = vpack.c.b16 %v594, %v593
        %v637 = vpack.c.b16 %v596, %v595
        %v638 = vpack.c.b16 %v598, %v597
        %v639 = vpack.c.b16 %v600, %v599
        %v640 = vpack.c.b16 %v602, %v601
        %v641 = vpack.c.b16 %v604, %v603
        %v642 = vpack.c.b16 %v606, %v605
        %v643 = vpack.c.b16 %v608, %v607
        %v644 = vpack.c.b16 %v610, %v609
        %v645 = vpack.c.b16 %v612, %v611
        %v646 = vpack.c.b16 %v614, %v613
        %679 = vmatprep.subr.bf16.mxu0 0
        %680 = vmatpush1.bf16.msra.mxu0 %v622
        %681 = vmatprep.subr.bf16.mxu0 0
        %682 = vmatpush1.bf16.msra.mxu0 %v621
        %683 = vmatprep.subr.bf16.mxu0 0
        %684 = vmatpush1.bf16.msra.mxu0 %v620
        %685 = vmatprep.subr.bf16.mxu0 0
        %686 = vmatpush1.bf16.msra.mxu0 %v619
        %687 = vmatprep.subr.bf16.mxu0 0
        %688 = vmatpush1.bf16.msra.mxu0 %v618
        %689 = vmatprep.subr.bf16.mxu0 0
        %690 = vmatpush1.bf16.msra.mxu0 %v617
        %691 = vmatprep.subr.bf16.mxu0 0
        %692 = vmatpush1.bf16.msra.mxu0 %v616
        %693 = vmatprep.subr.bf16.mxu0 0
        %694 = vmatpush1.bf16.msra.mxu0 %v615
        %695 = vmatprep.subr.bf16.mxu0 0
        %696 = vmatpush2.bf16.msra.mxu0 %v630
        %697 = vmatprep.subr.bf16.mxu0 0
        %698 = vmatpush2.bf16.msra.mxu0 %v629
        %699 = vmatprep.subr.bf16.mxu0 0
        %700 = vmatpush2.bf16.msra.mxu0 %v628
        %701 = vmatprep.subr.bf16.mxu0 0
        %702 = vmatpush2.bf16.msra.mxu0 %v627
        %703 = vmatprep.subr.bf16.mxu0 0
        %704 = vmatpush2.bf16.msra.mxu0 %v626
        %705 = vmatprep.subr.bf16.mxu0 0
        %706 = vmatpush2.bf16.msra.mxu0 %v625
        %707 = vmatprep.subr.bf16.mxu0 0
        %708 = vmatpush2.bf16.msra.mxu0 %v624
        %709 = vmatprep.subr.bf16.mxu0 0
        %710 = vmatpush2.bf16.msra.mxu0 %v623
        %711 = vmatprep.mubr.bf16.mxu0 %v456
        %712 = vmatmul.mubr.bf16.gmra.mxu0 %v455
        %v713 = vpop.f32.mrf.mxu0
        %v714 = vadd.f32 0.0, %v713
        %v715 = vpop.f32.mrf.mxu0
        %v716 = vpop.f32.mrf.mxu0
        %v717 = vadd.f32 0.0, %v716
        %v718 = vpop.f32.mrf.mxu0
        %719 = vmatprep.mubr.bf16.mxu0 %v460
        %720 = vmatmul.mubr.bf16.gmra.mxu0 %v459
        %v721 = vpop.f32.mrf.mxu0
        %v722 = vadd.f32 0.0, %v721
        %v723 = vpop.f32.mrf.mxu0
        %v724 = vpop.f32.mrf.mxu0
        %v725 = vadd.f32 0.0, %v724
        %v726 = vpop.f32.mrf.mxu0
        %727 = vmatprep.mubr.bf16.mxu0 %v464
        %728 = vmatmul.mubr.bf16.gmra.mxu0 %v463
        %v729 = vpop.f32.mrf.mxu0
        %v730 = vadd.f32 0.0, %v729
        %v731 = vpop.f32.mrf.mxu0
        %v732 = vpop.f32.mrf.mxu0
        %v733 = vadd.f32 0.0, %v732
        %v734 = vpop.f32.mrf.mxu0
        %735 = vmatprep.mubr.bf16.mxu0 %v468
        %736 = vmatmul.mubr.bf16.gmra.mxu0 %v467
        %v737 = vpop.f32.mrf.mxu0
        %v738 = vadd.f32 0.0, %v737
        %v739 = vpop.f32.mrf.mxu0
        %v740 = vpop.f32.mrf.mxu0
        %v741 = vpop.f32.mrf.mxu0
        %742 = vdwg.mxu0
        %743 = vmatprep.subr.bf16.mxu0 0
        %744 = vmatpush1.bf16.msra.mxu0 %v638
        %745 = vmatprep.subr.bf16.mxu0 0
        %746 = vmatpush1.bf16.msra.mxu0 %v637
        %747 = vmatprep.subr.bf16.mxu0 0
        %748 = vmatpush1.bf16.msra.mxu0 %v636
        %749 = vmatprep.subr.bf16.mxu0 0
        %750 = vmatpush1.bf16.msra.mxu0 %v635
        %751 = vmatprep.subr.bf16.mxu0 0
        %752 = vmatpush1.bf16.msra.mxu0 %v634
        %753 = vmatprep.subr.bf16.mxu0 0
        %754 = vmatpush1.bf16.msra.mxu0 %v633
        %755 = vmatprep.subr.bf16.mxu0 0
        %756 = vmatpush1.bf16.msra.mxu0 %v632
        %757 = vmatprep.subr.bf16.mxu0 0
        %758 = vmatpush1.bf16.msra.mxu0 %v631
        %759 = vmatprep.subr.bf16.mxu0 0
        %760 = vmatpush2.bf16.msra.mxu0 %v646
        %761 = vmatprep.subr.bf16.mxu0 0
        %762 = vmatpush2.bf16.msra.mxu0 %v645
        %763 = vmatprep.subr.bf16.mxu0 0
        %764 = vmatpush2.bf16.msra.mxu0 %v644
        %765 = vmatprep.subr.bf16.mxu0 0
        %766 = vmatpush2.bf16.msra.mxu0 %v643
        %767 = vmatprep.subr.bf16.mxu0 0
        %768 = vmatpush2.bf16.msra.mxu0 %v642
        %769 = vmatprep.subr.bf16.mxu0 0
        %770 = vmatpush2.bf16.msra.mxu0 %v641
        %771 = vmatprep.subr.bf16.mxu0 0
        %772 = vmatpush2.bf16.msra.mxu0 %v640
        %773 = vmatprep.subr.bf16.mxu0 0
        %774 = vmatpush2.bf16.msra.mxu0 %v639
        %775 = vmatprep.mubr.bf16.mxu0 %v458
        %776 = vmatmul.mubr.bf16.gmra.mxu0 %v457
        %v777 = vpop.f32.mrf.mxu0
        %v778 = vadd.f32 %v714, %v777
        %v779 = vpop.f32.mrf.mxu0
        %v780 = vpop.f32.mrf.mxu0
        %v781 = vadd.f32 %v717, %v780
        %v782 = vpop.f32.mrf.mxu0
        %783 = vmatprep.mubr.bf16.mxu0 %v462
        %784 = vmatmul.mubr.bf16.gmra.mxu0 %v461
        %v785 = vpop.f32.mrf.mxu0
        %v786 = vadd.f32 %v722, %v785
        %v787 = vpop.f32.mrf.mxu0
        %v788 = vpop.f32.mrf.mxu0
        %v789 = vadd.f32 %v725, %v788
        %v790 = vpop.f32.mrf.mxu0
        %791 = vmatprep.mubr.bf16.mxu0 %v466
        %792 = vmatmul.mubr.bf16.gmra.mxu0 %v465
        %v793 = vpop.f32.mrf.mxu0
        %v794 = vadd.f32 %v730, %v793
        %v795 = vpop.f32.mrf.mxu0
        %v796 = vpop.f32.mrf.mxu0
        %v797 = vadd.f32 %v733, %v796
        %v798 = vpop.f32.mrf.mxu0
        %799 = vmatprep.mubr.bf16.mxu0 %v470
        %800 = vmatmul.mubr.bf16.gmra.mxu0 %v469
        %v801 = vpop.f32.mrf.mxu0
        %v802 = vadd.f32 %v738, %v801
        %v803 = vpop.f32.mrf.mxu0
        %v804 = vpop.f32.mrf.mxu0
        %v805 = vpop.f32.mrf.mxu0
        %806 = vdwg.mxu0
        %v807 = vadd.f32 %v328, %v778
        %v808 = vadd.f32 %v329, %v781
        %v809 = vadd.f32 %v330, %v786
        %v810 = vadd.f32 %v331, %v789
        %v811 = vadd.f32 %v332, %v794
        %v812 = vadd.f32 %v333, %v797
        %v813 = vadd.f32 %v334, %v802
        %814 = vst [vmem:[#allocation2] sm:$0xff] %v807
        %815 = vst [vmem:[#allocation2 + $0x8] sm:$0xff] %v808
        %816 = vst [vmem:[#allocation2 + $0x10] sm:$0xff] %v809
        %817 = vst [vmem:[#allocation2 + $0x18] sm:$0xff] %v810
        %818 = vst [vmem:[#allocation2 + $0x20] sm:$0xff] %v811
        %819 = vst [vmem:[#allocation2 + $0x28] sm:$0xff] %v812
        %820 = vst [vmem:[#allocation2 + $0x30] sm:$0x3] %v813
        %p821 = scmp.eq.s32.totalorder %s20, 1
        // Predicated region
        $region64: #{discriminator_forward.6} parent=54 // pred_check
          %p822 = pneg %p821
        $region65: #{discriminator_forward.6} parent=54 // pred_check_branch
          %824 = sbr.rel (%p822) target = $region67
        $region66: #{discriminator_forward.6} parent=54 // pred_region
          %v825 = vld [vmem:[#allocation2] sm:$0xff]
          %v826 = vld [vmem:[#allocation2 + $0x8] sm:$0xff]
          %v827 = vld [vmem:[#allocation2 + $0x10] sm:$0xff]
          %v828 = vld [vmem:[#allocation2 + $0x18] sm:$0xff]
          %v829 = vld [vmem:[#allocation2 + $0x20] sm:$0xff]
          %v830 = vld [vmem:[#allocation2 + $0x28] sm:$0xff]
          %v831 = vld [vmem:[#allocation2 + $0x30] sm:$0x3]
          %v832 = vadd.f32 %v825, %v826
          %v833 = vadd.f32 %v832, %v827
          %v834 = vadd.f32 %v833, %v828
          %v835 = vadd.f32 %v834, %v829
          %v836 = vadd.f32 %v835, %v830
          %vm837 = vcmask 1041408
          %v838 = vsel %vm837, %v831, 0.0
          %v839 = vadd.f32 %v836, %v838
          %v840 = vrot.slane %v839, 4
          %v841 = vadd.f32 %v839, %v840
          %v842 = vrot.slane %v841, 2
          %v843 = vadd.f32 %v841, %v842
          %v844 = vrot.slane %v843, 1
          %v845 = vadd.f32 %v843, %v844
          %v846 = vmul.f32 %v845, 0.02
          %v847 = vmul.f32 %v825, %v825
          %v848 = vmul.f32 %v826, %v826
          %v849 = vmul.f32 %v827, %v827
          %v850 = vmul.f32 %v828, %v828
          %v851 = vmul.f32 %v829, %v829
          %v852 = vmul.f32 %v830, %v830
          %v853 = vmul.f32 %v831, %v831
          %v854 = vadd.f32 %v847, %v848
          %v855 = vadd.f32 %v854, %v849
          %v856 = vadd.f32 %v855, %v850
          %v857 = vadd.f32 %v856, %v851
          %v858 = vadd.f32 %v857, %v852
          %v859 = vsel %vm837, %v853, 0.0
          %v860 = vadd.f32 %v858, %v859
          %v861 = vrot.slane %v860, 4
          %v862 = vadd.f32 %v860, %v861
          %v863 = vrot.slane %v862, 2
          %v864 = vadd.f32 %v862, %v863
          %v865 = vrot.slane %v864, 1
          %v866 = vadd.f32 %v864, %v865
          %v867 = vmul.f32 %v866, 0.02
          %v868 = vmul.f32 %v846, %v846
          %v869 = vsub.f32 %v867, %v868
          %v870 = vsub.f32 %v825, %v846
          %v871 = vsub.f32 %v826, %v846
          %v872 = vsub.f32 %v827, %v846
          %v873 = vsub.f32 %v828, %v846
          %v874 = vsub.f32 %v829, %v846
          %v875 = vsub.f32 %v830, %v846
          %v876 = vsub.f32 %v831, %v846
          %v877 = vadd.f32 %v869, 1e-05
          %v878 = vrsqrt.pop %v877
          %v879 = vmul.f32 %v870, %v878
          %v880 = vmul.f32 %v871, %v878
          %v881 = vmul.f32 %v872, %v878
          %v882 = vmul.f32 %v873, %v878
          %v883 = vmul.f32 %v874, %v878
          %v884 = vmul.f32 %v875, %v878
          %v885 = vmul.f32 %v876, %v878
          %v886 = vld [vmem:[%s308] sm:$0x1]
          %v888 = vlaneseq
          %v889 = vshrl.u32 %v888, 7
          %v890 = vsub.s32 0, %v889
          %v891 = vrot.slane %v886, %v890
          %v893 = vmul.f32 %v879, %v891
          %v894 = vmul.f32 %v880, %v891
          %v895 = vmul.f32 %v881, %v891
          %v896 = vmul.f32 %v882, %v891
          %v897 = vmul.f32 %v883, %v891
          %v898 = vmul.f32 %v884, %v891
          %v899 = vmul.f32 %v885, %v891
          %v900 = vld [vmem:[%s311] sm:$0x1]
          %v902 = vlaneseq
          %v903 = vshrl.u32 %v902, 7
          %v904 = vsub.s32 0, %v903
          %v905 = vrot.slane %v900, %v904
          %v907 = vadd.f32 %v893, %v905
          %v908 = vadd.f32 %v894, %v905
          %v909 = vadd.f32 %v895, %v905
          %v910 = vadd.f32 %v896, %v905
          %v911 = vadd.f32 %v897, %v905
          %v912 = vadd.f32 %v898, %v905
          %v913 = vadd.f32 %v899, %v905
          %vm914 = vcmp.ge.f32.partialorder %v907, 0.0
          %vm915 = vcmp.ge.f32.partialorder %v908, 0.0
          %vm916 = vcmp.ge.f32.partialorder %v909, 0.0
          %vm917 = vcmp.ge.f32.partialorder %v910, 0.0
          %vm918 = vcmp.ge.f32.partialorder %v911, 0.0
          %vm919 = vcmp.ge.f32.partialorder %v912, 0.0
          %vm920 = vcmp.ge.f32.partialorder %v913, 0.0
          %v921 = vmul.f32 %v907, 0.2
          %v922 = vmul.f32 %v908, 0.2
          %v923 = vmul.f32 %v909, 0.2
          %v924 = vmul.f32 %v910, 0.2
          %v925 = vmul.f32 %v911, 0.2
          %v926 = vmul.f32 %v912, 0.2
          %v927 = vmul.f32 %v913, 0.2
          %v928 = vsel %vm914, %v907, %v921
          %v929 = vsel %vm915, %v908, %v922
          %v930 = vsel %vm916, %v909, %v923
          %v931 = vsel %vm917, %v910, %v924
          %v932 = vsel %vm918, %v911, %v925
          %v933 = vsel %vm919, %v912, %v926
          %v934 = vsel %vm920, %v913, %v927
          %935 = vst [vmem:[%s315] sm:$0xff] %v928
          %936 = vst [vmem:[%s315 + $0x8] sm:$0xff] %v929
          %937 = vst [vmem:[%s315 + $0x10] sm:$0xff] %v930
          %938 = vst [vmem:[%s315 + $0x18] sm:$0xff] %v931
          %939 = vst [vmem:[%s315 + $0x20] sm:$0xff] %v932
          %940 = vst [vmem:[%s315 + $0x28] sm:$0xff] %v933
          %941 = vst [vmem:[%s315 + $0x30] sm:$0x3] %v934
        $region67: #{discriminator_forward.6} parent=54 // pred_fallthru
          _
        %p942 = scmp.lt.s32.totalorder %s19, 0
        %s943 = scalar_select %p942, %s19, 0
        %s944 = smul.addr %s943, 8
        %s945 = scalar_lea.vmem %s4, %s944
        // Predicated region
        $region68: #{discriminator_forward.6} parent=54 // pred_check
          %p946 = pneg %p151
        $region69: #{discriminator_forward.6} parent=54 // pred_check_branch
          %948 = sbr.rel (%p946) target = $region71
        $region70: #{discriminator_forward.6} parent=54 // pred_region
          _
        $region71: #{discriminator_forward.6} parent=54 // pred_fallthru
          _
        // Predicated region
        $region72: #{discriminator_forward.6} parent=54 // pred_check
          %p949 = pneg %p151
        $region73: #{discriminator_forward.6} parent=54 // pred_check_branch
          %951 = sbr.rel (%p949) target = $region75
        $region74: #{discriminator_forward.6} parent=54 // pred_region
          %p952 = scmp.lt.s32.totalorder %s19, 0
          %s953 = scalar_select %p952, %s19, 0
          %s954 = smul.addr %s953, 8
          %s955 = scalar_lea.vmem %s4, %s954
        $region75: #{discriminator_forward.6} parent=54 // pred_fallthru
          _
      $region55: #{discriminator_forward.6} parent=5 // pred_fallthru
        _
      %p956 = scmp.le.s32.totalorder 2, %s10
      // Predicated region
      $region76: #{discriminator_forward.6} parent=5 // pred_check
        %p957 = pneg %p956
      $region77: #{discriminator_forward.6} parent=5 // pred_check_branch
        %959 = sbr.rel (%p957) target = $region79
      $region78: #{discriminator_forward.6} parent=5 // pred_region
        %s960 = ssub.s32 %s10, 2
      $region79: #{discriminator_forward.6} parent=5 // pred_fallthru
        _
    $region6: #{discriminator_forward.6} parent=1 // loop_footer
      %s14 = sadd.s32 1, %s10
    $region7: #{discriminator_forward.6} parent=1 // loop_footer_branch
      %9 = sbr.rel target = $region3
    $region8: #{discriminator_forward.6} parent=1 // loop_exit
      _

// kernel: discriminator_forward.7
$region0: #{discriminator_forward.7}
  #allocation0 [shape = 'u32[]', space=smem, size = 0x4, offset = 0x4, fixed_abs, tag = 'smem constant byte address 0x4 - core index']
  #allocation1 [shape = 'u32[144,128]{1,0:T(1,128)}', space=vmem, size = 0x12000, scoped, tag = 'internal scratch']
  #allocation2 [shape = 'f32[18,128]{1,0:T(8,128)}', space=vmem, size = 0x3000, scoped, tag = 'scratch operand']
  %s0 = inlined_call_operand.vmem [shape: bf16[18,2048], index: 0, kind: input, shape index: {}]
  %s1 = inlined_call_operand.vmem [shape: bf16[2048,256], index: 1, kind: input, shape index: {}]
  %s2 = inlined_call_operand.vmem [shape: f32[1,256], index: 2, kind: input, shape index: {}]
  %s3 = inlined_call_operand.vmem [shape: f32[1,256], index: 3, kind: input, shape index: {}]
  %s4 = inlined_call_operand.vmem [shape: f32[18,256], index: 4, kind: output, shape index: {}]
  %s5 = sld [smem:[#allocation0]]
  $region155: #{discriminator_forward.7} parent=0
    _
  %s7 = ssub.s32 1, %s5
  %s8 = scalar_select 0, %s7, %s5
  $region1: #{discriminator_forward.7} parent=0
    #allocation3 [shape = 'u8[49152]{0}', space=vmem, size = 0xc000, scoped, tag = 'input window, operand 0']
    #allocation4 [shape = 'u8[262144]{0}', space=vmem, size = 0x40000, scoped, tag = 'input window, operand 1']
    #allocation5 [shape = 'u8[24576]{0}', space=vmem, size = 0x6000, scoped, tag = 'output window, operand 0']
    loop: start=0, step=1, limit=10
    $region2: #{discriminator_forward.7} parent=1 // loop_pre_header
      _
    $region3: #{discriminator_forward.7} parent=1 // loop_header
      %s10 = sphi 0, %s14
      %p11 = scmp.ge.s32.totalorder %s10, 10
      %s17 = sphi 0, %s29
      %s18 = sphi 0, %s25
      %s19 = sphi 0, %s17
      %s20 = sphi 0, %s18
      %s21 = sphi 0, %s19
      %s22 = sphi 0, %s20
      %s32 = sphi 0, %s34
      %s35 = sphi 0, %s32
      %s36 = sphi 0, %s35
      %s52 = sphi 0, %s36
      %s60 = sphi 0, %s62
      %s63 = sphi 0, %s60
      %s64 = sphi 0, %s63
      %s80 = sphi 0, %s64
      %s86 = sphi 0, %s88
      %s89 = sphi 0, %s86
      %s90 = sphi 0, %s89
      %s106 = sphi 0, %s90
      %s112 = sphi 0, %s114
      %s115 = sphi 0, %s112
      %s116 = sphi 0, %s115
      %s132 = sphi 0, %s116
      %s138 = sphi 0, %s140
      %s141 = sphi 0, %s138
      %s142 = sphi 0, %s141
      %s158 = sphi 0, %s142
    $region4: #{discriminator_forward.7} parent=1 // loop_header_branch
      %13 = sbr.rel (%p11) target = $region8
    $region5: #{discriminator_forward.7} parent=1 // loop_body
      %s15 = ssub.s32 %s10, 1
      %s16 = ssub.s32 %s10, 2
      %s23 = sadd.s32 1, %s18
      %p24 = scmp.ge.s32.totalorder %s23, 4
      %s25 = scalar_select %p24, 0, %s23
      %s26 = sadd.s32 1, %s17
      %s27 = scalar_select %p24, %s26, %s17
      %p28 = scmp.ge.s32.totalorder %s27, 2
      %s29 = scalar_select %p28, 0, %s27
      %s30 = ssub.s32 %s18, %s25
      %p31 = scmp.eq.s32.totalorder %s30, 0
      %s33 = sadd.s32 %s32, 1
      %s34 = scalar_select %p31, %s32, %s33
      %p37 = pneg %p31
      %p38 = scmp.eq.s32.totalorder %s10, 7
      %p39 = por %p37, %p38
      %p40 = scmp.ne.s32.totalorder %s32, %s35
      %p41 = scmp.eq.s32.totalorder %s10, 0
      %p42 = por %p40, %p41
      %p43 = scmp.ne.s32.totalorder %s32, %s35
      %p44 = scmp.eq.s32.totalorder %s15, 7
      %p45 = por %p43, %p44
      %p46 = scmp.ne.s32.totalorder %s35, %s36
      %p47 = scmp.eq.s32.totalorder %s15, 0
      %p48 = por %p46, %p47
      %p49 = scmp.ne.s32.totalorder %s35, %s36
      %p50 = scmp.eq.s32.totalorder %s16, 7
      %p51 = por %p49, %p50
      %p53 = scmp.ne.s32.totalorder %s36, %s52
      %p54 = scmp.eq.s32.totalorder %s16, 0
      %p55 = por %p53, %p54
      %s56 = ssub.s32 %s18, %s25
      %s57 = ssub.s32 %s17, %s29
      %s58 = sor.u32 %s56, %s57
      %p59 = scmp.eq.s32.totalorder %s58, 0
      %s61 = sadd.s32 %s60, 1
      %s62 = scalar_select %p59, %s60, %s61
      %p65 = pneg %p59
      %p66 = scmp.eq.s32.totalorder %s10, 7
      %p67 = por %p65, %p66
      %p68 = scmp.ne.s32.totalorder %s60, %s63
      %p69 = scmp.eq.s32.totalorder %s10, 0
      %p70 = por %p68, %p69
      %p71 = scmp.ne.s32.totalorder %s60, %s63
      %p72 = scmp.eq.s32.totalorder %s15, 7
      %p73 = por %p71, %p72
      %p74 = scmp.ne.s32.totalorder %s63, %s64
      %p75 = scmp.eq.s32.totalorder %s15, 0
      %p76 = por %p74, %p75
      %p77 = scmp.ne.s32.totalorder %s63, %s64
      %p78 = scmp.eq.s32.totalorder %s16, 7
      %p79 = por %p77, %p78
      %p81 = scmp.ne.s32.totalorder %s64, %s80
      %p82 = scmp.eq.s32.totalorder %s16, 0
      %p83 = por %p81, %p82
      %s84 = ssub.s32 %s17, %s29
      %p85 = scmp.eq.s32.totalorder %s84, 0
      %s87 = sadd.s32 %s86, 1
      %s88 = scalar_select %p85, %s86, %s87
      %p91 = pneg %p85
      %p92 = scmp.eq.s32.totalorder %s10, 7
      %p93 = por %p91, %p92
      %p94 = scmp.ne.s32.totalorder %s86, %s89
      %p95 = scmp.eq.s32.totalorder %s10, 0
      %p96 = por %p94, %p95
      %p97 = scmp.ne.s32.totalorder %s86, %s89
      %p98 = scmp.eq.s32.totalorder %s15, 7
      %p99 = por %p97, %p98
      %p100 = scmp.ne.s32.totalorder %s89, %s90
      %p101 = scmp.eq.s32.totalorder %s15, 0
      %p102 = por %p100, %p101
      %p103 = scmp.ne.s32.totalorder %s89, %s90
      %p104 = scmp.eq.s32.totalorder %s16, 7
      %p105 = por %p103, %p104
      %p107 = scmp.ne.s32.totalorder %s90, %s106
      %p108 = scmp.eq.s32.totalorder %s16, 0
      %p109 = por %p107, %p108
      %s110 = ssub.s32 %s17, %s29
      %p111 = scmp.eq.s32.totalorder %s110, 0
      %s113 = sadd.s32 %s112, 1
      %s114 = scalar_select %p111, %s112, %s113
      %p117 = pneg %p111
      %p118 = scmp.eq.s32.totalorder %s10, 7
      %p119 = por %p117, %p118
      %p120 = scmp.ne.s32.totalorder %s112, %s115
      %p121 = scmp.eq.s32.totalorder %s10, 0
      %p122 = por %p120, %p121
      %p123 = scmp.ne.s32.totalorder %s112, %s115
      %p124 = scmp.eq.s32.totalorder %s15, 7
      %p125 = por %p123, %p124
      %p126 = scmp.ne.s32.totalorder %s115, %s116
      %p127 = scmp.eq.s32.totalorder %s15, 0
      %p128 = por %p126, %p127
      %p129 = scmp.ne.s32.totalorder %s115, %s116
      %p130 = scmp.eq.s32.totalorder %s16, 7
      %p131 = por %p129, %p130
      %p133 = scmp.ne.s32.totalorder %s116, %s132
      %p134 = scmp.eq.s32.totalorder %s16, 0
      %p135 = por %p133, %p134
      %s136 = ssub.s32 %s17, %s29
      %p137 = scmp.eq.s32.totalorder %s136, 0
      %s139 = sadd.s32 %s138, 1
      %s140 = scalar_select %p137, %s138, %s139
      %p143 = pneg %p137
      %p144 = scmp.eq.s32.totalorder %s10, 7
      %p145 = por %p143, %p144
      %p146 = scmp.ne.s32.totalorder %s138, %s141
      %p147 = scmp.eq.s32.totalorder %s10, 0
      %p148 = por %p146, %p147
      %p149 = scmp.ne.s32.totalorder %s138, %s141
      %p150 = scmp.eq.s32.totalorder %s15, 7
      %p151 = por %p149, %p150
      %p152 = scmp.ne.s32.totalorder %s141, %s142
      %p153 = scmp.eq.s32.totalorder %s15, 0
      %p154 = por %p152, %p153
      %p155 = scmp.ne.s32.totalorder %s141, %s142
      %p156 = scmp.eq.s32.totalorder %s16, 7
      %p157 = por %p155, %p156
      %p159 = scmp.ne.s32.totalorder %s142, %s158
      %p160 = scmp.eq.s32.totalorder %s16, 0
      %p161 = por %p159, %p160
      %p162 = scmp.le.s32.totalorder 1, %s10
      %p163 = scmp.lt.s32.totalorder %s10, 9
      %p164 = pnand %p162, %p163
      %p165 = pneg %p164
      // Predicated region
      $region9: #{discriminator_forward.7} parent=5 // pred_check
        _
      $region10: #{discriminator_forward.7} parent=5 // pred_check_branch
        %167 = sbr.rel (%p164) target = $region12
      $region11: #{discriminator_forward.7} parent=5 // pred_region
        %s168 = ssub.s32 %s10, 1
      $region12: #{discriminator_forward.7} parent=5 // pred_fallthru
        _
      %p169 = scmp.lt.s32.totalorder %s10, 8
      // Predicated region
      $region13: #{discriminator_forward.7} parent=5 // pred_check
        %p170 = pneg %p169
      $region14: #{discriminator_forward.7} parent=5 // pred_check_branch
        %172 = sbr.rel (%p170) target = $region16
      $region15: #{discriminator_forward.7} parent=5 // pred_region
        // Predicated region
        $region17: #{discriminator_forward.7} parent=15 // pred_check
          %p173 = pneg %p42
        $region18: #{discriminator_forward.7} parent=15 // pred_check_branch
          %175 = sbr.rel (%p173) target = $region20
        $region19: #{discriminator_forward.7} parent=15 // pred_region
          %s176 = sand.u32 %s32, 1
          %s177 = sand.u32 %s32, 1
          %s178 = smul.addr %s177, 48
          %s179 = scalar_lea.vmem [#allocation3], %s178
          %s180 = smul.u32 4, %s18
          %s181 = smul.addr %s180, 4
          %s182 = scalar_lea.vmem %s0, %s181
          // Predicated region
          $region21: #{discriminator_forward.7} parent=19 // pred_check
            _
          $region22: #{discriminator_forward.7} parent=19 // pred_check_branch
            %184 = sbr.rel (0) target = $region24
          $region23: #{discriminator_forward.7} parent=19 // pred_region
            // Predicated region
            $region25: #{discriminator_forward.7} parent=23 // pred_check
              _
            $region26: #{discriminator_forward.7} parent=23 // pred_check_branch
              %186 = sbr.rel (0) target = $region28
            $region27: #{discriminator_forward.7} parent=23 // pred_region
              loop: start=0, step=1, limit=1
              $region29: #{discriminator_forward.7} parent=27 // loop_pre_header
                _
              $region30: #{discriminator_forward.7} parent=27 // loop_header
                %s188 = sphi 0, %s192
                %p189 = scmp.ge.s32.totalorder %s188, 1
                %s193 = sphi %s182, %s182
                %s194 = sphi %s179, %s179
              $region31: #{discriminator_forward.7} parent=27 // loop_header_branch
                %191 = sbr.rel (%p189) target = $region35
              $region32: #{discriminator_forward.7} parent=27 // loop_body
                %v195 = vld [vmem:[%s193] sm:$0xff]
                %196 = vst [vmem:[%s194] sm:$0xff] %v195
                %v197 = vld [vmem:[%s193 + $0x8] sm:$0xff]
                %198 = vst [vmem:[%s194 + $0x8] sm:$0xff] %v197
                %v199 = vld [vmem:[%s193 + $0x40] sm:$0xff]
                %200 = vst [vmem:[%s194 + $0x10] sm:$0xff] %v199
                %v201 = vld [vmem:[%s193 + $0x48] sm:$0xff]
                %202 = vst [vmem:[%s194 + $0x18] sm:$0xff] %v201
                %v203 = vld [vmem:[%s193 + $0x80] sm:$0xff]
                %204 = vst [vmem:[%s194 + $0x20] sm:$0xff] %v203
                %v205 = vld [vmem:[%s193 + $0x88] sm:$0xff]
                %206 = vst [vmem:[%s194 + $0x28] sm:$0xff] %v205
              $region33: #{discriminator_forward.7} parent=27 // loop_footer
                %s192 = sadd.s32 1, %s188
              $region34: #{discriminator_forward.7} parent=27 // loop_footer_branch
                %187 = sbr.rel target = $region30
              $region35: #{discriminator_forward.7} parent=27 // loop_exit
                _
            $region28: #{discriminator_forward.7} parent=23 // pred_fallthru
              _
            // Predicated region
            $region36: #{discriminator_forward.7} parent=23 // pred_check
              _
            $region37: #{discriminator_forward.7} parent=23 // pred_check_branch
              %208 = sbr.rel target = $region39
            $region38: #{discriminator_forward.7} parent=23 // pred_region
              _
            $region39: #{discriminator_forward.7} parent=23 // pred_fallthru
              _
          $region24: #{discriminator_forward.7} parent=19 // pred_fallthru
            _
          %209 = vnop
        $region20: #{discriminator_forward.7} parent=15 // pred_fallthru
          _
        // Predicated region
        $region40: #{discriminator_forward.7} parent=15 // pred_check
          %p210 = pneg %p70
        $region41: #{discriminator_forward.7} parent=15 // pred_check_branch
          %212 = sbr.rel (%p210) target = $region43
        $region42: #{discriminator_forward.7} parent=15 // pred_region
          %s213 = sand.u32 %s60, 1
          %s214 = sand.u32 %s60, 1
          %s215 = smul.addr %s214, 256
          %s216 = scalar_lea.vmem [#allocation4], %s215
          %s217 = smul.u32 64, %s18
          %s218 = smul.addr %s217, 2
          %s219 = sadd.s32 %s17, %s218
          %s220 = smul.addr %s219, 4
          %s221 = scalar_lea.vmem %s1, %s220
          // Predicated region
          $region44: #{discriminator_forward.7} parent=42 // pred_check
            _
          $region45: #{discriminator_forward.7} parent=42 // pred_check_branch
            %223 = sbr.rel (0) target = $region47
          $region46: #{discriminator_forward.7} parent=42 // pred_region
            // Predicated region
            $region48: #{discriminator_forward.7} parent=46 // pred_check
              _
            $region49: #{discriminator_forward.7} parent=46 // pred_check_branch
              %225 = sbr.rel target = $region51
            $region50: #{discriminator_forward.7} parent=46 // pred_region
              // Predicated region
              $region63: #{discriminator_forward.7} parent=50 // pred_check
                _
              $region64: #{discriminator_forward.7} parent=50 // pred_check_branch
                %367 = sbr.rel (0) target = $region66
              $region65: #{discriminator_forward.7} parent=50 // pred_region
                loop: start=0, step=1, limit=1
                $region67: #{discriminator_forward.7} parent=65 // loop_pre_header
                  _
                $region68: #{discriminator_forward.7} parent=65 // loop_header
                  %s369 = sphi 0, %s373
                  %p370 = scmp.ge.s32.totalorder %s369, 1
                  %s374 = sphi %s221, %s221
                  %s375 = sphi %s216, %s216
                $region69: #{discriminator_forward.7} parent=65 // loop_header_branch
                  %372 = sbr.rel (%p370) target = $region73
                $region70: #{discriminator_forward.7} parent=65 // loop_body
                  _
                $region71: #{discriminator_forward.7} parent=65 // loop_footer
                  %s373 = sadd.s32 1, %s369
                $region72: #{discriminator_forward.7} parent=65 // loop_footer_branch
                  %368 = sbr.rel target = $region68
                $region73: #{discriminator_forward.7} parent=65 // loop_exit
                  _
                %s377 = ssub.s32 16, 1
                loop: start=0, step=1, limit=1
                $region74: #{discriminator_forward.7} parent=65 // loop_pre_header
                  _
                $region75: #{discriminator_forward.7} parent=65 // loop_header
                  %s379 = sphi 0, %s383
                  %p380 = scmp.ge.s32.totalorder %s379, 1
                  %s384 = sphi %s221, %s221
                  %s385 = sphi %s216, %s216
                $region76: #{discriminator_forward.7} parent=65 // loop_header_branch
                  %382 = sbr.rel (%p380) target = $region80
                $region77: #{discriminator_forward.7} parent=65 // loop_body
                  %v386 = vld [vmem:[%s384] sm:%s377]
                  %387 = vst [vmem:[%s385] sm:%s377] %v386
                  %v388 = vld [vmem:[%s384 + $0x8] sm:%s377]
                  %389 = vst [vmem:[%s385 + $0x4] sm:%s377] %v388
                  %v390 = vld [vmem:[%s384 + $0x10] sm:%s377]
                  %391 = vst [vmem:[%s385 + $0x8] sm:%s377] %v390
                  %v392 = vld [vmem:[%s384 + $0x18] sm:%s377]
                  %393 = vst [vmem:[%s385 + $0xc] sm:%s377] %v392
                  %v394 = vld [vmem:[%s384 + $0x20] sm:%s377]
                  %395 = vst [vmem:[%s385 + $0x10] sm:%s377] %v394
                  %v396 = vld [vmem:[%s384 + $0x28] sm:%s377]
                  %397 = vst [vmem:[%s385 + $0x14] sm:%s377] %v396
                  %v398 = vld [vmem:[%s384 + $0x30] sm:%s377]
                  %399 = vst [vmem:[%s385 + $0x18] sm:%s377] %v398
                  %v400 = vld [vmem:[%s384 + $0x38] sm:%s377]
                  %401 = vst [vmem:[%s385 + $0x1c] sm:%s377] %v400
                  %v402 = vld [vmem:[%s384 + $0x40] sm:%s377]
                  %403 = vst [vmem:[%s385 + $0x20] sm:%s377] %v402
                  %v404 = vld [vmem:[%s384 + $0x48] sm:%s377]
                  %405 = vst [vmem:[%s385 + $0x24] sm:%s377] %v404
                  %v406 = vld [vmem:[%s384 + $0x50] sm:%s377]
                  %407 = vst [vmem:[%s385 + $0x28] sm:%s377] %v406
                  %v408 = vld [vmem:[%s384 + $0x58] sm:%s377]
                  %409 = vst [vmem:[%s385 + $0x2c] sm:%s377] %v408
                  %v410 = vld [vmem:[%s384 + $0x60] sm:%s377]
                  %411 = vst [vmem:[%s385 + $0x30] sm:%s377] %v410
                  %v412 = vld [vmem:[%s384 + $0x68] sm:%s377]
                  %413 = vst [vmem:[%s385 + $0x34] sm:%s377] %v412
                  %v414 = vld [vmem:[%s384 + $0x70] sm:%s377]
                  %415 = vst [vmem:[%s385 + $0x38] sm:%s377] %v414
                  %v416 = vld [vmem:[%s384 + $0x78] sm:%s377]
                  %417 = vst [vmem:[%s385 + $0x3c] sm:%s377] %v416
                  %v418 = vld [vmem:[%s384 + $0x80] sm:%s377]
                  %419 = vst [vmem:[%s385 + $0x40] sm:%s377] %v418
                  %v420 = vld [vmem:[%s384 + $0x88] sm:%s377]
                  %421 = vst [vmem:[%s385 + $0x44] sm:%s377] %v420
                  %v422 = vld [vmem:[%s384 + $0x90] sm:%s377]
                  %423 = vst [vmem:[%s385 + $0x48] sm:%s377] %v422
                  %v424 = vld [vmem:[%s384 + $0x98] sm:%s377]
                  %425 = vst [vmem:[%s385 + $0x4c] sm:%s377] %v424
                  %v426 = vld [vmem:[%s384 + $0xa0] sm:%s377]
                  %427 = vst [vmem:[%s385 + $0x50] sm:%s377] %v426
                  %v428 = vld [vmem:[%s384 + $0xa8] sm:%s377]
                  %429 = vst [vmem:[%s385 + $0x54] sm:%s377] %v428
                  %v430 = vld [vmem:[%s384 + $0xb0] sm:%s377]
                  %431 = vst [vmem:[%s385 + $0x58] sm:%s377] %v430
                  %v432 = vld [vmem:[%s384 + $0xb8] sm:%s377]
                  %433 = vst [vmem:[%s385 + $0x5c] sm:%s377] %v432
                  %v434 = vld [vmem:[%s384 + $0xc0] sm:%s377]
                  %435 = vst [vmem:[%s385 + $0x60] sm:%s377] %v434
                  %v436 = vld [vmem:[%s384 + $0xc8] sm:%s377]
                  %437 = vst [vmem:[%s385 + $0x64] sm:%s377] %v436
                  %v438 = vld [vmem:[%s384 + $0xd0] sm:%s377]
                  %439 = vst [vmem:[%s385 + $0x68] sm:%s377] %v438
                  %v440 = vld [vmem:[%s384 + $0xd8] sm:%s377]
                  %441 = vst [vmem:[%s385 + $0x6c] sm:%s377] %v440
                  %v442 = vld [vmem:[%s384 + $0xe0] sm:%s377]
                  %443 = vst [vmem:[%s385 + $0x70] sm:%s377] %v442
                  %v444 = vld [vmem:[%s384 + $0xe8] sm:%s377]
                  %445 = vst [vmem:[%s385 + $0x74] sm:%s377] %v444
                  %v446 = vld [vmem:[%s384 + $0xf0] sm:%s377]
                  %447 = vst [vmem:[%s385 + $0x78] sm:%s377] %v446
                  %v448 = vld [vmem:[%s384 + $0xf8] sm:%s377]
                  %449 = vst [vmem:[%s385 + $0x7c] sm:%s377] %v448
                  %v450 = vld [vmem:[%s384 + $0x100] sm:%s377]
                  %451 = vst [vmem:[%s385 + $0x80] sm:%s377] %v450
                  %v452 = vld [vmem:[%s384 + $0x108] sm:%s377]
                  %453 = vst [vmem:[%s385 + $0x84] sm:%s377] %v452
                  %v454 = vld [vmem:[%s384 + $0x110] sm:%s377]
                  %455 = vst [vmem:[%s385 + $0x88] sm:%s377] %v454
                  %v456 = vld [vmem:[%s384 + $0x118] sm:%s377]
                  %457 = vst [vmem:[%s385 + $0x8c] sm:%s377] %v456
                  %v458 = vld [vmem:[%s384 + $0x120] sm:%s377]
                  %459 = vst [vmem:[%s385 + $0x90] sm:%s377] %v458
                  %v460 = vld [vmem:[%s384 + $0x128] sm:%s377]
                  %461 = vst [vmem:[%s385 + $0x94] sm:%s377] %v460
                  %v462 = vld [vmem:[%s384 + $0x130] sm:%s377]
                  %463 = vst [vmem:[%s385 + $0x98] sm:%s377] %v462
                  %v464 = vld [vmem:[%s384 + $0x138] sm:%s377]
                  %465 = vst [vmem:[%s385 + $0x9c] sm:%s377] %v464
                  %v466 = vld [vmem:[%s384 + $0x140] sm:%s377]
                  %467 = vst [vmem:[%s385 + $0xa0] sm:%s377] %v466
                  %v468 = vld [vmem:[%s384 + $0x148] sm:%s377]
                  %469 = vst [vmem:[%s385 + $0xa4] sm:%s377] %v468
                  %v470 = vld [vmem:[%s384 + $0x150] sm:%s377]
                  %471 = vst [vmem:[%s385 + $0xa8] sm:%s377] %v470
                  %v472 = vld [vmem:[%s384 + $0x158] sm:%s377]
                  %473 = vst [vmem:[%s385 + $0xac] sm:%s377] %v472
                  %v474 = vld [vmem:[%s384 + $0x160] sm:%s377]
                  %475 = vst [vmem:[%s385 + $0xb0] sm:%s377] %v474
                  %v476 = vld [vmem:[%s384 + $0x168] sm:%s377]
                  %477 = vst [vmem:[%s385 + $0xb4] sm:%s377] %v476
                  %v478 = vld [vmem:[%s384 + $0x170] sm:%s377]
                  %479 = vst [vmem:[%s385 + $0xb8] sm:%s377] %v478
                  %v480 = vld [vmem:[%s384 + $0x178] sm:%s377]
                  %481 = vst [vmem:[%s385 + $0xbc] sm:%s377] %v480
                  %v482 = vld [vmem:[%s384 + $0x180] sm:%s377]
                  %483 = vst [vmem:[%s385 + $0xc0] sm:%s377] %v482
                  %v484 = vld [vmem:[%s384 + $0x188] sm:%s377]
                  %485 = vst [vmem:[%s385 + $0xc4] sm:%s377] %v484
                  %v486 = vld [vmem:[%s384 + $0x190] sm:%s377]
                  %487 = vst [vmem:[%s385 + $0xc8] sm:%s377] %v486
                  %v488 = vld [vmem:[%s384 + $0x198] sm:%s377]
                  %489 = vst [vmem:[%s385 + $0xcc] sm:%s377] %v488
                  %v490 = vld [vmem:[%s384 + $0x1a0] sm:%s377]
                  %491 = vst [vmem:[%s385 + $0xd0] sm:%s377] %v490
                  %v492 = vld [vmem:[%s384 + $0x1a8] sm:%s377]
                  %493 = vst [vmem:[%s385 + $0xd4] sm:%s377] %v492
                  %v494 = vld [vmem:[%s384 + $0x1b0] sm:%s377]
                  %495 = vst [vmem:[%s385 + $0xd8] sm:%s377] %v494
                  %v496 = vld [vmem:[%s384 + $0x1b8] sm:%s377]
                  %497 = vst [vmem:[%s385 + $0xdc] sm:%s377] %v496
                  %v498 = vld [vmem:[%s384 + $0x1c0] sm:%s377]
                  %499 = vst [vmem:[%s385 + $0xe0] sm:%s377] %v498
                  %v500 = vld [vmem:[%s384 + $0x1c8] sm:%s377]
                  %501 = vst [vmem:[%s385 + $0xe4] sm:%s377] %v500
                  %v502 = vld [vmem:[%s384 + $0x1d0] sm:%s377]
                  %503 = vst [vmem:[%s385 + $0xe8] sm:%s377] %v502
                  %v504 = vld [vmem:[%s384 + $0x1d8] sm:%s377]
                  %505 = vst [vmem:[%s385 + $0xec] sm:%s377] %v504
                  %v506 = vld [vmem:[%s384 + $0x1e0] sm:%s377]
                  %507 = vst [vmem:[%s385 + $0xf0] sm:%s377] %v506
                  %v508 = vld [vmem:[%s384 + $0x1e8] sm:%s377]
                  %509 = vst [vmem:[%s385 + $0xf4] sm:%s377] %v508
                  %v510 = vld [vmem:[%s384 + $0x1f0] sm:%s377]
                  %511 = vst [vmem:[%s385 + $0xf8] sm:%s377] %v510
                  %v512 = vld [vmem:[%s384 + $0x1f8] sm:%s377]
                  %513 = vst [vmem:[%s385 + $0xfc] sm:%s377] %v512
                $region78: #{discriminator_forward.7} parent=65 // loop_footer
                  %s383 = sadd.s32 1, %s379
                $region79: #{discriminator_forward.7} parent=65 // loop_footer_branch
                  %378 = sbr.rel target = $region75
                $region80: #{discriminator_forward.7} parent=65 // loop_exit
                  _
              $region66: #{discriminator_forward.7} parent=50 // pred_fallthru
                _
            $region51: #{discriminator_forward.7} parent=46 // pred_fallthru
              _
            // Predicated region
            $region52: #{discriminator_forward.7} parent=46 // pred_check
              _
            $region53: #{discriminator_forward.7} parent=46 // pred_check_branch
              %227 = sbr.rel (0) target = $region55
            $region54: #{discriminator_forward.7} parent=46 // pred_region
              %s229 = ssub.s32 16, 1
              loop: start=0, step=1, limit=1
              $region56: #{discriminator_forward.7} parent=54 // loop_pre_header
                _
              $region57: #{discriminator_forward.7} parent=54 // loop_header
                %s231 = sphi 0, %s235
                %p232 = scmp.ge.s32.totalorder %s231, 1
                %s236 = sphi %s221, %s221
                %s237 = sphi %s216, %s216
              $region58: #{discriminator_forward.7} parent=54 // loop_header_branch
                %234 = sbr.rel (%p232) target = $region62
              $region59: #{discriminator_forward.7} parent=54 // loop_body
                %v238 = vld [vmem:[%s236] sm:%s229]
                %239 = vst [vmem:[%s237] sm:%s229] %v238
                %v240 = vld [vmem:[%s236 + $0x8] sm:%s229]
                %241 = vst [vmem:[%s237 + $0x4] sm:%s229] %v240
                %v242 = vld [vmem:[%s236 + $0x10] sm:%s229]
                %243 = vst [vmem:[%s237 + $0x8] sm:%s229] %v242
                %v244 = vld [vmem:[%s236 + $0x18] sm:%s229]
                %245 = vst [vmem:[%s237 + $0xc] sm:%s229] %v244
                %v246 = vld [vmem:[%s236 + $0x20] sm:%s229]
                %247 = vst [vmem:[%s237 + $0x10] sm:%s229] %v246
                %v248 = vld [vmem:[%s236 + $0x28] sm:%s229]
                %249 = vst [vmem:[%s237 + $0x14] sm:%s229] %v248
                %v250 = vld [vmem:[%s236 + $0x30] sm:%s229]
                %251 = vst [vmem:[%s237 + $0x18] sm:%s229] %v250
                %v252 = vld [vmem:[%s236 + $0x38] sm:%s229]
                %253 = vst [vmem:[%s237 + $0x1c] sm:%s229] %v252
                %v254 = vld [vmem:[%s236 + $0x40] sm:%s229]
                %255 = vst [vmem:[%s237 + $0x20] sm:%s229] %v254
                %v256 = vld [vmem:[%s236 + $0x48] sm:%s229]
                %257 = vst [vmem:[%s237 + $0x24] sm:%s229] %v256
                %v258 = vld [vmem:[%s236 + $0x50] sm:%s229]
                %259 = vst [vmem:[%s237 + $0x28] sm:%s229] %v258
                %v260 = vld [vmem:[%s236 + $0x58] sm:%s229]
                %261 = vst [vmem:[%s237 + $0x2c] sm:%s229] %v260
                %v262 = vld [vmem:[%s236 + $0x60] sm:%s229]
                %263 = vst [vmem:[%s237 + $0x30] sm:%s229] %v262
                %v264 = vld [vmem:[%s236 + $0x68] sm:%s229]
                %265 = vst [vmem:[%s237 + $0x34] sm:%s229] %v264
                %v266 = vld [vmem:[%s236 + $0x70] sm:%s229]
                %267 = vst [vmem:[%s237 + $0x38] sm:%s229] %v266
                %v268 = vld [vmem:[%s236 + $0x78] sm:%s229]
                %269 = vst [vmem:[%s237 + $0x3c] sm:%s229] %v268
                %v270 = vld [vmem:[%s236 + $0x80] sm:%s229]
                %271 = vst [vmem:[%s237 + $0x40] sm:%s229] %v270
                %v272 = vld [vmem:[%s236 + $0x88] sm:%s229]
                %273 = vst [vmem:[%s237 + $0x44] sm:%s229] %v272
                %v274 = vld [vmem:[%s236 + $0x90] sm:%s229]
                %275 = vst [vmem:[%s237 + $0x48] sm:%s229] %v274
                %v276 = vld [vmem:[%s236 + $0x98] sm:%s229]
                %277 = vst [vmem:[%s237 + $0x4c] sm:%s229] %v276
                %v278 = vld [vmem:[%s236 + $0xa0] sm:%s229]
                %279 = vst [vmem:[%s237 + $0x50] sm:%s229] %v278
                %v280 = vld [vmem:[%s236 + $0xa8] sm:%s229]
                %281 = vst [vmem:[%s237 + $0x54] sm:%s229] %v280
                %v282 = vld [vmem:[%s236 + $0xb0] sm:%s229]
                %283 = vst [vmem:[%s237 + $0x58] sm:%s229] %v282
                %v284 = vld [vmem:[%s236 + $0xb8] sm:%s229]
                %285 = vst [vmem:[%s237 + $0x5c] sm:%s229] %v284
                %v286 = vld [vmem:[%s236 + $0xc0] sm:%s229]
                %287 = vst [vmem:[%s237 + $0x60] sm:%s229] %v286
                %v288 = vld [vmem:[%s236 + $0xc8] sm:%s229]
                %289 = vst [vmem:[%s237 + $0x64] sm:%s229] %v288
                %v290 = vld [vmem:[%s236 + $0xd0] sm:%s229]
                %291 = vst [vmem:[%s237 + $0x68] sm:%s229] %v290
                %v292 = vld [vmem:[%s236 + $0xd8] sm:%s229]
                %293 = vst [vmem:[%s237 + $0x6c] sm:%s229] %v292
                %v294 = vld [vmem:[%s236 + $0xe0] sm:%s229]
                %295 = vst [vmem:[%s237 + $0x70] sm:%s229] %v294
                %v296 = vld [vmem:[%s236 + $0xe8] sm:%s229]
                %297 = vst [vmem:[%s237 + $0x74] sm:%s229] %v296
                %v298 = vld [vmem:[%s236 + $0xf0] sm:%s229]
                %299 = vst [vmem:[%s237 + $0x78] sm:%s229] %v298
                %v300 = vld [vmem:[%s236 + $0xf8] sm:%s229]
                %301 = vst [vmem:[%s237 + $0x7c] sm:%s229] %v300
                %v302 = vld [vmem:[%s236 + $0x100] sm:%s229]
                %303 = vst [vmem:[%s237 + $0x80] sm:%s229] %v302
                %v304 = vld [vmem:[%s236 + $0x108] sm:%s229]
                %305 = vst [vmem:[%s237 + $0x84] sm:%s229] %v304
                %v306 = vld [vmem:[%s236 + $0x110] sm:%s229]
                %307 = vst [vmem:[%s237 + $0x88] sm:%s229] %v306
                %v308 = vld [vmem:[%s236 + $0x118] sm:%s229]
                %309 = vst [vmem:[%s237 + $0x8c] sm:%s229] %v308
                %v310 = vld [vmem:[%s236 + $0x120] sm:%s229]
                %311 = vst [vmem:[%s237 + $0x90] sm:%s229] %v310
                %v312 = vld [vmem:[%s236 + $0x128] sm:%s229]
                %313 = vst [vmem:[%s237 + $0x94] sm:%s229] %v312
                %v314 = vld [vmem:[%s236 + $0x130] sm:%s229]
                %315 = vst [vmem:[%s237 + $0x98] sm:%s229] %v314
                %v316 = vld [vmem:[%s236 + $0x138] sm:%s229]
                %317 = vst [vmem:[%s237 + $0x9c] sm:%s229] %v316
                %v318 = vld [vmem:[%s236 + $0x140] sm:%s229]
                %319 = vst [vmem:[%s237 + $0xa0] sm:%s229] %v318
                %v320 = vld [vmem:[%s236 + $0x148] sm:%s229]
                %321 = vst [vmem:[%s237 + $0xa4] sm:%s229] %v320
                %v322 = vld [vmem:[%s236 + $0x150] sm:%s229]
                %323 = vst [vmem:[%s237 + $0xa8] sm:%s229] %v322
                %v324 = vld [vmem:[%s236 + $0x158] sm:%s229]
                %325 = vst [vmem:[%s237 + $0xac] sm:%s229] %v324
                %v326 = vld [vmem:[%s236 + $0x160] sm:%s229]
                %327 = vst [vmem:[%s237 + $0xb0] sm:%s229] %v326
                %v328 = vld [vmem:[%s236 + $0x168] sm:%s229]
                %329 = vst [vmem:[%s237 + $0xb4] sm:%s229] %v328
                %v330 = vld [vmem:[%s236 + $0x170] sm:%s229]
                %331 = vst [vmem:[%s237 + $0xb8] sm:%s229] %v330
                %v332 = vld [vmem:[%s236 + $0x178] sm:%s229]
                %333 = vst [vmem:[%s237 + $0xbc] sm:%s229] %v332
                %v334 = vld [vmem:[%s236 + $0x180] sm:%s229]
                %335 = vst [vmem:[%s237 + $0xc0] sm:%s229] %v334
                %v336 = vld [vmem:[%s236 + $0x188] sm:%s229]
                %337 = vst [vmem:[%s237 + $0xc4] sm:%s229] %v336
                %v338 = vld [vmem:[%s236 + $0x190] sm:%s229]
                %339 = vst [vmem:[%s237 + $0xc8] sm:%s229] %v338
                %v340 = vld [vmem:[%s236 + $0x198] sm:%s229]
                %341 = vst [vmem:[%s237 + $0xcc] sm:%s229] %v340
                %v342 = vld [vmem:[%s236 + $0x1a0] sm:%s229]
                %343 = vst [vmem:[%s237 + $0xd0] sm:%s229] %v342
                %v344 = vld [vmem:[%s236 + $0x1a8] sm:%s229]
                %345 = vst [vmem:[%s237 + $0xd4] sm:%s229] %v344
                %v346 = vld [vmem:[%s236 + $0x1b0] sm:%s229]
                %347 = vst [vmem:[%s237 + $0xd8] sm:%s229] %v346
                %v348 = vld [vmem:[%s236 + $0x1b8] sm:%s229]
                %349 = vst [vmem:[%s237 + $0xdc] sm:%s229] %v348
                %v350 = vld [vmem:[%s236 + $0x1c0] sm:%s229]
                %351 = vst [vmem:[%s237 + $0xe0] sm:%s229] %v350
                %v352 = vld [vmem:[%s236 + $0x1c8] sm:%s229]
                %353 = vst [vmem:[%s237 + $0xe4] sm:%s229] %v352
                %v354 = vld [vmem:[%s236 + $0x1d0] sm:%s229]
                %355 = vst [vmem:[%s237 + $0xe8] sm:%s229] %v354
                %v356 = vld [vmem:[%s236 + $0x1d8] sm:%s229]
                %357 = vst [vmem:[%s237 + $0xec] sm:%s229] %v356
                %v358 = vld [vmem:[%s236 + $0x1e0] sm:%s229]
                %359 = vst [vmem:[%s237 + $0xf0] sm:%s229] %v358
                %v360 = vld [vmem:[%s236 + $0x1e8] sm:%s229]
                %361 = vst [vmem:[%s237 + $0xf4] sm:%s229] %v360
                %v362 = vld [vmem:[%s236 + $0x1f0] sm:%s229]
                %363 = vst [vmem:[%s237 + $0xf8] sm:%s229] %v362
                %v364 = vld [vmem:[%s236 + $0x1f8] sm:%s229]
                %365 = vst [vmem:[%s237 + $0xfc] sm:%s229] %v364
              $region60: #{discriminator_forward.7} parent=54 // loop_footer
                %s235 = sadd.s32 1, %s231
              $region61: #{discriminator_forward.7} parent=54 // loop_footer_branch
                %230 = sbr.rel target = $region57
              $region62: #{discriminator_forward.7} parent=54 // loop_exit
                _
            $region55: #{discriminator_forward.7} parent=46 // pred_fallthru
              _
          $region47: #{discriminator_forward.7} parent=42 // pred_fallthru
            _
          %514 = vnop
        $region43: #{discriminator_forward.7} parent=15 // pred_fallthru
          _
        // Predicated region
        $region81: #{discriminator_forward.7} parent=15 // pred_check
          %p515 = pneg %p96
        $region82: #{discriminator_forward.7} parent=15 // pred_check_branch
          %517 = sbr.rel (%p515) target = $region84
        $region83: #{discriminator_forward.7} parent=15 // pred_region
          %p518 = scmp.lt.s32.totalorder %s17, 1
          %s519 = scalar_select %p518, %s17, 1
          %s520 = scalar_lea.vmem %s2, %s519
        $region84: #{discriminator_forward.7} parent=15 // pred_fallthru
          _
        // Predicated region
        $region85: #{discriminator_forward.7} parent=15 // pred_check
          %p521 = pneg %p122
        $region86: #{discriminator_forward.7} parent=15 // pred_check_branch
          %523 = sbr.rel (%p521) target = $region88
        $region87: #{discriminator_forward.7} parent=15 // pred_region
          %p524 = scmp.lt.s32.totalorder %s17, 1
          %s525 = scalar_select %p524, %s17, 1
          %s526 = scalar_lea.vmem %s3, %s525
        $region88: #{discriminator_forward.7} parent=15 // pred_fallthru
          _
      $region16: #{discriminator_forward.7} parent=5 // pred_fallthru
        _
      %p527 = scmp.le.s32.totalorder 1, %s10
      %p528 = scmp.lt.s32.totalorder %s10, 9
      %p529 = pnand %p527, %p528
      %p530 = pneg %p529
      // Predicated region
      $region89: #{discriminator_forward.7} parent=5 // pred_check
        _
      $region90: #{discriminator_forward.7} parent=5 // pred_check_branch
        %532 = sbr.rel (%p529) target = $region92
      $region91: #{discriminator_forward.7} parent=5 // pred_region
        %s533 = ssub.s32 %s10, 1
        %s534 = sand.u32 %s35, 1
        %s535 = sand.u32 %s35, 1
        %s536 = smul.addr %s535, 48
        %s537 = scalar_lea.vmem [#allocation3], %s536
        // Predicated region
        $region93: #{discriminator_forward.7} parent=91 // pred_check
          %p538 = pneg %p48
        $region94: #{discriminator_forward.7} parent=91 // pred_check_branch
          %540 = sbr.rel (%p538) target = $region96
        $region95: #{discriminator_forward.7} parent=91 // pred_region
          _
        $region96: #{discriminator_forward.7} parent=91 // pred_fallthru
          _
        %s541 = sand.u32 %s63, 1
        %s542 = sand.u32 %s63, 1
        %s543 = smul.addr %s542, 256
        %s544 = scalar_lea.vmem [#allocation4], %s543
        // Predicated region
        $region97: #{discriminator_forward.7} parent=91 // pred_check
          %p545 = pneg %p76
        $region98: #{discriminator_forward.7} parent=91 // pred_check_branch
          %547 = sbr.rel (%p545) target = $region100
        $region99: #{discriminator_forward.7} parent=91 // pred_region
          _
        $region100: #{discriminator_forward.7} parent=91 // pred_fallthru
          _
        %s548 = sand.u32 %s35, 1
        %s549 = sand.u32 %s35, 1
        %s550 = smul.addr %s549, 48
        %s551 = scalar_lea.vmem [#allocation3], %s550
        %p552 = pneg %p48
        %p553 = pneg %p45
        %s554 = sand.u32 %s63, 1
        %s555 = sand.u32 %s63, 1
        %s556 = smul.addr %s555, 256
        %s557 = scalar_lea.vmem [#allocation4], %s556
        %p558 = pneg %p76
        %p559 = pneg %p73
        %p560 = scmp.lt.s32.totalorder %s19, 1
        %s561 = scalar_select %p560, %s19, 1
        %s562 = scalar_lea.vmem %s2, %s561
        %p563 = pneg %p102
        %p564 = pneg %p99
        %p565 = scmp.lt.s32.totalorder %s19, 1
        %s566 = scalar_select %p565, %s19, 1
        %s567 = scalar_lea.vmem %s3, %s566
        %p568 = pneg %p128
        %p569 = pneg %p125
        %p570 = pneg %p154
        %p571 = pneg %p151
        %s572 = sand.u32 %s141, 1
        %s573 = sand.u32 %s141, 1
        %s574 = smul.addr %s573, 24
        %s575 = scalar_lea.vmem [#allocation5], %s574
        %s576 = smul.u32 4, %s20
        %s577 = smul.u32 64, %s20
        %p578 = scmp.lt.s32.totalorder %s19, 1
        %s579 = scalar_select %p578, %s19, 1
        %s580 = scalar_lea.vmem %s2, %s579
        %p581 = scmp.lt.s32.totalorder %s19, 1
        %s582 = scalar_select %p581, %s19, 1
        %s583 = scalar_lea.vmem %s3, %s582
        %p585 = scmp.eq.s32.totalorder %s20, 0
        // Predicated region
        $region101: #{discriminator_forward.7} parent=91 // pred_check
          %p586 = pneg %p585
        $region102: #{discriminator_forward.7} parent=91 // pred_check_branch
          %588 = sbr.rel (%p586) target = $region104
        $region103: #{discriminator_forward.7} parent=91 // pred_region
          %589 = vst [vmem:[#allocation2] sm:$0xff] 0.0
          %590 = vst [vmem:[#allocation2 + $0x8] sm:$0xff] 0.0
          %591 = vst [vmem:[#allocation2 + $0x10] sm:$0x3] 0.0
        $region104: #{discriminator_forward.7} parent=91 // pred_fallthru
          _
        %v592 = vld [vmem:[#allocation2] sm:$0xff]
        %v593 = vld [vmem:[#allocation2 + $0x8] sm:$0xff]
        %v594 = vld [vmem:[#allocation2 + $0x10] sm:$0x3]
        %v595 = vld [vmem:[%s537] sm:$0xff]
        %v596 = vld [vmem:[%s537 + $0x8] sm:$0xff]
        %v597 = vld [vmem:[%s537 + $0x10] sm:$0xff]
        %v598 = vld [vmem:[%s537 + $0x18] sm:$0xff]
        %v599 = vld [vmem:[%s537 + $0x20] sm:$0x11]
        %v600 = vld [vmem:[%s537 + $0x28] sm:$0x11]
        %v601 = vld [vmem:[%s544] sm:$0xf]
        %v602 = vld [vmem:[%s544 + $0x4] sm:$0xf]
        %v603 = vld [vmem:[%s544 + $0x8] sm:$0xf]
        %v604 = vld [vmem:[%s544 + $0xc] sm:$0xf]
        %v605 = vld [vmem:[%s544 + $0x10] sm:$0xf]
        %v606 = vld [vmem:[%s544 + $0x14] sm:$0xf]
        %v607 = vld [vmem:[%s544 + $0x18] sm:$0xf]
        %v608 = vld [vmem:[%s544 + $0x1c] sm:$0xf]
        %v609 = vld [vmem:[%s544 + $0x20] sm:$0xf]
        %v610 = vld [vmem:[%s544 + $0x24] sm:$0xf]
        %v611 = vld [vmem:[%s544 + $0x28] sm:$0xf]
        %v612 = vld [vmem:[%s544 + $0x2c] sm:$0xf]
        %v613 = vld [vmem:[%s544 + $0x30] sm:$0xf]
        %v614 = vld [vmem:[%s544 + $0x34] sm:$0xf]
        %v615 = vld [vmem:[%s544 + $0x38] sm:$0xf]
        %v616 = vld [vmem:[%s544 + $0x3c] sm:$0xf]
        %v617 = vld [vmem:[%s544 + $0x40] sm:$0xf]
        %v618 = vld [vmem:[%s544 + $0x44] sm:$0xf]
        %v619 = vld [vmem:[%s544 + $0x48] sm:$0xf]
        %v620 = vld [vmem:[%s544 + $0x4c] sm:$0xf]
        %v621 = vld [vmem:[%s544 + $0x50] sm:$0xf]
        %v622 = vld [vmem:[%s544 + $0x54] sm:$0xf]
        %v623 = vld [vmem:[%s544 + $0x58] sm:$0xf]
        %v624 = vld [vmem:[%s544 + $0x5c] sm:$0xf]
        %v625 = vld [vmem:[%s544 + $0x60] sm:$0xf]
        %v626 = vld [vmem:[%s544 + $0x64] sm:$0xf]
        %v627 = vld [vmem:[%s544 + $0x68] sm:$0xf]
        %v628 = vld [vmem:[%s544 + $0x6c] sm:$0xf]
        %v629 = vld [vmem:[%s544 + $0x70] sm:$0xf]
        %v630 = vld [vmem:[%s544 + $0x74] sm:$0xf]
        %v631 = vld [vmem:[%s544 + $0x78] sm:$0xf]
        %v632 = vld [vmem:[%s544 + $0x7c] sm:$0xf]
        %v633 = vld [vmem:[%s544 + $0x80] sm:$0xf]
        %v634 = vld [vmem:[%s544 + $0x84] sm:$0xf]
        %v635 = vld [vmem:[%s544 + $0x88] sm:$0xf]
        %v636 = vld [vmem:[%s544 + $0x8c] sm:$0xf]
        %v637 = vld [vmem:[%s544 + $0x90] sm:$0xf]
        %v638 = vld [vmem:[%s544 + $0x94] sm:$0xf]
        %v639 = vld [vmem:[%s544 + $0x98] sm:$0xf]
        %v640 = vld [vmem:[%s544 + $0x9c] sm:$0xf]
        %v641 = vld [vmem:[%s544 + $0xa0] sm:$0xf]
        %v642 = vld [vmem:[%s544 + $0xa4] sm:$0xf]
        %v643 = vld [vmem:[%s544 + $0xa8] sm:$0xf]
        %v644 = vld [vmem:[%s544 + $0xac] sm:$0xf]
        %v645 = vld [vmem:[%s544 + $0xb0] sm:$0xf]
        %v646 = vld [vmem:[%s544 + $0xb4] sm:$0xf]
        %v647 = vld [vmem:[%s544 + $0xb8] sm:$0xf]
        %v648 = vld [vmem:[%s544 + $0xbc] sm:$0xf]
        %v649 = vld [vmem:[%s544 + $0xc0] sm:$0xf]
        %v650 = vld [vmem:[%s544 + $0xc4] sm:$0xf]
        %v651 = vld [vmem:[%s544 + $0xc8] sm:$0xf]
        %v652 = vld [vmem:[%s544 + $0xcc] sm:$0xf]
        %v653 = vld [vmem:[%s544 + $0xd0] sm:$0xf]
        %v654 = vld [vmem:[%s544 + $0xd4] sm:$0xf]
        %v655 = vld [vmem:[%s544 + $0xd8] sm:$0xf]
        %v656 = vld [vmem:[%s544 + $0xdc] sm:$0xf]
        %v657 = vld [vmem:[%s544 + $0xe0] sm:$0xf]
        %v658 = vld [vmem:[%s544 + $0xe4] sm:$0xf]
        %v659 = vld [vmem:[%s544 + $0xe8] sm:$0xf]
        %v660 = vld [vmem:[%s544 + $0xec] sm:$0xf]
        %v661 = vld [vmem:[%s544 + $0xf0] sm:$0xf]
        %v662 = vld [vmem:[%s544 + $0xf4] sm:$0xf]
        %v663 = vld [vmem:[%s544 + $0xf8] sm:$0xf]
        %v664 = vld [vmem:[%s544 + $0xfc] sm:$0xf]
        %v671 = vunpack.c.l.b16 %v595
        %v672 = vunpack.c.h.b16 %v595
        %v673 = vunpack.c.l.b16 %v596
        %v674 = vunpack.c.h.b16 %v596
        %v675 = vunpack.c.l.b16 %v597
        %v676 = vunpack.c.h.b16 %v597
        %v677 = vunpack.c.l.b16 %v598
        %v678 = vunpack.c.h.b16 %v598
        %v679 = vunpack.c.l.b16 %v599
        %v680 = vunpack.c.h.b16 %v599
        %v681 = vunpack.c.l.b16 %v600
        %v682 = vunpack.c.h.b16 %v600
        %v683 = vpack.c.b16 %v675, %v671
        %v684 = vpack.c.b16 %v676, %v672
        %v685 = vpack.c.b16 %v677, %v673
        %v686 = vpack.c.b16 %v678, %v674
        %v687 = vpack.c.b16 %v679, %v679
        %v688 = vpack.c.b16 %v680, %v680
        %v689 = vpack.c.b16 %v681, %v681
        %v690 = vpack.c.b16 %v682, %v682
        %v763 = vunpack.c.l.b16 %v601
        %v764 = vunpack.c.l.b16 %v602
        %v765 = vunpack.c.l.b16 %v603
        %v766 = vunpack.c.l.b16 %v604
        %v767 = vunpack.c.l.b16 %v605
        %v768 = vunpack.c.l.b16 %v606
        %v769 = vunpack.c.l.b16 %v607
        %v770 = vunpack.c.l.b16 %v608
        %v771 = vunpack.c.l.b16 %v609
        %v772 = vunpack.c.l.b16 %v610
        %v773 = vunpack.c.l.b16 %v611
        %v774 = vunpack.c.l.b16 %v612
        %v775 = vunpack.c.l.b16 %v613
        %v776 = vunpack.c.l.b16 %v614
        %v777 = vunpack.c.l.b16 %v615
        %v778 = vunpack.c.l.b16 %v616
        %v779 = vunpack.c.l.b16 %v617
        %v780 = vunpack.c.l.b16 %v618
        %v781 = vunpack.c.l.b16 %v619
        %v782 = vunpack.c.l.b16 %v620
        %v783 = vunpack.c.l.b16 %v621
        %v784 = vunpack.c.l.b16 %v622
        %v785 = vunpack.c.l.b16 %v623
        %v786 = vunpack.c.l.b16 %v624
        %v787 = vunpack.c.l.b16 %v625
        %v788 = vunpack.c.l.b16 %v626
        %v789 = vunpack.c.l.b16 %v627
        %v790 = vunpack.c.l.b16 %v628
        %v791 = vunpack.c.l.b16 %v629
        %v792 = vunpack.c.l.b16 %v630
        %v793 = vunpack.c.l.b16 %v631
        %v794 = vunpack.c.l.b16 %v632
        %v795 = vunpack.c.l.b16 %v633
        %v796 = vunpack.c.l.b16 %v634
        %v797 = vunpack.c.l.b16 %v635
        %v798 = vunpack.c.l.b16 %v636
        %v799 = vunpack.c.l.b16 %v637
        %v800 = vunpack.c.l.b16 %v638
        %v801 = vunpack.c.l.b16 %v639
        %v802 = vunpack.c.l.b16 %v640
        %v803 = vunpack.c.l.b16 %v641
        %v804 = vunpack.c.l.b16 %v642
        %v805 = vunpack.c.l.b16 %v643
        %v806 = vunpack.c.l.b16 %v644
        %v807 = vunpack.c.l.b16 %v645
        %v808 = vunpack.c.l.b16 %v646
        %v809 = vunpack.c.l.b16 %v647
        %v810 = vunpack.c.l.b16 %v648
        %v811 = vunpack.c.l.b16 %v649
        %v812 = vunpack.c.l.b16 %v650
        %v813 = vunpack.c.l.b16 %v651
        %v814 = vunpack.c.l.b16 %v652
        %v815 = vunpack.c.l.b16 %v653
        %v816 = vunpack.c.l.b16 %v654
        %v817 = vunpack.c.l.b16 %v655
        %v818 = vunpack.c.l.b16 %v656
        %v819 = vunpack.c.l.b16 %v657
        %v820 = vunpack.c.l.b16 %v658
        %v821 = vunpack.c.l.b16 %v659
        %v822 = vunpack.c.l.b16 %v660
        %v823 = vunpack.c.l.b16 %v661
        %v824 = vunpack.c.l.b16 %v662
        %v825 = vunpack.c.l.b16 %v663
        %v826 = vunpack.c.l.b16 %v664
        %v827 = vpack.c.b16 %v764, %v763
        %v828 = vpack.c.b16 %v766, %v765
        %v829 = vpack.c.b16 %v768, %v767
        %v830 = vpack.c.b16 %v770, %v769
        %v831 = vpack.c.b16 %v772, %v771
        %v832 = vpack.c.b16 %v774, %v773
        %v833 = vpack.c.b16 %v776, %v775
        %v834 = vpack.c.b16 %v778, %v777
        %v835 = vpack.c.b16 %v780, %v779
        %v836 = vpack.c.b16 %v782, %v781
        %v837 = vpack.c.b16 %v784, %v783
        %v838 = vpack.c.b16 %v786, %v785
        %v839 = vpack.c.b16 %v788, %v787
        %v840 = vpack.c.b16 %v790, %v789
        %v841 = vpack.c.b16 %v792, %v791
        %v842 = vpack.c.b16 %v794, %v793
        %v843 = vpack.c.b16 %v796, %v795
        %v844 = vpack.c.b16 %v798, %v797
        %v845 = vpack.c.b16 %v800, %v799
        %v846 = vpack.c.b16 %v802, %v801
        %v847 = vpack.c.b16 %v804, %v803
        %v848 = vpack.c.b16 %v806, %v805
        %v849 = vpack.c.b16 %v808, %v807
        %v850 = vpack.c.b16 %v810, %v809
        %v851 = vpack.c.b16 %v812, %v811
        %v852 = vpack.c.b16 %v814, %v813
        %v853 = vpack.c.b16 %v816, %v815
        %v854 = vpack.c.b16 %v818, %v817
        %v855 = vpack.c.b16 %v820, %v819
        %v856 = vpack.c.b16 %v822, %v821
        %v857 = vpack.c.b16 %v824, %v823
        %v858 = vpack.c.b16 %v826, %v825
        %891 = vmatprep.subr.bf16.mxu0 0
        %892 = vmatpush1.bf16.msra.mxu0 %v834
        %893 = vmatprep.subr.bf16.mxu0 0
        %894 = vmatpush1.bf16.msra.mxu0 %v833
        %895 = vmatprep.subr.bf16.mxu0 0
        %896 = vmatpush1.bf16.msra.mxu0 %v832
        %897 = vmatprep.subr.bf16.mxu0 0
        %898 = vmatpush1.bf16.msra.mxu0 %v831
        %899 = vmatprep.subr.bf16.mxu0 0
        %900 = vmatpush1.bf16.msra.mxu0 %v830
        %901 = vmatprep.subr.bf16.mxu0 0
        %902 = vmatpush1.bf16.msra.mxu0 %v829
        %903 = vmatprep.subr.bf16.mxu0 0
        %904 = vmatpush1.bf16.msra.mxu0 %v828
        %905 = vmatprep.subr.bf16.mxu0 0
        %906 = vmatpush1.bf16.msra.mxu0 %v827
        %907 = vmatprep.subr.bf16.mxu0 0
        %908 = vmatpush2.bf16.msra.mxu0 %v842
        %909 = vmatprep.subr.bf16.mxu0 0
        %910 = vmatpush2.bf16.msra.mxu0 %v841
        %911 = vmatprep.subr.bf16.mxu0 0
        %912 = vmatpush2.bf16.msra.mxu0 %v840
        %913 = vmatprep.subr.bf16.mxu0 0
        %914 = vmatpush2.bf16.msra.mxu0 %v839
        %915 = vmatprep.subr.bf16.mxu0 0
        %916 = vmatpush2.bf16.msra.mxu0 %v838
        %917 = vmatprep.subr.bf16.mxu0 0
        %918 = vmatpush2.bf16.msra.mxu0 %v837
        %919 = vmatprep.subr.bf16.mxu0 0
        %920 = vmatpush2.bf16.msra.mxu0 %v836
        %921 = vmatprep.subr.bf16.mxu0 0
        %922 = vmatpush2.bf16.msra.mxu0 %v835
        %923 = vmatprep.mubr.bf16.mxu0 %v684
        %924 = vmatmul.mubr.bf16.gmra.mxu0 %v683
        %v925 = vpop.f32.mrf.mxu0
        %v926 = vadd.f32 0.0, %v925
        %v927 = vpop.f32.mrf.mxu0
        %v928 = vpop.f32.mrf.mxu0
        %v929 = vadd.f32 0.0, %v928
        %v930 = vpop.f32.mrf.mxu0
        %931 = vmatprep.mubr.bf16.mxu0 %v688
        %932 = vmatmul.mubr.bf16.gmra.mxu0 %v687
        %v933 = vpop.f32.mrf.mxu0
        %v934 = vadd.f32 0.0, %v933
        %v935 = vpop.f32.mrf.mxu0
        %v936 = vpop.f32.mrf.mxu0
        %v937 = vpop.f32.mrf.mxu0
        %938 = vdwg.mxu0
        %939 = vmatprep.subr.bf16.mxu0 0
        %940 = vmatpush1.bf16.msra.mxu0 %v850
        %941 = vmatprep.subr.bf16.mxu0 0
        %942 = vmatpush1.bf16.msra.mxu0 %v849
        %943 = vmatprep.subr.bf16.mxu0 0
        %944 = vmatpush1.bf16.msra.mxu0 %v848
        %945 = vmatprep.subr.bf16.mxu0 0
        %946 = vmatpush1.bf16.msra.mxu0 %v847
        %947 = vmatprep.subr.bf16.mxu0 0
        %948 = vmatpush1.bf16.msra.mxu0 %v846
        %949 = vmatprep.subr.bf16.mxu0 0
        %950 = vmatpush1.bf16.msra.mxu0 %v845
        %951 = vmatprep.subr.bf16.mxu0 0
        %952 = vmatpush1.bf16.msra.mxu0 %v844
        %953 = vmatprep.subr.bf16.mxu0 0
        %954 = vmatpush1.bf16.msra.mxu0 %v843
        %955 = vmatprep.subr.bf16.mxu0 0
        %956 = vmatpush2.bf16.msra.mxu0 %v858
        %957 = vmatprep.subr.bf16.mxu0 0
        %958 = vmatpush2.bf16.msra.mxu0 %v857
        %959 = vmatprep.subr.bf16.mxu0 0
        %960 = vmatpush2.bf16.msra.mxu0 %v856
        %961 = vmatprep.subr.bf16.mxu0 0
        %962 = vmatpush2.bf16.msra.mxu0 %v855
        %963 = vmatprep.subr.bf16.mxu0 0
        %964 = vmatpush2.bf16.msra.mxu0 %v854
        %965 = vmatprep.subr.bf16.mxu0 0
        %966 = vmatpush2.bf16.msra.mxu0 %v853
        %967 = vmatprep.subr.bf16.mxu0 0
        %968 = vmatpush2.bf16.msra.mxu0 %v852
        %969 = vmatprep.subr.bf16.mxu0 0
        %970 = vmatpush2.bf16.msra.mxu0 %v851
        %971 = vmatprep.mubr.bf16.mxu0 %v686
        %972 = vmatmul.mubr.bf16.gmra.mxu0 %v685
        %v973 = vpop.f32.mrf.mxu0
        %v974 = vadd.f32 %v926, %v973
        %v975 = vpop.f32.mrf.mxu0
        %v976 = vpop.f32.mrf.mxu0
        %v977 = vadd.f32 %v929, %v976
        %v978 = vpop.f32.mrf.mxu0
        %979 = vmatprep.mubr.bf16.mxu0 %v690
        %980 = vmatmul.mubr.bf16.gmra.mxu0 %v689
        %v981 = vpop.f32.mrf.mxu0
        %v982 = vadd.f32 %v934, %v981
        %v983 = vpop.f32.mrf.mxu0
        %v984 = vpop.f32.mrf.mxu0
        %v985 = vpop.f32.mrf.mxu0
        %986 = vdwg.mxu0
        %v987 = vadd.f32 %v592, %v974
        %v988 = vadd.f32 %v593, %v977
        %v989 = vadd.f32 %v594, %v982
        %990 = vst [vmem:[#allocation2] sm:$0xff] %v987
        %991 = vst [vmem:[#allocation2 + $0x8] sm:$0xff] %v988
        %992 = vst [vmem:[#allocation2 + $0x10] sm:$0x3] %v989
        %p993 = scmp.eq.s32.totalorder %s20, 3
        // Predicated region
        $region105: #{discriminator_forward.7} parent=91 // pred_check
          %p994 = pneg %p993
        $region106: #{discriminator_forward.7} parent=91 // pred_check_branch
          %996 = sbr.rel (%p994) target = $region108
        $region107: #{discriminator_forward.7} parent=91 // pred_region
          %v997 = vld [vmem:[#allocation2] sm:$0xff]
          %v998 = vld [vmem:[#allocation2 + $0x8] sm:$0xff]
          %v999 = vld [vmem:[#allocation2 + $0x10] sm:$0x3]
          %v1000 = vadd.f32 %v997, %v998
          %vm1001 = vcmask 1041408
          %v1002 = vsel %vm1001, %v999, 0.0
          %v1003 = vadd.f32 %v1000, %v1002
          %v1004 = vrot.slane %v1003, 4
          %v1005 = vadd.f32 %v1003, %v1004
          %v1006 = vrot.slane %v1005, 2
          %v1007 = vadd.f32 %v1005, %v1006
          %v1008 = vrot.slane %v1007, 1
          %v1009 = vadd.f32 %v1007, %v1008
          %v1010 = vmul.f32 %v1009, 0.055555556
          %v1011 = vmul.f32 %v997, %v997
          %v1012 = vmul.f32 %v998, %v998
          %v1013 = vmul.f32 %v999, %v999
          %v1014 = vadd.f32 %v1011, %v1012
          %v1015 = vsel %vm1001, %v1013, 0.0
          %v1016 = vadd.f32 %v1014, %v1015
          %v1017 = vrot.slane %v1016, 4
          %v1018 = vadd.f32 %v1016, %v1017
          %v1019 = vrot.slane %v1018, 2
          %v1020 = vadd.f32 %v1018, %v1019
          %v1021 = vrot.slane %v1020, 1
          %v1022 = vadd.f32 %v1020, %v1021
          %v1023 = vmul.f32 %v1022, 0.055555556
          %v1024 = vmul.f32 %v1010, %v1010
          %v1025 = vsub.f32 %v1023, %v1024
          %v1026 = vsub.f32 %v997, %v1010
          %v1027 = vsub.f32 %v998, %v1010
          %v1028 = vsub.f32 %v999, %v1010
          %v1029 = vadd.f32 %v1025, 1e-05
          %v1030 = vrsqrt.pop %v1029
          %v1031 = vmul.f32 %v1026, %v1030
          %v1032 = vmul.f32 %v1027, %v1030
          %v1033 = vmul.f32 %v1028, %v1030
          %v1034 = vld [vmem:[%s580] sm:$0x1]
          %v1036 = vlaneseq
          %v1037 = vshrl.u32 %v1036, 7
          %v1038 = vsub.s32 0, %v1037
          %v1039 = vrot.slane %v1034, %v1038
          %v1041 = vmul.f32 %v1031, %v1039
          %v1042 = vmul.f32 %v1032, %v1039
          %v1043 = vmul.f32 %v1033, %v1039
          %v1044 = vld [vmem:[%s583] sm:$0x1]
          %v1046 = vlaneseq
          %v1047 = vshrl.u32 %v1046, 7
          %v1048 = vsub.s32 0, %v1047
          %v1049 = vrot.slane %v1044, %v1048
          %v1051 = vadd.f32 %v1041, %v1049
          %v1052 = vadd.f32 %v1042, %v1049
          %v1053 = vadd.f32 %v1043, %v1049
          %vm1054 = vcmp.ge.f32.partialorder %v1051, 0.0
          %vm1055 = vcmp.ge.f32.partialorder %v1052, 0.0
          %vm1056 = vcmp.ge.f32.partialorder %v1053, 0.0
          %v1057 = vmul.f32 %v1051, 0.2
          %v1058 = vmul.f32 %v1052, 0.2
          %v1059 = vmul.f32 %v1053, 0.2
          %v1060 = vsel %vm1054, %v1051, %v1057
          %v1061 = vsel %vm1055, %v1052, %v1058
          %v1062 = vsel %vm1056, %v1053, %v1059
          %1063 = vst [vmem:[%s575] sm:$0xff] %v1060
          %1064 = vst [vmem:[%s575 + $0x8] sm:$0xff] %v1061
          %1065 = vst [vmem:[%s575 + $0x10] sm:$0x3] %v1062
        $region108: #{discriminator_forward.7} parent=91 // pred_fallthru
          _
        %s1066 = sand.u32 %s141, 1
        %s1067 = sand.u32 %s141, 1
        %s1068 = smul.addr %s1067, 24
        %s1069 = scalar_lea.vmem [#allocation5], %s1068
        // Predicated region
        $region109: #{discriminator_forward.7} parent=91 // pred_check
          %p1070 = pneg %p151
        $region110: #{discriminator_forward.7} parent=91 // pred_check_branch
          %1072 = sbr.rel (%p1070) target = $region112
        $region111: #{discriminator_forward.7} parent=91 // pred_region
          %s1073 = smul.addr %s19, 8
          %s1074 = scalar_lea.vmem %s4, %s1073
          // Predicated region
          $region113: #{discriminator_forward.7} parent=111 // pred_check
            _
          $region114: #{discriminator_forward.7} parent=111 // pred_check_branch
            %1076 = sbr.rel (0) target = $region116
          $region115: #{discriminator_forward.7} parent=111 // pred_region
            // Predicated region
            $region117: #{discriminator_forward.7} parent=115 // pred_check
              _
            $region118: #{discriminator_forward.7} parent=115 // pred_check_branch
              %1078 = sbr.rel (0) target = $region120
            $region119: #{discriminator_forward.7} parent=115 // pred_region
              // Predicated region
              $region132: #{discriminator_forward.7} parent=119 // pred_check
                _
              $region133: #{discriminator_forward.7} parent=119 // pred_check_branch
                %1098 = sbr.rel (0) target = $region135
              $region134: #{discriminator_forward.7} parent=119 // pred_region
                loop: start=0, step=1, limit=1
                $region136: #{discriminator_forward.7} parent=134 // loop_pre_header
                  _
                $region137: #{discriminator_forward.7} parent=134 // loop_header
                  %s1100 = sphi 0, %s1104
                  %p1101 = scmp.ge.s32.totalorder %s1100, 1
                  %s1105 = sphi %s1069, %s1069
                  %s1106 = sphi %s1074, %s1074
                $region138: #{discriminator_forward.7} parent=134 // loop_header_branch
                  %1103 = sbr.rel (%p1101) target = $region142
                $region139: #{discriminator_forward.7} parent=134 // loop_body
                  %v1107 = vld [vmem:[%s1105] sm:$0xff]
                  %1108 = vst [vmem:[%s1106] sm:$0xff] %v1107
                  %v1109 = vld [vmem:[%s1105 + $0x8] sm:$0xff]
                  %1110 = vst [vmem:[%s1106 + $0x10] sm:$0xff] %v1109
                  %v1111 = vld [vmem:[%s1105 + $0x10] sm:$0xff]
                  %1112 = vst [vmem:[%s1106 + $0x20] sm:$0xff] %v1111
                $region140: #{discriminator_forward.7} parent=134 // loop_footer
                  %s1104 = sadd.s32 1, %s1100
                $region141: #{discriminator_forward.7} parent=134 // loop_footer_branch
                  %1099 = sbr.rel target = $region137
                $region142: #{discriminator_forward.7} parent=134 // loop_exit
                  _
              $region135: #{discriminator_forward.7} parent=119 // pred_fallthru
                _
              // Predicated region
              $region143: #{discriminator_forward.7} parent=119 // pred_check
                _
              $region144: #{discriminator_forward.7} parent=119 // pred_check_branch
                %1114 = sbr.rel target = $region146
              $region145: #{discriminator_forward.7} parent=119 // pred_region
                _
              $region146: #{discriminator_forward.7} parent=119 // pred_fallthru
                _
            $region120: #{discriminator_forward.7} parent=115 // pred_fallthru
              _
            // Predicated region
            $region121: #{discriminator_forward.7} parent=115 // pred_check
              _
            $region122: #{discriminator_forward.7} parent=115 // pred_check_branch
              %1080 = sbr.rel target = $region124
            $region123: #{discriminator_forward.7} parent=115 // pred_region
              %s1082 = ssub.s32 256, 1
              loop: start=0, step=1, limit=1
              $region125: #{discriminator_forward.7} parent=123 // loop_pre_header
                _
              $region126: #{discriminator_forward.7} parent=123 // loop_header
                %s1084 = sphi 0, %s1088
                %p1085 = scmp.ge.s32.totalorder %s1084, 1
                %s1089 = sphi %s1069, %s1069
                %s1090 = sphi %s1074, %s1074
              $region127: #{discriminator_forward.7} parent=123 // loop_header_branch
                %1087 = sbr.rel (%p1085) target = $region131
              $region128: #{discriminator_forward.7} parent=123 // loop_body
                %v1091 = vld [vmem:[%s1089] sm:%s1082]
                %1092 = vst [vmem:[%s1090] sm:%s1082] %v1091
                %v1093 = vld [vmem:[%s1089 + $0x8] sm:%s1082]
                %1094 = vst [vmem:[%s1090 + $0x10] sm:%s1082] %v1093
                %v1095 = vld [vmem:[%s1089 + $0x10] sm:%s1082]
                %1096 = vst [vmem:[%s1090 + $0x20] sm:%s1082] %v1095
              $region129: #{discriminator_forward.7} parent=123 // loop_footer
                %s1088 = sadd.s32 1, %s1084
              $region130: #{discriminator_forward.7} parent=123 // loop_footer_branch
                %1083 = sbr.rel target = $region126
              $region131: #{discriminator_forward.7} parent=123 // loop_exit
                _
            $region124: #{discriminator_forward.7} parent=115 // pred_fallthru
              _
          $region116: #{discriminator_forward.7} parent=111 // pred_fallthru
            _
          %1115 = vnop
        $region112: #{discriminator_forward.7} parent=91 // pred_fallthru
          _
      $region92: #{discriminator_forward.7} parent=5 // pred_fallthru
        _
      %p1116 = scmp.le.s32.totalorder 2, %s10
      // Predicated region
      $region147: #{discriminator_forward.7} parent=5 // pred_check
        %p1117 = pneg %p1116
      $region148: #{discriminator_forward.7} parent=5 // pred_check_branch
        %1119 = sbr.rel (%p1117) target = $region150
      $region149: #{discriminator_forward.7} parent=5 // pred_region
        %s1120 = ssub.s32 %s10, 2
        // Predicated region
        $region151: #{discriminator_forward.7} parent=149 // pred_check
          %p1121 = pneg %p157
        $region152: #{discriminator_forward.7} parent=149 // pred_check_branch
          %1123 = sbr.rel (%p1121) target = $region154
        $region153: #{discriminator_forward.7} parent=149 // pred_region
          %s1124 = sand.u32 %s142, 1
          %s1125 = sand.u32 %s142, 1
          %s1126 = smul.addr %s1125, 24
          %s1127 = scalar_lea.vmem [#allocation5], %s1126
        $region154: #{discriminator_forward.7} parent=149 // pred_fallthru
          _
      $region150: #{discriminator_forward.7} parent=5 // pred_fallthru
        _
    $region6: #{discriminator_forward.7} parent=1 // loop_footer
      %s14 = sadd.s32 1, %s10
    $region7: #{discriminator_forward.7} parent=1 // loop_footer_branch
      %9 = sbr.rel target = $region3
    $region8: #{discriminator_forward.7} parent=1 // loop_exit
      _

// kernel: discriminator_forward.8
$region0: #{discriminator_forward.8}
  #allocation0 [shape = 'u32[]', space=smem, size = 0x4, offset = 0x4, fixed_abs, tag = 'smem constant byte address 0x4 - core index']
  #allocation1 [shape = 'u32[144,128]{1,0:T(1,128)}', space=vmem, size = 0x12000, scoped, tag = 'internal scratch']
  #allocation2 [shape = 'f32[32,128]{1,0:T(8,128)}', space=vmem, size = 0x4000, scoped, tag = 'scratch operand']
  %s0 = inlined_call_operand.vmem [shape: bf16[32,4096], index: 0, kind: input, shape index: {}]
  %s1 = inlined_call_operand.vmem [shape: bf16[4096,512], index: 1, kind: input, shape index: {}]
  %s2 = inlined_call_operand.vmem [shape: f32[1,512], index: 2, kind: input, shape index: {}]
  %s3 = inlined_call_operand.vmem [shape: f32[1,512], index: 3, kind: input, shape index: {}]
  %s4 = inlined_call_operand.vmem [shape: f32[32,512], index: 4, kind: output, shape index: {}]
  %s5 = sld [smem:[#allocation0]]
  $region155: #{discriminator_forward.8} parent=0
    _
  %s7 = ssub.s32 1, %s5
  %s8 = scalar_select 0, %s7, %s5
  $region1: #{discriminator_forward.8} parent=0
    #allocation3 [shape = 'u8[65536]{0}', space=vmem, size = 0x10000, scoped, tag = 'input window, operand 0']
    #allocation4 [shape = 'u8[262144]{0}', space=vmem, size = 0x40000, scoped, tag = 'input window, operand 1']
    #allocation5 [shape = 'u8[32768]{0}', space=vmem, size = 0x8000, scoped, tag = 'output window, operand 0']
    loop: start=0, step=1, limit=34
    $region2: #{discriminator_forward.8} parent=1 // loop_pre_header
      _
    $region3: #{discriminator_forward.8} parent=1 // loop_header
      %s10 = sphi 0, %s14
      %p11 = scmp.ge.s32.totalorder %s10, 34
      %s17 = sphi 0, %s29
      %s18 = sphi 0, %s25
      %s19 = sphi 0, %s17
      %s20 = sphi 0, %s18
      %s21 = sphi 0, %s19
      %s22 = sphi 0, %s20
      %s32 = sphi 0, %s34
      %s35 = sphi 0, %s32
      %s36 = sphi 0, %s35
      %s52 = sphi 0, %s36
      %s60 = sphi 0, %s62
      %s63 = sphi 0, %s60
      %s64 = sphi 0, %s63
      %s80 = sphi 0, %s64
      %s86 = sphi 0, %s88
      %s89 = sphi 0, %s86
      %s90 = sphi 0, %s89
      %s106 = sphi 0, %s90
      %s112 = sphi 0, %s114
      %s115 = sphi 0, %s112
      %s116 = sphi 0, %s115
      %s132 = sphi 0, %s116
      %s138 = sphi 0, %s140
      %s141 = sphi 0, %s138
      %s142 = sphi 0, %s141
      %s158 = sphi 0, %s142
    $region4: #{discriminator_forward.8} parent=1 // loop_header_branch
      %13 = sbr.rel (%p11) target = $region8
    $region5: #{discriminator_forward.8} parent=1 // loop_body
      %s15 = ssub.s32 %s10, 1
      %s16 = ssub.s32 %s10, 2
      %s23 = sadd.s32 1, %s18
      %p24 = scmp.ge.s32.totalorder %s23, 8
      %s25 = scalar_select %p24, 0, %s23
      %s26 = sadd.s32 1, %s17
      %s27 = scalar_select %p24, %s26, %s17
      %p28 = scmp.ge.s32.totalorder %s27, 4
      %s29 = scalar_select %p28, 0, %s27
      %s30 = ssub.s32 %s18, %s25
      %p31 = scmp.eq.s32.totalorder %s30, 0
      %s33 = sadd.s32 %s32, 1
      %s34 = scalar_select %p31, %s32, %s33
      %p37 = pneg %p31
      %p38 = scmp.eq.s32.totalorder %s10, 31
      %p39 = por %p37, %p38
      %p40 = scmp.ne.s32.totalorder %s32, %s35
      %p41 = scmp.eq.s32.totalorder %s10, 0
      %p42 = por %p40, %p41
      %p43 = scmp.ne.s32.totalorder %s32, %s35
      %p44 = scmp.eq.s32.totalorder %s15, 31
      %p45 = por %p43, %p44
      %p46 = scmp.ne.s32.totalorder %s35, %s36
      %p47 = scmp.eq.s32.totalorder %s15, 0
      %p48 = por %p46, %p47
      %p49 = scmp.ne.s32.totalorder %s35, %s36
      %p50 = scmp.eq.s32.totalorder %s16, 31
      %p51 = por %p49, %p50
      %p53 = scmp.ne.s32.totalorder %s36, %s52
      %p54 = scmp.eq.s32.totalorder %s16, 0
      %p55 = por %p53, %p54
      %s56 = ssub.s32 %s18, %s25
      %s57 = ssub.s32 %s17, %s29
      %s58 = sor.u32 %s56, %s57
      %p59 = scmp.eq.s32.totalorder %s58, 0
      %s61 = sadd.s32 %s60, 1
      %s62 = scalar_select %p59, %s60, %s61
      %p65 = pneg %p59
      %p66 = scmp.eq.s32.totalorder %s10, 31
      %p67 = por %p65, %p66
      %p68 = scmp.ne.s32.totalorder %s60, %s63
      %p69 = scmp.eq.s32.totalorder %s10, 0
      %p70 = por %p68, %p69
      %p71 = scmp.ne.s32.totalorder %s60, %s63
      %p72 = scmp.eq.s32.totalorder %s15, 31
      %p73 = por %p71, %p72
      %p74 = scmp.ne.s32.totalorder %s63, %s64
      %p75 = scmp.eq.s32.totalorder %s15, 0
      %p76 = por %p74, %p75
      %p77 = scmp.ne.s32.totalorder %s63, %s64
      %p78 = scmp.eq.s32.totalorder %s16, 31
      %p79 = por %p77, %p78
      %p81 = scmp.ne.s32.totalorder %s64, %s80
      %p82 = scmp.eq.s32.totalorder %s16, 0
      %p83 = por %p81, %p82
      %s84 = ssub.s32 %s17, %s29
      %p85 = scmp.eq.s32.totalorder %s84, 0
      %s87 = sadd.s32 %s86, 1
      %s88 = scalar_select %p85, %s86, %s87
      %p91 = pneg %p85
      %p92 = scmp.eq.s32.totalorder %s10, 31
      %p93 = por %p91, %p92
      %p94 = scmp.ne.s32.totalorder %s86, %s89
      %p95 = scmp.eq.s32.totalorder %s10, 0
      %p96 = por %p94, %p95
      %p97 = scmp.ne.s32.totalorder %s86, %s89
      %p98 = scmp.eq.s32.totalorder %s15, 31
      %p99 = por %p97, %p98
      %p100 = scmp.ne.s32.totalorder %s89, %s90
      %p101 = scmp.eq.s32.totalorder %s15, 0
      %p102 = por %p100, %p101
      %p103 = scmp.ne.s32.totalorder %s89, %s90
      %p104 = scmp.eq.s32.totalorder %s16, 31
      %p105 = por %p103, %p104
      %p107 = scmp.ne.s32.totalorder %s90, %s106
      %p108 = scmp.eq.s32.totalorder %s16, 0
      %p109 = por %p107, %p108
      %s110 = ssub.s32 %s17, %s29
      %p111 = scmp.eq.s32.totalorder %s110, 0
      %s113 = sadd.s32 %s112, 1
      %s114 = scalar_select %p111, %s112, %s113
      %p117 = pneg %p111
      %p118 = scmp.eq.s32.totalorder %s10, 31
      %p119 = por %p117, %p118
      %p120 = scmp.ne.s32.totalorder %s112, %s115
      %p121 = scmp.eq.s32.totalorder %s10, 0
      %p122 = por %p120, %p121
      %p123 = scmp.ne.s32.totalorder %s112, %s115
      %p124 = scmp.eq.s32.totalorder %s15, 31
      %p125 = por %p123, %p124
      %p126 = scmp.ne.s32.totalorder %s115, %s116
      %p127 = scmp.eq.s32.totalorder %s15, 0
      %p128 = por %p126, %p127
      %p129 = scmp.ne.s32.totalorder %s115, %s116
      %p130 = scmp.eq.s32.totalorder %s16, 31
      %p131 = por %p129, %p130
      %p133 = scmp.ne.s32.totalorder %s116, %s132
      %p134 = scmp.eq.s32.totalorder %s16, 0
      %p135 = por %p133, %p134
      %s136 = ssub.s32 %s17, %s29
      %p137 = scmp.eq.s32.totalorder %s136, 0
      %s139 = sadd.s32 %s138, 1
      %s140 = scalar_select %p137, %s138, %s139
      %p143 = pneg %p137
      %p144 = scmp.eq.s32.totalorder %s10, 31
      %p145 = por %p143, %p144
      %p146 = scmp.ne.s32.totalorder %s138, %s141
      %p147 = scmp.eq.s32.totalorder %s10, 0
      %p148 = por %p146, %p147
      %p149 = scmp.ne.s32.totalorder %s138, %s141
      %p150 = scmp.eq.s32.totalorder %s15, 31
      %p151 = por %p149, %p150
      %p152 = scmp.ne.s32.totalorder %s141, %s142
      %p153 = scmp.eq.s32.totalorder %s15, 0
      %p154 = por %p152, %p153
      %p155 = scmp.ne.s32.totalorder %s141, %s142
      %p156 = scmp.eq.s32.totalorder %s16, 31
      %p157 = por %p155, %p156
      %p159 = scmp.ne.s32.totalorder %s142, %s158
      %p160 = scmp.eq.s32.totalorder %s16, 0
      %p161 = por %p159, %p160
      %p162 = scmp.le.s32.totalorder 1, %s10
      %p163 = scmp.lt.s32.totalorder %s10, 33
      %p164 = pnand %p162, %p163
      %p165 = pneg %p164
      // Predicated region
      $region9: #{discriminator_forward.8} parent=5 // pred_check
        _
      $region10: #{discriminator_forward.8} parent=5 // pred_check_branch
        %167 = sbr.rel (%p164) target = $region12
      $region11: #{discriminator_forward.8} parent=5 // pred_region
        %s168 = ssub.s32 %s10, 1
      $region12: #{discriminator_forward.8} parent=5 // pred_fallthru
        _
      %p169 = scmp.lt.s32.totalorder %s10, 32
      // Predicated region
      $region13: #{discriminator_forward.8} parent=5 // pred_check
        %p170 = pneg %p169
      $region14: #{discriminator_forward.8} parent=5 // pred_check_branch
        %172 = sbr.rel (%p170) target = $region16
      $region15: #{discriminator_forward.8} parent=5 // pred_region
        // Predicated region
        $region17: #{discriminator_forward.8} parent=15 // pred_check
          %p173 = pneg %p42
        $region18: #{discriminator_forward.8} parent=15 // pred_check_branch
          %175 = sbr.rel (%p173) target = $region20
        $region19: #{discriminator_forward.8} parent=15 // pred_region
          %s176 = sand.u32 %s32, 1
          %s177 = sand.u32 %s32, 1
          %s178 = smul.addr %s177, 64
          %s179 = scalar_lea.vmem [#allocation3], %s178
          %s180 = smul.u32 4, %s18
          %s181 = smul.addr %s180, 4
          %s182 = scalar_lea.vmem %s0, %s181
          // Predicated region
          $region21: #{discriminator_forward.8} parent=19 // pred_check
            _
          $region22: #{discriminator_forward.8} parent=19 // pred_check_branch
            %184 = sbr.rel (0) target = $region24
          $region23: #{discriminator_forward.8} parent=19 // pred_region
            // Predicated region
            $region25: #{discriminator_forward.8} parent=23 // pred_check
              _
            $region26: #{discriminator_forward.8} parent=23 // pred_check_branch
              %186 = sbr.rel (0) target = $region28
            $region27: #{discriminator_forward.8} parent=23 // pred_region
              loop: start=0, step=1, limit=1
              $region29: #{discriminator_forward.8} parent=27 // loop_pre_header
                _
              $region30: #{discriminator_forward.8} parent=27 // loop_header
                %s188 = sphi 0, %s192
                %p189 = scmp.ge.s32.totalorder %s188, 1
                %s193 = sphi %s182, %s182
                %s194 = sphi %s179, %s179
              $region31: #{discriminator_forward.8} parent=27 // loop_header_branch
                %191 = sbr.rel (%p189) target = $region35
              $region32: #{discriminator_forward.8} parent=27 // loop_body
                %v195 = vld [vmem:[%s193] sm:$0xff]
                %196 = vst [vmem:[%s194] sm:$0xff] %v195
                %v197 = vld [vmem:[%s193 + $0x8] sm:$0xff]
                %198 = vst [vmem:[%s194 + $0x8] sm:$0xff] %v197
                %v199 = vld [vmem:[%s193 + $0x80] sm:$0xff]
                %200 = vst [vmem:[%s194 + $0x10] sm:$0xff] %v199
                %v201 = vld [vmem:[%s193 + $0x88] sm:$0xff]
                %202 = vst [vmem:[%s194 + $0x18] sm:$0xff] %v201
                %v203 = vld [vmem:[%s193 + $0x100] sm:$0xff]
                %204 = vst [vmem:[%s194 + $0x20] sm:$0xff] %v203
                %v205 = vld [vmem:[%s193 + $0x108] sm:$0xff]
                %206 = vst [vmem:[%s194 + $0x28] sm:$0xff] %v205
                %v207 = vld [vmem:[%s193 + $0x180] sm:$0xff]
                %208 = vst [vmem:[%s194 + $0x30] sm:$0xff] %v207
                %v209 = vld [vmem:[%s193 + $0x188] sm:$0xff]
                %210 = vst [vmem:[%s194 + $0x38] sm:$0xff] %v209
              $region33: #{discriminator_forward.8} parent=27 // loop_footer
                %s192 = sadd.s32 1, %s188
              $region34: #{discriminator_forward.8} parent=27 // loop_footer_branch
                %187 = sbr.rel target = $region30
              $region35: #{discriminator_forward.8} parent=27 // loop_exit
                _
            $region28: #{discriminator_forward.8} parent=23 // pred_fallthru
              _
            // Predicated region
            $region36: #{discriminator_forward.8} parent=23 // pred_check
              _
            $region37: #{discriminator_forward.8} parent=23 // pred_check_branch
              %212 = sbr.rel target = $region39
            $region38: #{discriminator_forward.8} parent=23 // pred_region
              _
            $region39: #{discriminator_forward.8} parent=23 // pred_fallthru
              _
          $region24: #{discriminator_forward.8} parent=19 // pred_fallthru
            _
          %213 = vnop
        $region20: #{discriminator_forward.8} parent=15 // pred_fallthru
          _
        // Predicated region
        $region40: #{discriminator_forward.8} parent=15 // pred_check
          %p214 = pneg %p70
        $region41: #{discriminator_forward.8} parent=15 // pred_check_branch
          %216 = sbr.rel (%p214) target = $region43
        $region42: #{discriminator_forward.8} parent=15 // pred_region
          %s217 = sand.u32 %s60, 1
          %s218 = sand.u32 %s60, 1
          %s219 = smul.addr %s218, 256
          %s220 = scalar_lea.vmem [#allocation4], %s219
          %s221 = smul.u32 64, %s18
          %s222 = smul.addr %s221, 4
          %s223 = sadd.s32 %s17, %s222
          %s224 = smul.addr %s223, 4
          %s225 = scalar_lea.vmem %s1, %s224
          // Predicated region
          $region44: #{discriminator_forward.8} parent=42 // pred_check
            _
          $region45: #{discriminator_forward.8} parent=42 // pred_check_branch
            %227 = sbr.rel (0) target = $region47
          $region46: #{discriminator_forward.8} parent=42 // pred_region
            // Predicated region
            $region48: #{discriminator_forward.8} parent=46 // pred_check
              _
            $region49: #{discriminator_forward.8} parent=46 // pred_check_branch
              %229 = sbr.rel target = $region51
            $region50: #{discriminator_forward.8} parent=46 // pred_region
              // Predicated region
              $region63: #{discriminator_forward.8} parent=50 // pred_check
                _
              $region64: #{discriminator_forward.8} parent=50 // pred_check_branch
                %371 = sbr.rel (0) target = $region66
              $region65: #{discriminator_forward.8} parent=50 // pred_region
                loop: start=0, step=1, limit=1
                $region67: #{discriminator_forward.8} parent=65 // loop_pre_header
                  _
                $region68: #{discriminator_forward.8} parent=65 // loop_header
                  %s373 = sphi 0, %s377
                  %p374 = scmp.ge.s32.totalorder %s373, 1
                  %s378 = sphi %s225, %s225
                  %s379 = sphi %s220, %s220
                $region69: #{discriminator_forward.8} parent=65 // loop_header_branch
                  %376 = sbr.rel (%p374) target = $region73
                $region70: #{discriminator_forward.8} parent=65 // loop_body
                  _
                $region71: #{discriminator_forward.8} parent=65 // loop_footer
                  %s377 = sadd.s32 1, %s373
                $region72: #{discriminator_forward.8} parent=65 // loop_footer_branch
                  %372 = sbr.rel target = $region68
                $region73: #{discriminator_forward.8} parent=65 // loop_exit
                  _
                %s381 = ssub.s32 16, 1
                loop: start=0, step=1, limit=1
                $region74: #{discriminator_forward.8} parent=65 // loop_pre_header
                  _
                $region75: #{discriminator_forward.8} parent=65 // loop_header
                  %s383 = sphi 0, %s387
                  %p384 = scmp.ge.s32.totalorder %s383, 1
                  %s388 = sphi %s225, %s225
                  %s389 = sphi %s220, %s220
                $region76: #{discriminator_forward.8} parent=65 // loop_header_branch
                  %386 = sbr.rel (%p384) target = $region80
                $region77: #{discriminator_forward.8} parent=65 // loop_body
                  %v390 = vld [vmem:[%s388] sm:%s381]
                  %391 = vst [vmem:[%s389] sm:%s381] %v390
                  %v392 = vld [vmem:[%s388 + $0x10] sm:%s381]
                  %393 = vst [vmem:[%s389 + $0x4] sm:%s381] %v392
                  %v394 = vld [vmem:[%s388 + $0x20] sm:%s381]
                  %395 = vst [vmem:[%s389 + $0x8] sm:%s381] %v394
                  %v396 = vld [vmem:[%s388 + $0x30] sm:%s381]
                  %397 = vst [vmem:[%s389 + $0xc] sm:%s381] %v396
                  %v398 = vld [vmem:[%s388 + $0x40] sm:%s381]
                  %399 = vst [vmem:[%s389 + $0x10] sm:%s381] %v398
                  %v400 = vld [vmem:[%s388 + $0x50] sm:%s381]
                  %401 = vst [vmem:[%s389 + $0x14] sm:%s381] %v400
                  %v402 = vld [vmem:[%s388 + $0x60] sm:%s381]
                  %403 = vst [vmem:[%s389 + $0x18] sm:%s381] %v402
                  %v404 = vld [vmem:[%s388 + $0x70] sm:%s381]
                  %405 = vst [vmem:[%s389 + $0x1c] sm:%s381] %v404
                  %v406 = vld [vmem:[%s388 + $0x80] sm:%s381]
                  %407 = vst [vmem:[%s389 + $0x20] sm:%s381] %v406
                  %v408 = vld [vmem:[%s388 + $0x90] sm:%s381]
                  %409 = vst [vmem:[%s389 + $0x24] sm:%s381] %v408
                  %v410 = vld [vmem:[%s388 + $0xa0] sm:%s381]
                  %411 = vst [vmem:[%s389 + $0x28] sm:%s381] %v410
                  %v412 = vld [vmem:[%s388 + $0xb0] sm:%s381]
                  %413 = vst [vmem:[%s389 + $0x2c] sm:%s381] %v412
                  %v414 = vld [vmem:[%s388 + $0xc0] sm:%s381]
                  %415 = vst [vmem:[%s389 + $0x30] sm:%s381] %v414
                  %v416 = vld [vmem:[%s388 + $0xd0] sm:%s381]
                  %417 = vst [vmem:[%s389 + $0x34] sm:%s381] %v416
                  %v418 = vld [vmem:[%s388 + $0xe0] sm:%s381]
                  %419 = vst [vmem:[%s389 + $0x38] sm:%s381] %v418
                  %v420 = vld [vmem:[%s388 + $0xf0] sm:%s381]
                  %421 = vst [vmem:[%s389 + $0x3c] sm:%s381] %v420
                  %v422 = vld [vmem:[%s388 + $0x100] sm:%s381]
                  %423 = vst [vmem:[%s389 + $0x40] sm:%s381] %v422
                  %v424 = vld [vmem:[%s388 + $0x110] sm:%s381]
                  %425 = vst [vmem:[%s389 + $0x44] sm:%s381] %v424
                  %v426 = vld [vmem:[%s388 + $0x120] sm:%s381]
                  %427 = vst [vmem:[%s389 + $0x48] sm:%s381] %v426
                  %v428 = vld [vmem:[%s388 + $0x130] sm:%s381]
                  %429 = vst [vmem:[%s389 + $0x4c] sm:%s381] %v428
                  %v430 = vld [vmem:[%s388 + $0x140] sm:%s381]
                  %431 = vst [vmem:[%s389 + $0x50] sm:%s381] %v430
                  %v432 = vld [vmem:[%s388 + $0x150] sm:%s381]
                  %433 = vst [vmem:[%s389 + $0x54] sm:%s381] %v432
                  %v434 = vld [vmem:[%s388 + $0x160] sm:%s381]
                  %435 = vst [vmem:[%s389 + $0x58] sm:%s381] %v434
                  %v436 = vld [vmem:[%s388 + $0x170] sm:%s381]
                  %437 = vst [vmem:[%s389 + $0x5c] sm:%s381] %v436
                  %v438 = vld [vmem:[%s388 + $0x180] sm:%s381]
                  %439 = vst [vmem:[%s389 + $0x60] sm:%s381] %v438
                  %v440 = vld [vmem:[%s388 + $0x190] sm:%s381]
                  %441 = vst [vmem:[%s389 + $0x64] sm:%s381] %v440
                  %v442 = vld [vmem:[%s388 + $0x1a0] sm:%s381]
                  %443 = vst [vmem:[%s389 + $0x68] sm:%s381] %v442
                  %v444 = vld [vmem:[%s388 + $0x1b0] sm:%s381]
                  %445 = vst [vmem:[%s389 + $0x6c] sm:%s381] %v444
                  %v446 = vld [vmem:[%s388 + $0x1c0] sm:%s381]
                  %447 = vst [vmem:[%s389 + $0x70] sm:%s381] %v446
                  %v448 = vld [vmem:[%s388 + $0x1d0] sm:%s381]
                  %449 = vst [vmem:[%s389 + $0x74] sm:%s381] %v448
                  %v450 = vld [vmem:[%s388 + $0x1e0] sm:%s381]
                  %451 = vst [vmem:[%s389 + $0x78] sm:%s381] %v450
                  %v452 = vld [vmem:[%s388 + $0x1f0] sm:%s381]
                  %453 = vst [vmem:[%s389 + $0x7c] sm:%s381] %v452
                  %v454 = vld [vmem:[%s388 + $0x200] sm:%s381]
                  %455 = vst [vmem:[%s389 + $0x80] sm:%s381] %v454
                  %v456 = vld [vmem:[%s388 + $0x210] sm:%s381]
                  %457 = vst [vmem:[%s389 + $0x84] sm:%s381] %v456
                  %v458 = vld [vmem:[%s388 + $0x220] sm:%s381]
                  %459 = vst [vmem:[%s389 + $0x88] sm:%s381] %v458
                  %v460 = vld [vmem:[%s388 + $0x230] sm:%s381]
                  %461 = vst [vmem:[%s389 + $0x8c] sm:%s381] %v460
                  %v462 = vld [vmem:[%s388 + $0x240] sm:%s381]
                  %463 = vst [vmem:[%s389 + $0x90] sm:%s381] %v462
                  %v464 = vld [vmem:[%s388 + $0x250] sm:%s381]
                  %465 = vst [vmem:[%s389 + $0x94] sm:%s381] %v464
                  %v466 = vld [vmem:[%s388 + $0x260] sm:%s381]
                  %467 = vst [vmem:[%s389 + $0x98] sm:%s381] %v466
                  %v468 = vld [vmem:[%s388 + $0x270] sm:%s381]
                  %469 = vst [vmem:[%s389 + $0x9c] sm:%s381] %v468
                  %v470 = vld [vmem:[%s388 + $0x280] sm:%s381]
                  %471 = vst [vmem:[%s389 + $0xa0] sm:%s381] %v470
                  %v472 = vld [vmem:[%s388 + $0x290] sm:%s381]
                  %473 = vst [vmem:[%s389 + $0xa4] sm:%s381] %v472
                  %v474 = vld [vmem:[%s388 + $0x2a0] sm:%s381]
                  %475 = vst [vmem:[%s389 + $0xa8] sm:%s381] %v474
                  %v476 = vld [vmem:[%s388 + $0x2b0] sm:%s381]
                  %477 = vst [vmem:[%s389 + $0xac] sm:%s381] %v476
                  %v478 = vld [vmem:[%s388 + $0x2c0] sm:%s381]
                  %479 = vst [vmem:[%s389 + $0xb0] sm:%s381] %v478
                  %v480 = vld [vmem:[%s388 + $0x2d0] sm:%s381]
                  %481 = vst [vmem:[%s389 + $0xb4] sm:%s381] %v480
                  %v482 = vld [vmem:[%s388 + $0x2e0] sm:%s381]
                  %483 = vst [vmem:[%s389 + $0xb8] sm:%s381] %v482
                  %v484 = vld [vmem:[%s388 + $0x2f0] sm:%s381]
                  %485 = vst [vmem:[%s389 + $0xbc] sm:%s381] %v484
                  %v486 = vld [vmem:[%s388 + $0x300] sm:%s381]
                  %487 = vst [vmem:[%s389 + $0xc0] sm:%s381] %v486
                  %v488 = vld [vmem:[%s388 + $0x310] sm:%s381]
                  %489 = vst [vmem:[%s389 + $0xc4] sm:%s381] %v488
                  %v490 = vld [vmem:[%s388 + $0x320] sm:%s381]
                  %491 = vst [vmem:[%s389 + $0xc8] sm:%s381] %v490
                  %v492 = vld [vmem:[%s388 + $0x330] sm:%s381]
                  %493 = vst [vmem:[%s389 + $0xcc] sm:%s381] %v492
                  %v494 = vld [vmem:[%s388 + $0x340] sm:%s381]
                  %495 = vst [vmem:[%s389 + $0xd0] sm:%s381] %v494
                  %v496 = vld [vmem:[%s388 + $0x350] sm:%s381]
                  %497 = vst [vmem:[%s389 + $0xd4] sm:%s381] %v496
                  %v498 = vld [vmem:[%s388 + $0x360] sm:%s381]
                  %499 = vst [vmem:[%s389 + $0xd8] sm:%s381] %v498
                  %v500 = vld [vmem:[%s388 + $0x370] sm:%s381]
                  %501 = vst [vmem:[%s389 + $0xdc] sm:%s381] %v500
                  %v502 = vld [vmem:[%s388 + $0x380] sm:%s381]
                  %503 = vst [vmem:[%s389 + $0xe0] sm:%s381] %v502
                  %v504 = vld [vmem:[%s388 + $0x390] sm:%s381]
                  %505 = vst [vmem:[%s389 + $0xe4] sm:%s381] %v504
                  %v506 = vld [vmem:[%s388 + $0x3a0] sm:%s381]
                  %507 = vst [vmem:[%s389 + $0xe8] sm:%s381] %v506
                  %v508 = vld [vmem:[%s388 + $0x3b0] sm:%s381]
                  %509 = vst [vmem:[%s389 + $0xec] sm:%s381] %v508
                  %v510 = vld [vmem:[%s388 + $0x3c0] sm:%s381]
                  %511 = vst [vmem:[%s389 + $0xf0] sm:%s381] %v510
                  %v512 = vld [vmem:[%s388 + $0x3d0] sm:%s381]
                  %513 = vst [vmem:[%s389 + $0xf4] sm:%s381] %v512
                  %v514 = vld [vmem:[%s388 + $0x3e0] sm:%s381]
                  %515 = vst [vmem:[%s389 + $0xf8] sm:%s381] %v514
                  %v516 = vld [vmem:[%s388 + $0x3f0] sm:%s381]
                  %517 = vst [vmem:[%s389 + $0xfc] sm:%s381] %v516
                $region78: #{discriminator_forward.8} parent=65 // loop_footer
                  %s387 = sadd.s32 1, %s383
                $region79: #{discriminator_forward.8} parent=65 // loop_footer_branch
                  %382 = sbr.rel target = $region75
                $region80: #{discriminator_forward.8} parent=65 // loop_exit
                  _
              $region66: #{discriminator_forward.8} parent=50 // pred_fallthru
                _
            $region51: #{discriminator_forward.8} parent=46 // pred_fallthru
              _
            // Predicated region
            $region52: #{discriminator_forward.8} parent=46 // pred_check
              _
            $region53: #{discriminator_forward.8} parent=46 // pred_check_branch
              %231 = sbr.rel (0) target = $region55
            $region54: #{discriminator_forward.8} parent=46 // pred_region
              %s233 = ssub.s32 16, 1
              loop: start=0, step=1, limit=1
              $region56: #{discriminator_forward.8} parent=54 // loop_pre_header
                _
              $region57: #{discriminator_forward.8} parent=54 // loop_header
                %s235 = sphi 0, %s239
                %p236 = scmp.ge.s32.totalorder %s235, 1
                %s240 = sphi %s225, %s225
                %s241 = sphi %s220, %s220
              $region58: #{discriminator_forward.8} parent=54 // loop_header_branch
                %238 = sbr.rel (%p236) target = $region62
              $region59: #{discriminator_forward.8} parent=54 // loop_body
                %v242 = vld [vmem:[%s240] sm:%s233]
                %243 = vst [vmem:[%s241] sm:%s233] %v242
                %v244 = vld [vmem:[%s240 + $0x10] sm:%s233]
                %245 = vst [vmem:[%s241 + $0x4] sm:%s233] %v244
                %v246 = vld [vmem:[%s240 + $0x20] sm:%s233]
                %247 = vst [vmem:[%s241 + $0x8] sm:%s233] %v246
                %v248 = vld [vmem:[%s240 + $0x30] sm:%s233]
                %249 = vst [vmem:[%s241 + $0xc] sm:%s233] %v248
                %v250 = vld [vmem:[%s240 + $0x40] sm:%s233]
                %251 = vst [vmem:[%s241 + $0x10] sm:%s233] %v250
                %v252 = vld [vmem:[%s240 + $0x50] sm:%s233]
                %253 = vst [vmem:[%s241 + $0x14] sm:%s233] %v252
                %v254 = vld [vmem:[%s240 + $0x60] sm:%s233]
                %255 = vst [vmem:[%s241 + $0x18] sm:%s233] %v254
                %v256 = vld [vmem:[%s240 + $0x70] sm:%s233]
                %257 = vst [vmem:[%s241 + $0x1c] sm:%s233] %v256
                %v258 = vld [vmem:[%s240 + $0x80] sm:%s233]
                %259 = vst [vmem:[%s241 + $0x20] sm:%s233] %v258
                %v260 = vld [vmem:[%s240 + $0x90] sm:%s233]
                %261 = vst [vmem:[%s241 + $0x24] sm:%s233] %v260
                %v262 = vld [vmem:[%s240 + $0xa0] sm:%s233]
                %263 = vst [vmem:[%s241 + $0x28] sm:%s233] %v262
                %v264 = vld [vmem:[%s240 + $0xb0] sm:%s233]
                %265 = vst [vmem:[%s241 + $0x2c] sm:%s233] %v264
                %v266 = vld [vmem:[%s240 + $0xc0] sm:%s233]
                %267 = vst [vmem:[%s241 + $0x30] sm:%s233] %v266
                %v268 = vld [vmem:[%s240 + $0xd0] sm:%s233]
                %269 = vst [vmem:[%s241 + $0x34] sm:%s233] %v268
                %v270 = vld [vmem:[%s240 + $0xe0] sm:%s233]
                %271 = vst [vmem:[%s241 + $0x38] sm:%s233] %v270
                %v272 = vld [vmem:[%s240 + $0xf0] sm:%s233]
                %273 = vst [vmem:[%s241 + $0x3c] sm:%s233] %v272
                %v274 = vld [vmem:[%s240 + $0x100] sm:%s233]
                %275 = vst [vmem:[%s241 + $0x40] sm:%s233] %v274
                %v276 = vld [vmem:[%s240 + $0x110] sm:%s233]
                %277 = vst [vmem:[%s241 + $0x44] sm:%s233] %v276
                %v278 = vld [vmem:[%s240 + $0x120] sm:%s233]
                %279 = vst [vmem:[%s241 + $0x48] sm:%s233] %v278
                %v280 = vld [vmem:[%s240 + $0x130] sm:%s233]
                %281 = vst [vmem:[%s241 + $0x4c] sm:%s233] %v280
                %v282 = vld [vmem:[%s240 + $0x140] sm:%s233]
                %283 = vst [vmem:[%s241 + $0x50] sm:%s233] %v282
                %v284 = vld [vmem:[%s240 + $0x150] sm:%s233]
                %285 = vst [vmem:[%s241 + $0x54] sm:%s233] %v284
                %v286 = vld [vmem:[%s240 + $0x160] sm:%s233]
                %287 = vst [vmem:[%s241 + $0x58] sm:%s233] %v286
                %v288 = vld [vmem:[%s240 + $0x170] sm:%s233]
                %289 = vst [vmem:[%s241 + $0x5c] sm:%s233] %v288
                %v290 = vld [vmem:[%s240 + $0x180] sm:%s233]
                %291 = vst [vmem:[%s241 + $0x60] sm:%s233] %v290
                %v292 = vld [vmem:[%s240 + $0x190] sm:%s233]
                %293 = vst [vmem:[%s241 + $0x64] sm:%s233] %v292
                %v294 = vld [vmem:[%s240 + $0x1a0] sm:%s233]
                %295 = vst [vmem:[%s241 + $0x68] sm:%s233] %v294
                %v296 = vld [vmem:[%s240 + $0x1b0] sm:%s233]
                %297 = vst [vmem:[%s241 + $0x6c] sm:%s233] %v296
                %v298 = vld [vmem:[%s240 + $0x1c0] sm:%s233]
                %299 = vst [vmem:[%s241 + $0x70] sm:%s233] %v298
                %v300 = vld [vmem:[%s240 + $0x1d0] sm:%s233]
                %301 = vst [vmem:[%s241 + $0x74] sm:%s233] %v300
                %v302 = vld [vmem:[%s240 + $0x1e0] sm:%s233]
                %303 = vst [vmem:[%s241 + $0x78] sm:%s233] %v302
                %v304 = vld [vmem:[%s240 + $0x1f0] sm:%s233]
                %305 = vst [vmem:[%s241 + $0x7c] sm:%s233] %v304
                %v306 = vld [vmem:[%s240 + $0x200] sm:%s233]
                %307 = vst [vmem:[%s241 + $0x80] sm:%s233] %v306
                %v308 = vld [vmem:[%s240 + $0x210] sm:%s233]
                %309 = vst [vmem:[%s241 + $0x84] sm:%s233] %v308
                %v310 = vld [vmem:[%s240 + $0x220] sm:%s233]
                %311 = vst [vmem:[%s241 + $0x88] sm:%s233] %v310
                %v312 = vld [vmem:[%s240 + $0x230] sm:%s233]
                %313 = vst [vmem:[%s241 + $0x8c] sm:%s233] %v312
                %v314 = vld [vmem:[%s240 + $0x240] sm:%s233]
                %315 = vst [vmem:[%s241 + $0x90] sm:%s233] %v314
                %v316 = vld [vmem:[%s240 + $0x250] sm:%s233]
                %317 = vst [vmem:[%s241 + $0x94] sm:%s233] %v316
                %v318 = vld [vmem:[%s240 + $0x260] sm:%s233]
                %319 = vst [vmem:[%s241 + $0x98] sm:%s233] %v318
                %v320 = vld [vmem:[%s240 + $0x270] sm:%s233]
                %321 = vst [vmem:[%s241 + $0x9c] sm:%s233] %v320
                %v322 = vld [vmem:[%s240 + $0x280] sm:%s233]
                %323 = vst [vmem:[%s241 + $0xa0] sm:%s233] %v322
                %v324 = vld [vmem:[%s240 + $0x290] sm:%s233]
                %325 = vst [vmem:[%s241 + $0xa4] sm:%s233] %v324
                %v326 = vld [vmem:[%s240 + $0x2a0] sm:%s233]
                %327 = vst [vmem:[%s241 + $0xa8] sm:%s233] %v326
                %v328 = vld [vmem:[%s240 + $0x2b0] sm:%s233]
                %329 = vst [vmem:[%s241 + $0xac] sm:%s233] %v328
                %v330 = vld [vmem:[%s240 + $0x2c0] sm:%s233]
                %331 = vst [vmem:[%s241 + $0xb0] sm:%s233] %v330
                %v332 = vld [vmem:[%s240 + $0x2d0] sm:%s233]
                %333 = vst [vmem:[%s241 + $0xb4] sm:%s233] %v332
                %v334 = vld [vmem:[%s240 + $0x2e0] sm:%s233]
                %335 = vst [vmem:[%s241 + $0xb8] sm:%s233] %v334
                %v336 = vld [vmem:[%s240 + $0x2f0] sm:%s233]
                %337 = vst [vmem:[%s241 + $0xbc] sm:%s233] %v336
                %v338 = vld [vmem:[%s240 + $0x300] sm:%s233]
                %339 = vst [vmem:[%s241 + $0xc0] sm:%s233] %v338
                %v340 = vld [vmem:[%s240 + $0x310] sm:%s233]
                %341 = vst [vmem:[%s241 + $0xc4] sm:%s233] %v340
                %v342 = vld [vmem:[%s240 + $0x320] sm:%s233]
                %343 = vst [vmem:[%s241 + $0xc8] sm:%s233] %v342
                %v344 = vld [vmem:[%s240 + $0x330] sm:%s233]
                %345 = vst [vmem:[%s241 + $0xcc] sm:%s233] %v344
                %v346 = vld [vmem:[%s240 + $0x340] sm:%s233]
                %347 = vst [vmem:[%s241 + $0xd0] sm:%s233] %v346
                %v348 = vld [vmem:[%s240 + $0x350] sm:%s233]
                %349 = vst [vmem:[%s241 + $0xd4] sm:%s233] %v348
                %v350 = vld [vmem:[%s240 + $0x360] sm:%s233]
                %351 = vst [vmem:[%s241 + $0xd8] sm:%s233] %v350
                %v352 = vld [vmem:[%s240 + $0x370] sm:%s233]
                %353 = vst [vmem:[%s241 + $0xdc] sm:%s233] %v352
                %v354 = vld [vmem:[%s240 + $0x380] sm:%s233]
                %355 = vst [vmem:[%s241 + $0xe0] sm:%s233] %v354
                %v356 = vld [vmem:[%s240 + $0x390] sm:%s233]
                %357 = vst [vmem:[%s241 + $0xe4] sm:%s233] %v356
                %v358 = vld [vmem:[%s240 + $0x3a0] sm:%s233]
                %359 = vst [vmem:[%s241 + $0xe8] sm:%s233] %v358
                %v360 = vld [vmem:[%s240 + $0x3b0] sm:%s233]
                %361 = vst [vmem:[%s241 + $0xec] sm:%s233] %v360
                %v362 = vld [vmem:[%s240 + $0x3c0] sm:%s233]
                %363 = vst [vmem:[%s241 + $0xf0] sm:%s233] %v362
                %v364 = vld [vmem:[%s240 + $0x3d0] sm:%s233]
                %365 = vst [vmem:[%s241 + $0xf4] sm:%s233] %v364
                %v366 = vld [vmem:[%s240 + $0x3e0] sm:%s233]
                %367 = vst [vmem:[%s241 + $0xf8] sm:%s233] %v366
                %v368 = vld [vmem:[%s240 + $0x3f0] sm:%s233]
                %369 = vst [vmem:[%s241 + $0xfc] sm:%s233] %v368
              $region60: #{discriminator_forward.8} parent=54 // loop_footer
                %s239 = sadd.s32 1, %s235
              $region61: #{discriminator_forward.8} parent=54 // loop_footer_branch
                %234 = sbr.rel target = $region57
              $region62: #{discriminator_forward.8} parent=54 // loop_exit
                _
            $region55: #{discriminator_forward.8} parent=46 // pred_fallthru
              _
          $region47: #{discriminator_forward.8} parent=42 // pred_fallthru
            _
          %518 = vnop
        $region43: #{discriminator_forward.8} parent=15 // pred_fallthru
          _
        // Predicated region
        $region81: #{discriminator_forward.8} parent=15 // pred_check
          %p519 = pneg %p96
        $region82: #{discriminator_forward.8} parent=15 // pred_check_branch
          %521 = sbr.rel (%p519) target = $region84
        $region83: #{discriminator_forward.8} parent=15 // pred_region
          %p522 = scmp.lt.s32.totalorder %s17, 3
          %s523 = scalar_select %p522, %s17, 3
          %s524 = scalar_lea.vmem %s2, %s523
        $region84: #{discriminator_forward.8} parent=15 // pred_fallthru
          _
        // Predicated region
        $region85: #{discriminator_forward.8} parent=15 // pred_check
          %p525 = pneg %p122
        $region86: #{discriminator_forward.8} parent=15 // pred_check_branch
          %527 = sbr.rel (%p525) target = $region88
        $region87: #{discriminator_forward.8} parent=15 // pred_region
          %p528 = scmp.lt.s32.totalorder %s17, 3
          %s529 = scalar_select %p528, %s17, 3
          %s530 = scalar_lea.vmem %s3, %s529
        $region88: #{discriminator_forward.8} parent=15 // pred_fallthru
          _
      $region16: #{discriminator_forward.8} parent=5 // pred_fallthru
        _
      %p531 = scmp.le.s32.totalorder 1, %s10
      %p532 = scmp.lt.s32.totalorder %s10, 33
      %p533 = pnand %p531, %p532
      %p534 = pneg %p533
      // Predicated region
      $region89: #{discriminator_forward.8} parent=5 // pred_check
        _
      $region90: #{discriminator_forward.8} parent=5 // pred_check_branch
        %536 = sbr.rel (%p533) target = $region92
      $region91: #{discriminator_forward.8} parent=5 // pred_region
        %s537 = ssub.s32 %s10, 1
        %s538 = sand.u32 %s35, 1
        %s539 = sand.u32 %s35, 1
        %s540 = smul.addr %s539, 64
        %s541 = scalar_lea.vmem [#allocation3], %s540
        // Predicated region
        $region93: #{discriminator_forward.8} parent=91 // pred_check
          %p542 = pneg %p48
        $region94: #{discriminator_forward.8} parent=91 // pred_check_branch
          %544 = sbr.rel (%p542) target = $region96
        $region95: #{discriminator_forward.8} parent=91 // pred_region
          _
        $region96: #{discriminator_forward.8} parent=91 // pred_fallthru
          _
        %s545 = sand.u32 %s63, 1
        %s546 = sand.u32 %s63, 1
        %s547 = smul.addr %s546, 256
        %s548 = scalar_lea.vmem [#allocation4], %s547
        // Predicated region
        $region97: #{discriminator_forward.8} parent=91 // pred_check
          %p549 = pneg %p76
        $region98: #{discriminator_forward.8} parent=91 // pred_check_branch
          %551 = sbr.rel (%p549) target = $region100
        $region99: #{discriminator_forward.8} parent=91 // pred_region
          _
        $region100: #{discriminator_forward.8} parent=91 // pred_fallthru
          _
        %s552 = sand.u32 %s35, 1
        %s553 = sand.u32 %s35, 1
        %s554 = smul.addr %s553, 64
        %s555 = scalar_lea.vmem [#allocation3], %s554
        %p556 = pneg %p48
        %p557 = pneg %p45
        %s558 = sand.u32 %s63, 1
        %s559 = sand.u32 %s63, 1
        %s560 = smul.addr %s559, 256
        %s561 = scalar_lea.vmem [#allocation4], %s560
        %p562 = pneg %p76
        %p563 = pneg %p73
        %p564 = scmp.lt.s32.totalorder %s19, 3
        %s565 = scalar_select %p564, %s19, 3
        %s566 = scalar_lea.vmem %s2, %s565
        %p567 = pneg %p102
        %p568 = pneg %p99
        %p569 = scmp.lt.s32.totalorder %s19, 3
        %s570 = scalar_select %p569, %s19, 3
        %s571 = scalar_lea.vmem %s3, %s570
        %p572 = pneg %p128
        %p573 = pneg %p125
        %p574 = pneg %p154
        %p575 = pneg %p151
        %s576 = sand.u32 %s141, 1
        %s577 = sand.u32 %s141, 1
        %s578 = smul.addr %s577, 32
        %s579 = scalar_lea.vmem [#allocation5], %s578
        %s580 = smul.u32 4, %s20
        %s581 = smul.u32 64, %s20
        %p582 = scmp.lt.s32.totalorder %s19, 3
        %s583 = scalar_select %p582, %s19, 3
        %s584 = scalar_lea.vmem %s2, %s583
        %p585 = scmp.lt.s32.totalorder %s19, 3
        %s586 = scalar_select %p585, %s19, 3
        %s587 = scalar_lea.vmem %s3, %s586
        %p589 = scmp.eq.s32.totalorder %s20, 0
        // Predicated region
        $region101: #{discriminator_forward.8} parent=91 // pred_check
          %p590 = pneg %p589
        $region102: #{discriminator_forward.8} parent=91 // pred_check_branch
          %592 = sbr.rel (%p590) target = $region104
        $region103: #{discriminator_forward.8} parent=91 // pred_region
          %593 = vst [vmem:[#allocation2] sm:$0xff] 0.0
          %594 = vst [vmem:[#allocation2 + $0x8] sm:$0xff] 0.0
          %595 = vst [vmem:[#allocation2 + $0x10] sm:$0xff] 0.0
          %596 = vst [vmem:[#allocation2 + $0x18] sm:$0xff] 0.0
        $region104: #{discriminator_forward.8} parent=91 // pred_fallthru
          _
        %v597 = vld [vmem:[#allocation2] sm:$0xff]
        %v598 = vld [vmem:[#allocation2 + $0x8] sm:$0xff]
        %v599 = vld [vmem:[#allocation2 + $0x10] sm:$0xff]
        %v600 = vld [vmem:[#allocation2 + $0x18] sm:$0xff]
        %v601 = vld [vmem:[%s541] sm:$0xff]
        %v602 = vld [vmem:[%s541 + $0x8] sm:$0xff]
        %v603 = vld [vmem:[%s541 + $0x10] sm:$0xff]
        %v604 = vld [vmem:[%s541 + $0x18] sm:$0xff]
        %v605 = vld [vmem:[%s541 + $0x20] sm:$0xff]
        %v606 = vld [vmem:[%s541 + $0x28] sm:$0xff]
        %v607 = vld [vmem:[%s541 + $0x30] sm:$0xff]
        %v608 = vld [vmem:[%s541 + $0x38] sm:$0xff]
        %v609 = vld [vmem:[%s548] sm:$0xf]
        %v610 = vld [vmem:[%s548 + $0x4] sm:$0xf]
        %v611 = vld [vmem:[%s548 + $0x8] sm:$0xf]
        %v612 = vld [vmem:[%s548 + $0xc] sm:$0xf]
        %v613 = vld [vmem:[%s548 + $0x10] sm:$0xf]
        %v614 = vld [vmem:[%s548 + $0x14] sm:$0xf]
        %v615 = vld [vmem:[%s548 + $0x18] sm:$0xf]
        %v616 = vld [vmem:[%s548 + $0x1c] sm:$0xf]
        %v617 = vld [vmem:[%s548 + $0x20] sm:$0xf]
        %v618 = vld [vmem:[%s548 + $0x24] sm:$0xf]
        %v619 = vld [vmem:[%s548 + $0x28] sm:$0xf]
        %v620 = vld [vmem:[%s548 + $0x2c] sm:$0xf]
        %v621 = vld [vmem:[%s548 + $0x30] sm:$0xf]
        %v622 = vld [vmem:[%s548 + $0x34] sm:$0xf]
        %v623 = vld [vmem:[%s548 + $0x38] sm:$0xf]
        %v624 = vld [vmem:[%s548 + $0x3c] sm:$0xf]
        %v625 = vld [vmem:[%s548 + $0x40] sm:$0xf]
        %v626 = vld [vmem:[%s548 + $0x44] sm:$0xf]
        %v627 = vld [vmem:[%s548 + $0x48] sm:$0xf]
        %v628 = vld [vmem:[%s548 + $0x4c] sm:$0xf]
        %v629 = vld [vmem:[%s548 + $0x50] sm:$0xf]
        %v630 = vld [vmem:[%s548 + $0x54] sm:$0xf]
        %v631 = vld [vmem:[%s548 + $0x58] sm:$0xf]
        %v632 = vld [vmem:[%s548 + $0x5c] sm:$0xf]
        %v633 = vld [vmem:[%s548 + $0x60] sm:$0xf]
        %v634 = vld [vmem:[%s548 + $0x64] sm:$0xf]
        %v635 = vld [vmem:[%s548 + $0x68] sm:$0xf]
        %v636 = vld [vmem:[%s548 + $0x6c] sm:$0xf]
        %v637 = vld [vmem:[%s548 + $0x70] sm:$0xf]
        %v638 = vld [vmem:[%s548 + $0x74] sm:$0xf]
        %v639 = vld [vmem:[%s548 + $0x78] sm:$0xf]
        %v640 = vld [vmem:[%s548 + $0x7c] sm:$0xf]
        %v641 = vld [vmem:[%s548 + $0x80] sm:$0xf]
        %v642 = vld [vmem:[%s548 + $0x84] sm:$0xf]
        %v643 = vld [vmem:[%s548 + $0x88] sm:$0xf]
        %v644 = vld [vmem:[%s548 + $0x8c] sm:$0xf]
        %v645 = vld [vmem:[%s548 + $0x90] sm:$0xf]
        %v646 = vld [vmem:[%s548 + $0x94] sm:$0xf]
        %v647 = vld [vmem:[%s548 + $0x98] sm:$0xf]
        %v648 = vld [vmem:[%s548 + $0x9c] sm:$0xf]
        %v649 = vld [vmem:[%s548 + $0xa0] sm:$0xf]
        %v650 = vld [vmem:[%s548 + $0xa4] sm:$0xf]
        %v651 = vld [vmem:[%s548 + $0xa8] sm:$0xf]
        %v652 = vld [vmem:[%s548 + $0xac] sm:$0xf]
        %v653 = vld [vmem:[%s548 + $0xb0] sm:$0xf]
        %v654 = vld [vmem:[%s548 + $0xb4] sm:$0xf]
        %v655 = vld [vmem:[%s548 + $0xb8] sm:$0xf]
        %v656 = vld [vmem:[%s548 + $0xbc] sm:$0xf]
        %v657 = vld [vmem:[%s548 + $0xc0] sm:$0xf]
        %v658 = vld [vmem:[%s548 + $0xc4] sm:$0xf]
        %v659 = vld [vmem:[%s548 + $0xc8] sm:$0xf]
        %v660 = vld [vmem:[%s548 + $0xcc] sm:$0xf]
        %v661 = vld [vmem:[%s548 + $0xd0] sm:$0xf]
        %v662 = vld [vmem:[%s548 + $0xd4] sm:$0xf]
        %v663 = vld [vmem:[%s548 + $0xd8] sm:$0xf]
        %v664 = vld [vmem:[%s548 + $0xdc] sm:$0xf]
        %v665 = vld [vmem:[%s548 + $0xe0] sm:$0xf]
        %v666 = vld [vmem:[%s548 + $0xe4] sm:$0xf]
        %v667 = vld [vmem:[%s548 + $0xe8] sm:$0xf]
        %v668 = vld [vmem:[%s548 + $0xec] sm:$0xf]
        %v669 = vld [vmem:[%s548 + $0xf0] sm:$0xf]
        %v670 = vld [vmem:[%s548 + $0xf4] sm:$0xf]
        %v671 = vld [vmem:[%s548 + $0xf8] sm:$0xf]
        %v672 = vld [vmem:[%s548 + $0xfc] sm:$0xf]
        %v681 = vunpack.c.l.b16 %v601
        %v682 = vunpack.c.h.b16 %v601
        %v683 = vunpack.c.l.b16 %v602
        %v684 = vunpack.c.h.b16 %v602
        %v685 = vunpack.c.l.b16 %v603
        %v686 = vunpack.c.h.b16 %v603
        %v687 = vunpack.c.l.b16 %v604
        %v688 = vunpack.c.h.b16 %v604
        %v689 = vunpack.c.l.b16 %v605
        %v690 = vunpack.c.h.b16 %v605
        %v691 = vunpack.c.l.b16 %v606
        %v692 = vunpack.c.h.b16 %v606
        %v693 = vunpack.c.l.b16 %v607
        %v694 = vunpack.c.h.b16 %v607
        %v695 = vunpack.c.l.b16 %v608
        %v696 = vunpack.c.h.b16 %v608
        %v697 = vpack.c.b16 %v685, %v681
        %v698 = vpack.c.b16 %v686, %v682
        %v699 = vpack.c.b16 %v687, %v683
        %v700 = vpack.c.b16 %v688, %v684
        %v701 = vpack.c.b16 %v693, %v689
        %v702 = vpack.c.b16 %v694, %v690
        %v703 = vpack.c.b16 %v695, %v691
        %v704 = vpack.c.b16 %v696, %v692
        %v777 = vunpack.c.l.b16 %v609
        %v778 = vunpack.c.l.b16 %v610
        %v779 = vunpack.c.l.b16 %v611
        %v780 = vunpack.c.l.b16 %v612
        %v781 = vunpack.c.l.b16 %v613
        %v782 = vunpack.c.l.b16 %v614
        %v783 = vunpack.c.l.b16 %v615
        %v784 = vunpack.c.l.b16 %v616
        %v785 = vunpack.c.l.b16 %v617
        %v786 = vunpack.c.l.b16 %v618
        %v787 = vunpack.c.l.b16 %v619
        %v788 = vunpack.c.l.b16 %v620
        %v789 = vunpack.c.l.b16 %v621
        %v790 = vunpack.c.l.b16 %v622
        %v791 = vunpack.c.l.b16 %v623
        %v792 = vunpack.c.l.b16 %v624
        %v793 = vunpack.c.l.b16 %v625
        %v794 = vunpack.c.l.b16 %v626
        %v795 = vunpack.c.l.b16 %v627
        %v796 = vunpack.c.l.b16 %v628
        %v797 = vunpack.c.l.b16 %v629
        %v798 = vunpack.c.l.b16 %v630
        %v799 = vunpack.c.l.b16 %v631
        %v800 = vunpack.c.l.b16 %v632
        %v801 = vunpack.c.l.b16 %v633
        %v802 = vunpack.c.l.b16 %v634
        %v803 = vunpack.c.l.b16 %v635
        %v804 = vunpack.c.l.b16 %v636
        %v805 = vunpack.c.l.b16 %v637
        %v806 = vunpack.c.l.b16 %v638
        %v807 = vunpack.c.l.b16 %v639
        %v808 = vunpack.c.l.b16 %v640
        %v809 = vunpack.c.l.b16 %v641
        %v810 = vunpack.c.l.b16 %v642
        %v811 = vunpack.c.l.b16 %v643
        %v812 = vunpack.c.l.b16 %v644
        %v813 = vunpack.c.l.b16 %v645
        %v814 = vunpack.c.l.b16 %v646
        %v815 = vunpack.c.l.b16 %v647
        %v816 = vunpack.c.l.b16 %v648
        %v817 = vunpack.c.l.b16 %v649
        %v818 = vunpack.c.l.b16 %v650
        %v819 = vunpack.c.l.b16 %v651
        %v820 = vunpack.c.l.b16 %v652
        %v821 = vunpack.c.l.b16 %v653
        %v822 = vunpack.c.l.b16 %v654
        %v823 = vunpack.c.l.b16 %v655
        %v824 = vunpack.c.l.b16 %v656
        %v825 = vunpack.c.l.b16 %v657
        %v826 = vunpack.c.l.b16 %v658
        %v827 = vunpack.c.l.b16 %v659
        %v828 = vunpack.c.l.b16 %v660
        %v829 = vunpack.c.l.b16 %v661
        %v830 = vunpack.c.l.b16 %v662
        %v831 = vunpack.c.l.b16 %v663
        %v832 = vunpack.c.l.b16 %v664
        %v833 = vunpack.c.l.b16 %v665
        %v834 = vunpack.c.l.b16 %v666
        %v835 = vunpack.c.l.b16 %v667
        %v836 = vunpack.c.l.b16 %v668
        %v837 = vunpack.c.l.b16 %v669
        %v838 = vunpack.c.l.b16 %v670
        %v839 = vunpack.c.l.b16 %v671
        %v840 = vunpack.c.l.b16 %v672
        %v841 = vpack.c.b16 %v778, %v777
        %v842 = vpack.c.b16 %v780, %v779
        %v843 = vpack.c.b16 %v782, %v781
        %v844 = vpack.c.b16 %v784, %v783
        %v845 = vpack.c.b16 %v786, %v785
        %v846 = vpack.c.b16 %v788, %v787
        %v847 = vpack.c.b16 %v790, %v789
        %v848 = vpack.c.b16 %v792, %v791
        %v849 = vpack.c.b16 %v794, %v793
        %v850 = vpack.c.b16 %v796, %v795
        %v851 = vpack.c.b16 %v798, %v797
        %v852 = vpack.c.b16 %v800, %v799
        %v853 = vpack.c.b16 %v802, %v801
        %v854 = vpack.c.b16 %v804, %v803
        %v855 = vpack.c.b16 %v806, %v805
        %v856 = vpack.c.b16 %v808, %v807
        %v857 = vpack.c.b16 %v810, %v809
        %v858 = vpack.c.b16 %v812, %v811
        %v859 = vpack.c.b16 %v814, %v813
        %v860 = vpack.c.b16 %v816, %v815
        %v861 = vpack.c.b16 %v818, %v817
        %v862 = vpack.c.b16 %v820, %v819
        %v863 = vpack.c.b16 %v822, %v821
        %v864 = vpack.c.b16 %v824, %v823
        %v865 = vpack.c.b16 %v826, %v825
        %v866 = vpack.c.b16 %v828, %v827
        %v867 = vpack.c.b16 %v830, %v829
        %v868 = vpack.c.b16 %v832, %v831
        %v869 = vpack.c.b16 %v834, %v833
        %v870 = vpack.c.b16 %v836, %v835
        %v871 = vpack.c.b16 %v838, %v837
        %v872 = vpack.c.b16 %v840, %v839
        %905 = vmatprep.subr.bf16.mxu0 0
        %906 = vmatpush1.bf16.msra.mxu0 %v848
        %907 = vmatprep.subr.bf16.mxu0 0
        %908 = vmatpush1.bf16.msra.mxu0 %v847
        %909 = vmatprep.subr.bf16.mxu0 0
        %910 = vmatpush1.bf16.msra.mxu0 %v846
        %911 = vmatprep.subr.bf16.mxu0 0
        %912 = vmatpush1.bf16.msra.mxu0 %v845
        %913 = vmatprep.subr.bf16.mxu0 0
        %914 = vmatpush1.bf16.msra.mxu0 %v844
        %915 = vmatprep.subr.bf16.mxu0 0
        %916 = vmatpush1.bf16.msra.mxu0 %v843
        %917 = vmatprep.subr.bf16.mxu0 0
        %918 = vmatpush1.bf16.msra.mxu0 %v842
        %919 = vmatprep.subr.bf16.mxu0 0
        %920 = vmatpush1.bf16.msra.mxu0 %v841
        %921 = vmatprep.subr.bf16.mxu0 0
        %922 = vmatpush2.bf16.msra.mxu0 %v856
        %923 = vmatprep.subr.bf16.mxu0 0
        %924 = vmatpush2.bf16.msra.mxu0 %v855
        %925 = vmatprep.subr.bf16.mxu0 0
        %926 = vmatpush2.bf16.msra.mxu0 %v854
        %927 = vmatprep.subr.bf16.mxu0 0
        %928 = vmatpush2.bf16.msra.mxu0 %v853
        %929 = vmatprep.subr.bf16.mxu0 0
        %930 = vmatpush2.bf16.msra.mxu0 %v852
        %931 = vmatprep.subr.bf16.mxu0 0
        %932 = vmatpush2.bf16.msra.mxu0 %v851
        %933 = vmatprep.subr.bf16.mxu0 0
        %934 = vmatpush2.bf16.msra.mxu0 %v850
        %935 = vmatprep.subr.bf16.mxu0 0
        %936 = vmatpush2.bf16.msra.mxu0 %v849
        %937 = vmatprep.mubr.bf16.mxu0 %v698
        %938 = vmatmul.mubr.bf16.gmra.mxu0 %v697
        %v939 = vpop.f32.mrf.mxu0
        %v940 = vadd.f32 0.0, %v939
        %v941 = vpop.f32.mrf.mxu0
        %v942 = vpop.f32.mrf.mxu0
        %v943 = vadd.f32 0.0, %v942
        %v944 = vpop.f32.mrf.mxu0
        %945 = vmatprep.mubr.bf16.mxu0 %v702
        %946 = vmatmul.mubr.bf16.gmra.mxu0 %v701
        %v947 = vpop.f32.mrf.mxu0
        %v948 = vadd.f32 0.0, %v947
        %v949 = vpop.f32.mrf.mxu0
        %v950 = vpop.f32.mrf.mxu0
        %v951 = vadd.f32 0.0, %v950
        %v952 = vpop.f32.mrf.mxu0
        %953 = vdwg.mxu0
        %954 = vmatprep.subr.bf16.mxu0 0
        %955 = vmatpush1.bf16.msra.mxu0 %v864
        %956 = vmatprep.subr.bf16.mxu0 0
        %957 = vmatpush1.bf16.msra.mxu0 %v863
        %958 = vmatprep.subr.bf16.mxu0 0
        %959 = vmatpush1.bf16.msra.mxu0 %v862
        %960 = vmatprep.subr.bf16.mxu0 0
        %961 = vmatpush1.bf16.msra.mxu0 %v861
        %962 = vmatprep.subr.bf16.mxu0 0
        %963 = vmatpush1.bf16.msra.mxu0 %v860
        %964 = vmatprep.subr.bf16.mxu0 0
        %965 = vmatpush1.bf16.msra.mxu0 %v859
        %966 = vmatprep.subr.bf16.mxu0 0
        %967 = vmatpush1.bf16.msra.mxu0 %v858
        %968 = vmatprep.subr.bf16.mxu0 0
        %969 = vmatpush1.bf16.msra.mxu0 %v857
        %970 = vmatprep.subr.bf16.mxu0 0
        %971 = vmatpush2.bf16.msra.mxu0 %v872
        %972 = vmatprep.subr.bf16.mxu0 0
        %973 = vmatpush2.bf16.msra.mxu0 %v871
        %974 = vmatprep.subr.bf16.mxu0 0
        %975 = vmatpush2.bf16.msra.mxu0 %v870
        %976 = vmatprep.subr.bf16.mxu0 0
        %977 = vmatpush2.bf16.msra.mxu0 %v869
        %978 = vmatprep.subr.bf16.mxu0 0
        %979 = vmatpush2.bf16.msra.mxu0 %v868
        %980 = vmatprep.subr.bf16.mxu0 0
        %981 = vmatpush2.bf16.msra.mxu0 %v867
        %982 = vmatprep.subr.bf16.mxu0 0
        %983 = vmatpush2.bf16.msra.mxu0 %v866
        %984 = vmatprep.subr.bf16.mxu0 0
        %985 = vmatpush2.bf16.msra.mxu0 %v865
        %986 = vmatprep.mubr.bf16.mxu0 %v700
        %987 = vmatmul.mubr.bf16.gmra.mxu0 %v699
        %v988 = vpop.f32.mrf.mxu0
        %v989 = vadd.f32 %v940, %v988
        %v990 = vpop.f32.mrf.mxu0
        %v991 = vpop.f32.mrf.mxu0
        %v992 = vadd.f32 %v943, %v991
        %v993 = vpop.f32.mrf.mxu0
        %994 = vmatprep.mubr.bf16.mxu0 %v704
        %995 = vmatmul.mubr.bf16.gmra.mxu0 %v703
        %v996 = vpop.f32.mrf.mxu0
        %v997 = vadd.f32 %v948, %v996
        %v998 = vpop.f32.mrf.mxu0
        %v999 = vpop.f32.mrf.mxu0
        %v1000 = vadd.f32 %v951, %v999
        %v1001 = vpop.f32.mrf.mxu0
        %1002 = vdwg.mxu0
        %v1003 = vadd.f32 %v597, %v989
        %v1004 = vadd.f32 %v598, %v992
        %v1005 = vadd.f32 %v599, %v997
        %v1006 = vadd.f32 %v600, %v1000
        %1007 = vst [vmem:[#allocation2] sm:$0xff] %v1003
        %1008 = vst [vmem:[#allocation2 + $0x8] sm:$0xff] %v1004
        %1009 = vst [vmem:[#allocation2 + $0x10] sm:$0xff] %v1005
        %1010 = vst [vmem:[#allocation2 + $0x18] sm:$0xff] %v1006
        %p1011 = scmp.eq.s32.totalorder %s20, 7
        // Predicated region
        $region105: #{discriminator_forward.8} parent=91 // pred_check
          %p1012 = pneg %p1011
        $region106: #{discriminator_forward.8} parent=91 // pred_check_branch
          %1014 = sbr.rel (%p1012) target = $region108
        $region107: #{discriminator_forward.8} parent=91 // pred_region
          %v1015 = vld [vmem:[#allocation2] sm:$0xff]
          %v1016 = vld [vmem:[#allocation2 + $0x8] sm:$0xff]
          %v1017 = vld [vmem:[#allocation2 + $0x10] sm:$0xff]
          %v1018 = vld [vmem:[#allocation2 + $0x18] sm:$0xff]
          %v1019 = vadd.f32 %v1015, %v1016
          %v1020 = vadd.f32 %v1019, %v1017
          %v1021 = vadd.f32 %v1020, %v1018
          %v1022 = vrot.slane %v1021, 4
          %v1023 = vadd.f32 %v1021, %v1022
          %v1024 = vrot.slane %v1023, 2
          %v1025 = vadd.f32 %v1023, %v1024
          %v1026 = vrot.slane %v1025, 1
          %v1027 = vadd.f32 %v1025, %v1026
          %v1028 = vmul.f32 %v1027, 0.03125
          %v1029 = vmul.f32 %v1015, %v1015
          %v1030 = vmul.f32 %v1016, %v1016
          %v1031 = vmul.f32 %v1017, %v1017
          %v1032 = vmul.f32 %v1018, %v1018
          %v1033 = vadd.f32 %v1029, %v1030
          %v1034 = vadd.f32 %v1033, %v1031
          %v1035 = vadd.f32 %v1034, %v1032
          %v1036 = vrot.slane %v1035, 4
          %v1037 = vadd.f32 %v1035, %v1036
          %v1038 = vrot.slane %v1037, 2
          %v1039 = vadd.f32 %v1037, %v1038
          %v1040 = vrot.slane %v1039, 1
          %v1041 = vadd.f32 %v1039, %v1040
          %v1042 = vmul.f32 %v1041, 0.03125
          %v1043 = vmul.f32 %v1028, %v1028
          %v1044 = vsub.f32 %v1042, %v1043
          %v1045 = vsub.f32 %v1015, %v1028
          %v1046 = vsub.f32 %v1016, %v1028
          %v1047 = vsub.f32 %v1017, %v1028
          %v1048 = vsub.f32 %v1018, %v1028
          %v1049 = vadd.f32 %v1044, 1e-05
          %v1050 = vrsqrt.pop %v1049
          %v1051 = vmul.f32 %v1045, %v1050
          %v1052 = vmul.f32 %v1046, %v1050
          %v1053 = vmul.f32 %v1047, %v1050
          %v1054 = vmul.f32 %v1048, %v1050
          %v1055 = vld [vmem:[%s584] sm:$0x1]
          %v1057 = vlaneseq
          %v1058 = vshrl.u32 %v1057, 7
          %v1059 = vsub.s32 0, %v1058
          %v1060 = vrot.slane %v1055, %v1059
          %v1062 = vmul.f32 %v1051, %v1060
          %v1063 = vmul.f32 %v1052, %v1060
          %v1064 = vmul.f32 %v1053, %v1060
          %v1065 = vmul.f32 %v1054, %v1060
          %v1066 = vld [vmem:[%s587] sm:$0x1]
          %v1068 = vlaneseq
          %v1069 = vshrl.u32 %v1068, 7
          %v1070 = vsub.s32 0, %v1069
          %v1071 = vrot.slane %v1066, %v1070
          %v1073 = vadd.f32 %v1062, %v1071
          %v1074 = vadd.f32 %v1063, %v1071
          %v1075 = vadd.f32 %v1064, %v1071
          %v1076 = vadd.f32 %v1065, %v1071
          %vm1077 = vcmp.ge.f32.partialorder %v1073, 0.0
          %vm1078 = vcmp.ge.f32.partialorder %v1074, 0.0
          %vm1079 = vcmp.ge.f32.partialorder %v1075, 0.0
          %vm1080 = vcmp.ge.f32.partialorder %v1076, 0.0
          %v1081 = vmul.f32 %v1073, 0.2
          %v1082 = vmul.f32 %v1074, 0.2
          %v1083 = vmul.f32 %v1075, 0.2
          %v1084 = vmul.f32 %v1076, 0.2
          %v1085 = vsel %vm1077, %v1073, %v1081
          %v1086 = vsel %vm1078, %v1074, %v1082
          %v1087 = vsel %vm1079, %v1075, %v1083
          %v1088 = vsel %vm1080, %v1076, %v1084
          %1089 = vst [vmem:[%s579] sm:$0xff] %v1085
          %1090 = vst [vmem:[%s579 + $0x8] sm:$0xff] %v1086
          %1091 = vst [vmem:[%s579 + $0x10] sm:$0xff] %v1087
          %1092 = vst [vmem:[%s579 + $0x18] sm:$0xff] %v1088
        $region108: #{discriminator_forward.8} parent=91 // pred_fallthru
          _
        %s1093 = sand.u32 %s141, 1
        %s1094 = sand.u32 %s141, 1
        %s1095 = smul.addr %s1094, 32
        %s1096 = scalar_lea.vmem [#allocation5], %s1095
        // Predicated region
        $region109: #{discriminator_forward.8} parent=91 // pred_check
          %p1097 = pneg %p151
        $region110: #{discriminator_forward.8} parent=91 // pred_check_branch
          %1099 = sbr.rel (%p1097) target = $region112
        $region111: #{discriminator_forward.8} parent=91 // pred_region
          %s1100 = smul.addr %s19, 8
          %s1101 = scalar_lea.vmem %s4, %s1100
          // Predicated region
          $region113: #{discriminator_forward.8} parent=111 // pred_check
            _
          $region114: #{discriminator_forward.8} parent=111 // pred_check_branch
            %1103 = sbr.rel (0) target = $region116
          $region115: #{discriminator_forward.8} parent=111 // pred_region
            // Predicated region
            $region117: #{discriminator_forward.8} parent=115 // pred_check
              _
            $region118: #{discriminator_forward.8} parent=115 // pred_check_branch
              %1105 = sbr.rel (0) target = $region120
            $region119: #{discriminator_forward.8} parent=115 // pred_region
              // Predicated region
              $region132: #{discriminator_forward.8} parent=119 // pred_check
                _
              $region133: #{discriminator_forward.8} parent=119 // pred_check_branch
                %1127 = sbr.rel (0) target = $region135
              $region134: #{discriminator_forward.8} parent=119 // pred_region
                loop: start=0, step=1, limit=1
                $region136: #{discriminator_forward.8} parent=134 // loop_pre_header
                  _
                $region137: #{discriminator_forward.8} parent=134 // loop_header
                  %s1129 = sphi 0, %s1133
                  %p1130 = scmp.ge.s32.totalorder %s1129, 1
                  %s1134 = sphi %s1096, %s1096
                  %s1135 = sphi %s1101, %s1101
                $region138: #{discriminator_forward.8} parent=134 // loop_header_branch
                  %1132 = sbr.rel (%p1130) target = $region142
                $region139: #{discriminator_forward.8} parent=134 // loop_body
                  %v1136 = vld [vmem:[%s1134] sm:$0xff]
                  %1137 = vst [vmem:[%s1135] sm:$0xff] %v1136
                  %v1138 = vld [vmem:[%s1134 + $0x8] sm:$0xff]
                  %1139 = vst [vmem:[%s1135 + $0x20] sm:$0xff] %v1138
                  %v1140 = vld [vmem:[%s1134 + $0x10] sm:$0xff]
                  %1141 = vst [vmem:[%s1135 + $0x40] sm:$0xff] %v1140
                  %v1142 = vld [vmem:[%s1134 + $0x18] sm:$0xff]
                  %1143 = vst [vmem:[%s1135 + $0x60] sm:$0xff] %v1142
                $region140: #{discriminator_forward.8} parent=134 // loop_footer
                  %s1133 = sadd.s32 1, %s1129
                $region141: #{discriminator_forward.8} parent=134 // loop_footer_branch
                  %1128 = sbr.rel target = $region137
                $region142: #{discriminator_forward.8} parent=134 // loop_exit
                  _
              $region135: #{discriminator_forward.8} parent=119 // pred_fallthru
                _
              // Predicated region
              $region143: #{discriminator_forward.8} parent=119 // pred_check
                _
              $region144: #{discriminator_forward.8} parent=119 // pred_check_branch
                %1145 = sbr.rel target = $region146
              $region145: #{discriminator_forward.8} parent=119 // pred_region
                _
              $region146: #{discriminator_forward.8} parent=119 // pred_fallthru
                _
            $region120: #{discriminator_forward.8} parent=115 // pred_fallthru
              _
            // Predicated region
            $region121: #{discriminator_forward.8} parent=115 // pred_check
              _
            $region122: #{discriminator_forward.8} parent=115 // pred_check_branch
              %1107 = sbr.rel target = $region124
            $region123: #{discriminator_forward.8} parent=115 // pred_region
              %s1109 = ssub.s32 256, 1
              loop: start=0, step=1, limit=1
              $region125: #{discriminator_forward.8} parent=123 // loop_pre_header
                _
              $region126: #{discriminator_forward.8} parent=123 // loop_header
                %s1111 = sphi 0, %s1115
                %p1112 = scmp.ge.s32.totalorder %s1111, 1
                %s1116 = sphi %s1096, %s1096
                %s1117 = sphi %s1101, %s1101
              $region127: #{discriminator_forward.8} parent=123 // loop_header_branch
                %1114 = sbr.rel (%p1112) target = $region131
              $region128: #{discriminator_forward.8} parent=123 // loop_body
                %v1118 = vld [vmem:[%s1116] sm:%s1109]
                %1119 = vst [vmem:[%s1117] sm:%s1109] %v1118
                %v1120 = vld [vmem:[%s1116 + $0x8] sm:%s1109]
                %1121 = vst [vmem:[%s1117 + $0x20] sm:%s1109] %v1120
                %v1122 = vld [vmem:[%s1116 + $0x10] sm:%s1109]
                %1123 = vst [vmem:[%s1117 + $0x40] sm:%s1109] %v1122
                %v1124 = vld [vmem:[%s1116 + $0x18] sm:%s1109]
                %1125 = vst [vmem:[%s1117 + $0x60] sm:%s1109] %v1124
              $region129: #{discriminator_forward.8} parent=123 // loop_footer
                %s1115 = sadd.s32 1, %s1111
              $region130: #{discriminator_forward.8} parent=123 // loop_footer_branch
                %1110 = sbr.rel target = $region126
              $region131: #{discriminator_forward.8} parent=123 // loop_exit
                _
            $region124: #{discriminator_forward.8} parent=115 // pred_fallthru
              _
          $region116: #{discriminator_forward.8} parent=111 // pred_fallthru
            _
          %1146 = vnop
        $region112: #{discriminator_forward.8} parent=91 // pred_fallthru
          _
      $region92: #{discriminator_forward.8} parent=5 // pred_fallthru
        _
      %p1147 = scmp.le.s32.totalorder 2, %s10
      // Predicated region
      $region147: #{discriminator_forward.8} parent=5 // pred_check
        %p1148 = pneg %p1147
      $region148: #{discriminator_forward.8} parent=5 // pred_check_branch
        %1150 = sbr.rel (%p1148) target = $region150
      $region149: #{discriminator_forward.8} parent=5 // pred_region
        %s1151 = ssub.s32 %s10, 2
        // Predicated region
        $region151: #{discriminator_forward.8} parent=149 // pred_check
          %p1152 = pneg %p157
        $region152: #{discriminator_forward.8} parent=149 // pred_check_branch
          %1154 = sbr.rel (%p1152) target = $region154
        $region153: #{discriminator_forward.8} parent=149 // pred_region
          %s1155 = sand.u32 %s142, 1
          %s1156 = sand.u32 %s142, 1
          %s1157 = smul.addr %s1156, 32
          %s1158 = scalar_lea.vmem [#allocation5], %s1157
        $region154: #{discriminator_forward.8} parent=149 // pred_fallthru
          _
      $region150: #{discriminator_forward.8} parent=5 // pred_fallthru
        _
    $region6: #{discriminator_forward.8} parent=1 // loop_footer
      %s14 = sadd.s32 1, %s10
    $region7: #{discriminator_forward.8} parent=1 // loop_footer_branch
      %9 = sbr.rel target = $region3
    $region8: #{discriminator_forward.8} parent=1 // loop_exit
      _

// kernel: discriminator_forward.9
$region0: #{discriminator_forward.9}
  #allocation0 [shape = 'u32[]', space=smem, size = 0x4, offset = 0x4, fixed_abs, tag = 'smem constant byte address 0x4 - core index']
  #allocation1 [shape = 'u32[144,128]{1,0:T(1,128)}', space=vmem, size = 0x12000, scoped, tag = 'internal scratch']
  #allocation2 [shape = 'f32[50,128]{1,0:T(8,128)}', space=vmem, size = 0x7000, scoped, tag = 'scratch operand']
  %s0 = inlined_call_operand.vmem [shape: bf16[50,8192], index: 0, kind: input, shape index: {}]
  %s1 = inlined_call_operand.vmem [shape: bf16[8192,128], index: 1, kind: input, shape index: {}]
  %s2 = inlined_call_operand.vmem [shape: f32[50,128], index: 2, kind: output, shape index: {}]
  %s3 = sld [smem:[#allocation0]]
  $region72: #{discriminator_forward.9} parent=0
    _
  %s5 = ssub.s32 1, %s3
  %s6 = scalar_select 0, %s5, %s3
  $region1: #{discriminator_forward.9} parent=0
    #allocation3 [shape = 'u8[114688]{0}', space=vmem, size = 0x1c000, scoped, tag = 'input window, operand 0']
    loop: start=0, step=1, limit=18
    $region2: #{discriminator_forward.9} parent=1 // loop_pre_header
      _
    $region3: #{discriminator_forward.9} parent=1 // loop_header
      %s8 = sphi 0, %s12
      %p9 = scmp.ge.s32.totalorder %s8, 18
      %s15 = sphi 0, %s27
      %s16 = sphi 0, %s23
      %s17 = sphi 0, %s15
      %s18 = sphi 0, %s16
      %s19 = sphi 0, %s17
      %s20 = sphi 0, %s18
      %s30 = sphi 0, %s32
      %s33 = sphi 0, %s30
      %s34 = sphi 0, %s33
      %s50 = sphi 0, %s34
      %s58 = sphi 0, %s60
      %s61 = sphi 0, %s58
      %s62 = sphi 0, %s61
      %s78 = sphi 0, %s62
      %s84 = sphi 0, %s86
      %s87 = sphi 0, %s84
      %s88 = sphi 0, %s87
      %s104 = sphi 0, %s88
    $region4: #{discriminator_forward.9} parent=1 // loop_header_branch
      %11 = sbr.rel (%p9) target = $region8
    $region5: #{discriminator_forward.9} parent=1 // loop_body
      %s13 = ssub.s32 %s8, 1
      %s14 = ssub.s32 %s8, 2
      %s21 = sadd.s32 1, %s16
      %p22 = scmp.ge.s32.totalorder %s21, 16
      %s23 = scalar_select %p22, 0, %s21
      %s24 = sadd.s32 1, %s15
      %s25 = scalar_select %p22, %s24, %s15
      %p26 = scmp.ge.s32.totalorder %s25, 1
      %s27 = scalar_select %p26, 0, %s25
      %s28 = ssub.s32 %s16, %s23
      %p29 = scmp.eq.s32.totalorder %s28, 0
      %s31 = sadd.s32 %s30, 1
      %s32 = scalar_select %p29, %s30, %s31
      %p35 = pneg %p29
      %p36 = scmp.eq.s32.totalorder %s8, 15
      %p37 = por %p35, %p36
      %p38 = scmp.ne.s32.totalorder %s30, %s33
      %p39 = scmp.eq.s32.totalorder %s8, 0
      %p40 = por %p38, %p39
      %p41 = scmp.ne.s32.totalorder %s30, %s33
      %p42 = scmp.eq.s32.totalorder %s13, 15
      %p43 = por %p41, %p42
      %p44 = scmp.ne.s32.totalorder %s33, %s34
      %p45 = scmp.eq.s32.totalorder %s13, 0
      %p46 = por %p44, %p45
      %p47 = scmp.ne.s32.totalorder %s33, %s34
      %p48 = scmp.eq.s32.totalorder %s14, 15
      %p49 = por %p47, %p48
      %p51 = scmp.ne.s32.totalorder %s34, %s50
      %p52 = scmp.eq.s32.totalorder %s14, 0
      %p53 = por %p51, %p52
      %s54 = ssub.s32 %s16, %s23
      %s55 = ssub.s32 %s15, %s27
      %s56 = sor.u32 %s54, %s55
      %p57 = scmp.eq.s32.totalorder %s56, 0
      %s59 = sadd.s32 %s58, 1
      %s60 = scalar_select %p57, %s58, %s59
      %p63 = pneg %p57
      %p64 = scmp.eq.s32.totalorder %s8, 15
      %p65 = por %p63, %p64
      %p66 = scmp.ne.s32.totalorder %s58, %s61
      %p67 = scmp.eq.s32.totalorder %s8, 0
      %p68 = por %p66, %p67
      %p69 = scmp.ne.s32.totalorder %s58, %s61
      %p70 = scmp.eq.s32.totalorder %s13, 15
      %p71 = por %p69, %p70
      %p72 = scmp.ne.s32.totalorder %s61, %s62
      %p73 = scmp.eq.s32.totalorder %s13, 0
      %p74 = por %p72, %p73
      %p75 = scmp.ne.s32.totalorder %s61, %s62
      %p76 = scmp.eq.s32.totalorder %s14, 15
      %p77 = por %p75, %p76
      %p79 = scmp.ne.s32.totalorder %s62, %s78
      %p80 = scmp.eq.s32.totalorder %s14, 0
      %p81 = por %p79, %p80
      %s82 = ssub.s32 %s15, %s27
      %p83 = scmp.eq.s32.totalorder %s82, 0
      %s85 = sadd.s32 %s84, 1
      %s86 = scalar_select %p83, %s84, %s85
      %p89 = pneg %p83
      %p90 = scmp.eq.s32.totalorder %s8, 15
      %p91 = por %p89, %p90
      %p92 = scmp.ne.s32.totalorder %s84, %s87
      %p93 = scmp.eq.s32.totalorder %s8, 0
      %p94 = por %p92, %p93
      %p95 = scmp.ne.s32.totalorder %s84, %s87
      %p96 = scmp.eq.s32.totalorder %s13, 15
      %p97 = por %p95, %p96
      %p98 = scmp.ne.s32.totalorder %s87, %s88
      %p99 = scmp.eq.s32.totalorder %s13, 0
      %p100 = por %p98, %p99
      %p101 = scmp.ne.s32.totalorder %s87, %s88
      %p102 = scmp.eq.s32.totalorder %s14, 15
      %p103 = por %p101, %p102
      %p105 = scmp.ne.s32.totalorder %s88, %s104
      %p106 = scmp.eq.s32.totalorder %s14, 0
      %p107 = por %p105, %p106
      %p108 = scmp.le.s32.totalorder 1, %s8
      %p109 = scmp.lt.s32.totalorder %s8, 17
      %p110 = pnand %p108, %p109
      %p111 = pneg %p110
      // Predicated region
      $region9: #{discriminator_forward.9} parent=5 // pred_check
        _
      $region10: #{discriminator_forward.9} parent=5 // pred_check_branch
        %113 = sbr.rel (%p110) target = $region12
      $region11: #{discriminator_forward.9} parent=5 // pred_region
        %s114 = ssub.s32 %s8, 1
      $region12: #{discriminator_forward.9} parent=5 // pred_fallthru
        _
      %p115 = scmp.lt.s32.totalorder %s8, 16
      // Predicated region
      $region13: #{discriminator_forward.9} parent=5 // pred_check
        %p116 = pneg %p115
      $region14: #{discriminator_forward.9} parent=5 // pred_check_branch
        %118 = sbr.rel (%p116) target = $region16
      $region15: #{discriminator_forward.9} parent=5 // pred_region
        // Predicated region
        $region17: #{discriminator_forward.9} parent=15 // pred_check
          %p119 = pneg %p40
        $region18: #{discriminator_forward.9} parent=15 // pred_check_branch
          %121 = sbr.rel (%p119) target = $region20
        $region19: #{discriminator_forward.9} parent=15 // pred_region
          %s122 = sand.u32 %s30, 1
          %s123 = sand.u32 %s30, 1
          %s124 = smul.addr %s123, 112
          %s125 = scalar_lea.vmem [#allocation3], %s124
          %s126 = smul.u32 4, %s16
          %s127 = smul.addr %s126, 4
          %s128 = scalar_lea.vmem %s0, %s127
          // Predicated region
          $region21: #{discriminator_forward.9} parent=19 // pred_check
            _
          $region22: #{discriminator_forward.9} parent=19 // pred_check_branch
            %130 = sbr.rel (0) target = $region24
          $region23: #{discriminator_forward.9} parent=19 // pred_region
            // Predicated region
            $region25: #{discriminator_forward.9} parent=23 // pred_check
              _
            $region26: #{discriminator_forward.9} parent=23 // pred_check_branch
              %132 = sbr.rel (0) target = $region28
            $region27: #{discriminator_forward.9} parent=23 // pred_region
              loop: start=0, step=1, limit=1
              $region29: #{discriminator_forward.9} parent=27 // loop_pre_header
                _
              $region30: #{discriminator_forward.9} parent=27 // loop_header
                %s134 = sphi 0, %s138
                %p135 = scmp.ge.s32.totalorder %s134, 1
                %s139 = sphi %s128, %s128
                %s140 = sphi %s125, %s125
              $region31: #{discriminator_forward.9} parent=27 // loop_header_branch
                %137 = sbr.rel (%p135) target = $region35
              $region32: #{discriminator_forward.9} parent=27 // loop_body
                %v141 = vld [vmem:[%s139] sm:$0xff]
                %142 = vst [vmem:[%s140] sm:$0xff] %v141
                %v143 = vld [vmem:[%s139 + $0x8] sm:$0xff]
                %144 = vst [vmem:[%s140 + $0x8] sm:$0xff] %v143
                %v145 = vld [vmem:[%s139 + $0x100] sm:$0xff]
                %146 = vst [vmem:[%s140 + $0x10] sm:$0xff] %v145
                %v147 = vld [vmem:[%s139 + $0x108] sm:$0xff]
                %148 = vst [vmem:[%s140 + $0x18] sm:$0xff] %v147
                %v149 = vld [vmem:[%s139 + $0x200] sm:$0xff]
                %150 = vst [vmem:[%s140 + $0x20] sm:$0xff] %v149
                %v151 = vld [vmem:[%s139 + $0x208] sm:$0xff]
                %152 = vst [vmem:[%s140 + $0x28] sm:$0xff] %v151
                %v153 = vld [vmem:[%s139 + $0x300] sm:$0xff]
                %154 = vst [vmem:[%s140 + $0x30] sm:$0xff] %v153
                %v155 = vld [vmem:[%s139 + $0x308] sm:$0xff]
                %156 = vst [vmem:[%s140 + $0x38] sm:$0xff] %v155
                %v157 = vld [vmem:[%s139 + $0x400] sm:$0xff]
                %158 = vst [vmem:[%s140 + $0x40] sm:$0xff] %v157
                %v159 = vld [vmem:[%s139 + $0x408] sm:$0xff]
                %160 = vst [vmem:[%s140 + $0x48] sm:$0xff] %v159
                %v161 = vld [vmem:[%s139 + $0x500] sm:$0xff]
                %162 = vst [vmem:[%s140 + $0x50] sm:$0xff] %v161
                %v163 = vld [vmem:[%s139 + $0x508] sm:$0xff]
                %164 = vst [vmem:[%s140 + $0x58] sm:$0xff] %v163
                %v165 = vld [vmem:[%s139 + $0x600] sm:$0xff]
                %166 = vst [vmem:[%s140 + $0x60] sm:$0xff] %v165
                %v167 = vld [vmem:[%s139 + $0x608] sm:$0xff]
                %168 = vst [vmem:[%s140 + $0x68] sm:$0xff] %v167
              $region33: #{discriminator_forward.9} parent=27 // loop_footer
                %s138 = sadd.s32 1, %s134
              $region34: #{discriminator_forward.9} parent=27 // loop_footer_branch
                %133 = sbr.rel target = $region30
              $region35: #{discriminator_forward.9} parent=27 // loop_exit
                _
            $region28: #{discriminator_forward.9} parent=23 // pred_fallthru
              _
            // Predicated region
            $region36: #{discriminator_forward.9} parent=23 // pred_check
              _
            $region37: #{discriminator_forward.9} parent=23 // pred_check_branch
              %170 = sbr.rel target = $region39
            $region38: #{discriminator_forward.9} parent=23 // pred_region
              _
            $region39: #{discriminator_forward.9} parent=23 // pred_fallthru
              _
          $region24: #{discriminator_forward.9} parent=19 // pred_fallthru
            _
          %171 = vnop
        $region20: #{discriminator_forward.9} parent=15 // pred_fallthru
          _
        // Predicated region
        $region40: #{discriminator_forward.9} parent=15 // pred_check
          %p172 = pneg %p68
        $region41: #{discriminator_forward.9} parent=15 // pred_check_branch
          %174 = sbr.rel (%p172) target = $region43
        $region42: #{discriminator_forward.9} parent=15 // pred_region
          %s175 = smul.u32 64, %s16
          %p176 = scmp.lt.s32.totalorder %s175, 1023
          %s177 = scalar_select %p176, %s175, 1023
          %p178 = scmp.lt.s32.totalorder %s15, 0
          %s179 = scalar_select %p178, %s15, 0
          %s180 = sadd.s32 %s179, %s177
          %s181 = smul.addr %s180, 4
          %s182 = scalar_lea.vmem %s1, %s181
          %s183 = smul.u32 64, %s16
        $region43: #{discriminator_forward.9} parent=15 // pred_fallthru
          _
      $region16: #{discriminator_forward.9} parent=5 // pred_fallthru
        _
      %p184 = scmp.le.s32.totalorder 1, %s8
      %p185 = scmp.lt.s32.totalorder %s8, 17
      %p186 = pnand %p184, %p185
      %p187 = pneg %p186
      // Predicated region
      $region44: #{discriminator_forward.9} parent=5 // pred_check
        _
      $region45: #{discriminator_forward.9} parent=5 // pred_check_branch
        %189 = sbr.rel (%p186) target = $region47
      $region46: #{discriminator_forward.9} parent=5 // pred_region
        %s190 = ssub.s32 %s8, 1
        %s191 = sand.u32 %s33, 1
        %s192 = sand.u32 %s33, 1
        %s193 = smul.addr %s192, 112
        %s194 = scalar_lea.vmem [#allocation3], %s193
        // Predicated region
        $region48: #{discriminator_forward.9} parent=46 // pred_check
          %p195 = pneg %p46
        $region49: #{discriminator_forward.9} parent=46 // pred_check_branch
          %197 = sbr.rel (%p195) target = $region51
        $region50: #{discriminator_forward.9} parent=46 // pred_region
          _
        $region51: #{discriminator_forward.9} parent=46 // pred_fallthru
          _
        %s198 = sand.u32 %s33, 1
        %s199 = sand.u32 %s33, 1
        %s200 = smul.addr %s199, 112
        %s201 = scalar_lea.vmem [#allocation3], %s200
        %p202 = pneg %p46
        %p203 = pneg %p43
        %s204 = smul.u32 64, %s18
        %p205 = scmp.lt.s32.totalorder %s204, 1023
        %s206 = scalar_select %p205, %s204, 1023
        %p207 = scmp.lt.s32.totalorder %s17, 0
        %s208 = scalar_select %p207, %s17, 0
        %s209 = sadd.s32 %s208, %s206
        %s210 = smul.addr %s209, 4
        %s211 = scalar_lea.vmem %s1, %s210
        %p212 = pneg %p74
        %p213 = pneg %p71
        %p214 = pneg %p100
        %p215 = pneg %p97
        %p216 = scmp.lt.s32.totalorder %s17, 0
        %s217 = scalar_select %p216, %s17, 0
        %s218 = smul.addr %s217, 8
        %s219 = scalar_lea.vmem %s2, %s218
        %s220 = smul.u32 4, %s18
        %s221 = smul.u32 64, %s18
        %p222 = scmp.lt.s32.totalorder %s221, 1023
        %s223 = scalar_select %p222, %s221, 1023
        %p224 = scmp.lt.s32.totalorder %s17, 0
        %s225 = scalar_select %p224, %s17, 0
        %s226 = sadd.s32 %s225, %s223
        %s227 = smul.addr %s226, 4
        %s228 = scalar_lea.vmem %s1, %s227
        %s229 = smul.u32 64, %s18
        %p230 = scmp.lt.s32.totalorder %s17, 0
        %s231 = scalar_select %p230, %s17, 0
        %s232 = smul.addr %s231, 8
        %s233 = scalar_lea.vmem %s2, %s232
        %p235 = scmp.eq.s32.totalorder %s18, 0
        // Predicated region
        $region52: #{discriminator_forward.9} parent=46 // pred_check
          %p236 = pneg %p235
        $region53: #{discriminator_forward.9} parent=46 // pred_check_branch
          %238 = sbr.rel (%p236) target = $region55
        $region54: #{discriminator_forward.9} parent=46 // pred_region
          %239 = vst [vmem:[#allocation2] sm:$0xff] 0.0
          %240 = vst [vmem:[#allocation2 + $0x8] sm:$0xff] 0.0
          %241 = vst [vmem:[#allocation2 + $0x10] sm:$0xff] 0.0
          %242 = vst [vmem:[#allocation2 + $0x18] sm:$0xff] 0.0
          %243 = vst [vmem:[#allocation2 + $0x20] sm:$0xff] 0.0
          %244 = vst [vmem:[#allocation2 + $0x28] sm:$0xff] 0.0
          %245 = vst [vmem:[#allocation2 + $0x30] sm:$0x3] 0.0
        $region55: #{discriminator_forward.9} parent=46 // pred_fallthru
          _
        %v246 = vld [vmem:[#allocation2] sm:$0xff]
        %v247 = vld [vmem:[#allocation2 + $0x8] sm:$0xff]
        %v248 = vld [vmem:[#allocation2 + $0x10] sm:$0xff]
        %v249 = vld [vmem:[#allocation2 + $0x18] sm:$0xff]
        %v250 = vld [vmem:[#allocation2 + $0x20] sm:$0xff]
        %v251 = vld [vmem:[#allocation2 + $0x28] sm:$0xff]
        %v252 = vld [vmem:[#allocation2 + $0x30] sm:$0x3]
        %v253 = vld [vmem:[%s194] sm:$0xff]
        %v254 = vld [vmem:[%s194 + $0x8] sm:$0xff]
        %v255 = vld [vmem:[%s194 + $0x10] sm:$0xff]
        %v256 = vld [vmem:[%s194 + $0x18] sm:$0xff]
        %v257 = vld [vmem:[%s194 + $0x20] sm:$0xff]
        %v258 = vld [vmem:[%s194 + $0x28] sm:$0xff]
        %v259 = vld [vmem:[%s194 + $0x30] sm:$0xff]
        %v260 = vld [vmem:[%s194 + $0x38] sm:$0xff]
        %v261 = vld [vmem:[%s194 + $0x40] sm:$0xff]
        %v262 = vld [vmem:[%s194 + $0x48] sm:$0xff]
        %v263 = vld [vmem:[%s194 + $0x50] sm:$0xff]
        %v264 = vld [vmem:[%s194 + $0x58] sm:$0xff]
        %v265 = vld [vmem:[%s194 + $0x60] sm:$0x11]
        %v266 = vld [vmem:[%s194 + $0x68] sm:$0x11]
        %v267 = vld [vmem:[%s228] sm:$0xf]
        %v268 = vld [vmem:[%s228 + $0x4] sm:$0xf]
        %v269 = vld [vmem:[%s228 + $0x8] sm:$0xf]
        %v270 = vld [vmem:[%s228 + $0xc] sm:$0xf]
        %v271 = vld [vmem:[%s228 + $0x10] sm:$0xf]
        %v272 = vld [vmem:[%s228 + $0x14] sm:$0xf]
        %v273 = vld [vmem:[%s228 + $0x18] sm:$0xf]
        %v274 = vld [vmem:[%s228 + $0x1c] sm:$0xf]
        %v275 = vld [vmem:[%s228 + $0x20] sm:$0xf]
        %v276 = vld [vmem:[%s228 + $0x24] sm:$0xf]
        %v277 = vld [vmem:[%s228 + $0x28] sm:$0xf]
        %v278 = vld [vmem:[%s228 + $0x2c] sm:$0xf]
        %v279 = vld [vmem:[%s228 + $0x30] sm:$0xf]
        %v280 = vld [vmem:[%s228 + $0x34] sm:$0xf]
        %v281 = vld [vmem:[%s228 + $0x38] sm:$0xf]
        %v282 = vld [vmem:[%s228 + $0x3c] sm:$0xf]
        %v283 = vld [vmem:[%s228 + $0x40] sm:$0xf]
        %v284 = vld [vmem:[%s228 + $0x44] sm:$0xf]
        %v285 = vld [vmem:[%s228 + $0x48] sm:$0xf]
        %v286 = vld [vmem:[%s228 + $0x4c] sm:$0xf]
        %v287 = vld [vmem:[%s228 + $0x50] sm:$0xf]
        %v288 = vld [vmem:[%s228 + $0x54] sm:$0xf]
        %v289 = vld [vmem:[%s228 + $0x58] sm:$0xf]
        %v290 = vld [vmem:[%s228 + $0x5c] sm:$0xf]
        %v291 = vld [vmem:[%s228 + $0x60] sm:$0xf]
        %v292 = vld [vmem:[%s228 + $0x64] sm:$0xf]
        %v293 = vld [vmem:[%s228 + $0x68] sm:$0xf]
        %v294 = vld [vmem:[%s228 + $0x6c] sm:$0xf]
        %v295 = vld [vmem:[%s228 + $0x70] sm:$0xf]
        %v296 = vld [vmem:[%s228 + $0x74] sm:$0xf]
        %v297 = vld [vmem:[%s228 + $0x78] sm:$0xf]
        %v298 = vld [vmem:[%s228 + $0x7c] sm:$0xf]
        %v299 = vld [vmem:[%s228 + $0x80] sm:$0xf]
        %v300 = vld [vmem:[%s228 + $0x84] sm:$0xf]
        %v301 = vld [vmem:[%s228 + $0x88] sm:$0xf]
        %v302 = vld [vmem:[%s228 + $0x8c] sm:$0xf]
        %v303 = vld [vmem:[%s228 + $0x90] sm:$0xf]
        %v304 = vld [vmem:[%s228 + $0x94] sm:$0xf]
        %v305 = vld [vmem:[%s228 + $0x98] sm:$0xf]
        %v306 = vld [vmem:[%s228 + $0x9c] sm:$0xf]
        %v307 = vld [vmem:[%s228 + $0xa0] sm:$0xf]
        %v308 = vld [vmem:[%s228 + $0xa4] sm:$0xf]
        %v309 = vld [vmem:[%s228 + $0xa8] sm:$0xf]
        %v310 = vld [vmem:[%s228 + $0xac] sm:$0xf]
        %v311 = vld [vmem:[%s228 + $0xb0] sm:$0xf]
        %v312 = vld [vmem:[%s228 + $0xb4] sm:$0xf]
        %v313 = vld [vmem:[%s228 + $0xb8] sm:$0xf]
        %v314 = vld [vmem:[%s228 + $0xbc] sm:$0xf]
        %v315 = vld [vmem:[%s228 + $0xc0] sm:$0xf]
        %v316 = vld [vmem:[%s228 + $0xc4] sm:$0xf]
        %v317 = vld [vmem:[%s228 + $0xc8] sm:$0xf]
        %v318 = vld [vmem:[%s228 + $0xcc] sm:$0xf]
        %v319 = vld [vmem:[%s228 + $0xd0] sm:$0xf]
        %v320 = vld [vmem:[%s228 + $0xd4] sm:$0xf]
        %v321 = vld [vmem:[%s228 + $0xd8] sm:$0xf]
        %v322 = vld [vmem:[%s228 + $0xdc] sm:$0xf]
        %v323 = vld [vmem:[%s228 + $0xe0] sm:$0xf]
        %v324 = vld [vmem:[%s228 + $0xe4] sm:$0xf]
        %v325 = vld [vmem:[%s228 + $0xe8] sm:$0xf]
        %v326 = vld [vmem:[%s228 + $0xec] sm:$0xf]
        %v327 = vld [vmem:[%s228 + $0xf0] sm:$0xf]
        %v328 = vld [vmem:[%s228 + $0xf4] sm:$0xf]
        %v329 = vld [vmem:[%s228 + $0xf8] sm:$0xf]
        %v330 = vld [vmem:[%s228 + $0xfc] sm:$0xf]
        %v345 = vunpack.c.l.b16 %v253
        %v346 = vunpack.c.h.b16 %v253
        %v347 = vunpack.c.l.b16 %v254
        %v348 = vunpack.c.h.b16 %v254
        %v349 = vunpack.c.l.b16 %v255
        %v350 = vunpack.c.h.b16 %v255
        %v351 = vunpack.c.l.b16 %v256
        %v352 = vunpack.c.h.b16 %v256
        %v353 = vunpack.c.l.b16 %v257
        %v354 = vunpack.c.h.b16 %v257
        %v355 = vunpack.c.l.b16 %v258
        %v356 = vunpack.c.h.b16 %v258
        %v357 = vunpack.c.l.b16 %v259
        %v358 = vunpack.c.h.b16 %v259
        %v359 = vunpack.c.l.b16 %v260
        %v360 = vunpack.c.h.b16 %v260
        %v361 = vunpack.c.l.b16 %v261
        %v362 = vunpack.c.h.b16 %v261
        %v363 = vunpack.c.l.b16 %v262
        %v364 = vunpack.c.h.b16 %v262
        %v365 = vunpack.c.l.b16 %v263
        %v366 = vunpack.c.h.b16 %v263
        %v367 = vunpack.c.l.b16 %v264
        %v368 = vunpack.c.h.b16 %v264
        %v369 = vunpack.c.l.b16 %v265
        %v370 = vunpack.c.h.b16 %v265
        %v371 = vunpack.c.l.b16 %v266
        %v372 = vunpack.c.h.b16 %v266
        %v373 = vpack.c.b16 %v349, %v345
        %v374 = vpack.c.b16 %v350, %v346
        %v375 = vpack.c.b16 %v351, %v347
        %v376 = vpack.c.b16 %v352, %v348
        %v377 = vpack.c.b16 %v357, %v353
        %v378 = vpack.c.b16 %v358, %v354
        %v379 = vpack.c.b16 %v359, %v355
        %v380 = vpack.c.b16 %v360, %v356
        %v381 = vpack.c.b16 %v365, %v361
        %v382 = vpack.c.b16 %v366, %v362
        %v383 = vpack.c.b16 %v367, %v363
        %v384 = vpack.c.b16 %v368, %v364
        %v385 = vpack.c.b16 %v369, %v369
        %v386 = vpack.c.b16 %v370, %v370
        %v387 = vpack.c.b16 %v371, %v371
        %v388 = vpack.c.b16 %v372, %v372
        %v469 = vunpack.c.l.b16 %v267
        %v470 = vunpack.c.l.b16 %v268
        %v471 = vunpack.c.l.b16 %v269
        %v472 = vunpack.c.l.b16 %v270
        %v473 = vunpack.c.l.b16 %v271
        %v474 = vunpack.c.l.b16 %v272
        %v475 = vunpack.c.l.b16 %v273
        %v476 = vunpack.c.l.b16 %v274
        %v477 = vunpack.c.l.b16 %v275
        %v478 = vunpack.c.l.b16 %v276
        %v479 = vunpack.c.l.b16 %v277
        %v480 = vunpack.c.l.b16 %v278
        %v481 = vunpack.c.l.b16 %v279
        %v482 = vunpack.c.l.b16 %v280
        %v483 = vunpack.c.l.b16 %v281
        %v484 = vunpack.c.l.b16 %v282
        %v485 = vunpack.c.l.b16 %v283
        %v486 = vunpack.c.l.b16 %v284
        %v487 = vunpack.c.l.b16 %v285
        %v488 = vunpack.c.l.b16 %v286
        %v489 = vunpack.c.l.b16 %v287
        %v490 = vunpack.c.l.b16 %v288
        %v491 = vunpack.c.l.b16 %v289
        %v492 = vunpack.c.l.b16 %v290
        %v493 = vunpack.c.l.b16 %v291
        %v494 = vunpack.c.l.b16 %v292
        %v495 = vunpack.c.l.b16 %v293
        %v496 = vunpack.c.l.b16 %v294
        %v497 = vunpack.c.l.b16 %v295
        %v498 = vunpack.c.l.b16 %v296
        %v499 = vunpack.c.l.b16 %v297
        %v500 = vunpack.c.l.b16 %v298
        %v501 = vunpack.c.l.b16 %v299
        %v502 = vunpack.c.l.b16 %v300
        %v503 = vunpack.c.l.b16 %v301
        %v504 = vunpack.c.l.b16 %v302
        %v505 = vunpack.c.l.b16 %v303
        %v506 = vunpack.c.l.b16 %v304
        %v507 = vunpack.c.l.b16 %v305
        %v508 = vunpack.c.l.b16 %v306
        %v509 = vunpack.c.l.b16 %v307
        %v510 = vunpack.c.l.b16 %v308
        %v511 = vunpack.c.l.b16 %v309
        %v512 = vunpack.c.l.b16 %v310
        %v513 = vunpack.c.l.b16 %v311
        %v514 = vunpack.c.l.b16 %v312
        %v515 = vunpack.c.l.b16 %v313
        %v516 = vunpack.c.l.b16 %v314
        %v517 = vunpack.c.l.b16 %v315
        %v518 = vunpack.c.l.b16 %v316
        %v519 = vunpack.c.l.b16 %v317
        %v520 = vunpack.c.l.b16 %v318
        %v521 = vunpack.c.l.b16 %v319
        %v522 = vunpack.c.l.b16 %v320
        %v523 = vunpack.c.l.b16 %v321
        %v524 = vunpack.c.l.b16 %v322
        %v525 = vunpack.c.l.b16 %v323
        %v526 = vunpack.c.l.b16 %v324
        %v527 = vunpack.c.l.b16 %v325
        %v528 = vunpack.c.l.b16 %v326
        %v529 = vunpack.c.l.b16 %v327
        %v530 = vunpack.c.l.b16 %v328
        %v531 = vunpack.c.l.b16 %v329
        %v532 = vunpack.c.l.b16 %v330
        %v533 = vpack.c.b16 %v470, %v469
        %v534 = vpack.c.b16 %v472, %v471
        %v535 = vpack.c.b16 %v474, %v473
        %v536 = vpack.c.b16 %v476, %v475
        %v537 = vpack.c.b16 %v478, %v477
        %v538 = vpack.c.b16 %v480, %v479
        %v539 = vpack.c.b16 %v482, %v481
        %v540 = vpack.c.b16 %v484, %v483
        %v541 = vpack.c.b16 %v486, %v485
        %v542 = vpack.c.b16 %v488, %v487
        %v543 = vpack.c.b16 %v490, %v489
        %v544 = vpack.c.b16 %v492, %v491
        %v545 = vpack.c.b16 %v494, %v493
        %v546 = vpack.c.b16 %v496, %v495
        %v547 = vpack.c.b16 %v498, %v497
        %v548 = vpack.c.b16 %v500, %v499
        %v549 = vpack.c.b16 %v502, %v501
        %v550 = vpack.c.b16 %v504, %v503
        %v551 = vpack.c.b16 %v506, %v505
        %v552 = vpack.c.b16 %v508, %v507
        %v553 = vpack.c.b16 %v510, %v509
        %v554 = vpack.c.b16 %v512, %v511
        %v555 = vpack.c.b16 %v514, %v513
        %v556 = vpack.c.b16 %v516, %v515
        %v557 = vpack.c.b16 %v518, %v517
        %v558 = vpack.c.b16 %v520, %v519
        %v559 = vpack.c.b16 %v522, %v521
        %v560 = vpack.c.b16 %v524, %v523
        %v561 = vpack.c.b16 %v526, %v525
        %v562 = vpack.c.b16 %v528, %v527
        %v563 = vpack.c.b16 %v530, %v529
        %v564 = vpack.c.b16 %v532, %v531
        %597 = vmatprep.subr.bf16.mxu0 0
        %598 = vmatpush1.bf16.msra.mxu0 %v540
        %599 = vmatprep.subr.bf16.mxu0 0
        %600 = vmatpush1.bf16.msra.mxu0 %v539
        %601 = vmatprep.subr.bf16.mxu0 0
        %602 = vmatpush1.bf16.msra.mxu0 %v538
        %603 = vmatprep.subr.bf16.mxu0 0
        %604 = vmatpush1.bf16.msra.mxu0 %v537
        %605 = vmatprep.subr.bf16.mxu0 0
        %606 = vmatpush1.bf16.msra.mxu0 %v536
        %607 = vmatprep.subr.bf16.mxu0 0
        %608 = vmatpush1.bf16.msra.mxu0 %v535
        %609 = vmatprep.subr.bf16.mxu0 0
        %610 = vmatpush1.bf16.msra.mxu0 %v534
        %611 = vmatprep.subr.bf16.mxu0 0
        %612 = vmatpush1.bf16.msra.mxu0 %v533
        %613 = vmatprep.subr.bf16.mxu0 0
        %614 = vmatpush2.bf16.msra.mxu0 %v548
        %615 = vmatprep.subr.bf16.mxu0 0
        %616 = vmatpush2.bf16.msra.mxu0 %v547
        %617 = vmatprep.subr.bf16.mxu0 0
        %618 = vmatpush2.bf16.msra.mxu0 %v546
        %619 = vmatprep.subr.bf16.mxu0 0
        %620 = vmatpush2.bf16.msra.mxu0 %v545
        %621 = vmatprep.subr.bf16.mxu0 0
        %622 = vmatpush2.bf16.msra.mxu0 %v544
        %623 = vmatprep.subr.bf16.mxu0 0
        %624 = vmatpush2.bf16.msra.mxu0 %v543
        %625 = vmatprep.subr.bf16.mxu0 0
        %626 = vmatpush2.bf16.msra.mxu0 %v542
        %627 = vmatprep.subr.bf16.mxu0 0
        %628 = vmatpush2.bf16.msra.mxu0 %v541
        %629 = vmatprep.mubr.bf16.mxu0 %v374
        %630 = vmatmul.mubr.bf16.gmra.mxu0 %v373
        %v631 = vpop.f32.mrf.mxu0
        %v632 = vadd.f32 0.0, %v631
        %v633 = vpop.f32.mrf.mxu0
        %v634 = vpop.f32.mrf.mxu0
        %v635 = vadd.f32 0.0, %v634
        %v636 = vpop.f32.mrf.mxu0
        %637 = vmatprep.mubr.bf16.mxu0 %v378
        %638 = vmatmul.mubr.bf16.gmra.mxu0 %v377
        %v639 = vpop.f32.mrf.mxu0
        %v640 = vadd.f32 0.0, %v639
        %v641 = vpop.f32.mrf.mxu0
        %v642 = vpop.f32.mrf.mxu0
        %v643 = vadd.f32 0.0, %v642
        %v644 = vpop.f32.mrf.mxu0
        %645 = vmatprep.mubr.bf16.mxu0 %v382
        %646 = vmatmul.mubr.bf16.gmra.mxu0 %v381
        %v647 = vpop.f32.mrf.mxu0
        %v648 = vadd.f32 0.0, %v647
        %v649 = vpop.f32.mrf.mxu0
        %v650 = vpop.f32.mrf.mxu0
        %v651 = vadd.f32 0.0, %v650
        %v652 = vpop.f32.mrf.mxu0
        %653 = vmatprep.mubr.bf16.mxu0 %v386
        %654 = vmatmul.mubr.bf16.gmra.mxu0 %v385
        %v655 = vpop.f32.mrf.mxu0
        %v656 = vadd.f32 0.0, %v655
        %v657 = vpop.f32.mrf.mxu0
        %v658 = vpop.f32.mrf.mxu0
        %v659 = vpop.f32.mrf.mxu0
        %660 = vdwg.mxu0
        %661 = vmatprep.subr.bf16.mxu0 0
        %662 = vmatpush1.bf16.msra.mxu0 %v556
        %663 = vmatprep.subr.bf16.mxu0 0
        %664 = vmatpush1.bf16.msra.mxu0 %v555
        %665 = vmatprep.subr.bf16.mxu0 0
        %666 = vmatpush1.bf16.msra.mxu0 %v554
        %667 = vmatprep.subr.bf16.mxu0 0
        %668 = vmatpush1.bf16.msra.mxu0 %v553
        %669 = vmatprep.subr.bf16.mxu0 0
        %670 = vmatpush1.bf16.msra.mxu0 %v552
        %671 = vmatprep.subr.bf16.mxu0 0
        %672 = vmatpush1.bf16.msra.mxu0 %v551
        %673 = vmatprep.subr.bf16.mxu0 0
        %674 = vmatpush1.bf16.msra.mxu0 %v550
        %675 = vmatprep.subr.bf16.mxu0 0
        %676 = vmatpush1.bf16.msra.mxu0 %v549
        %677 = vmatprep.subr.bf16.mxu0 0
        %678 = vmatpush2.bf16.msra.mxu0 %v564
        %679 = vmatprep.subr.bf16.mxu0 0
        %680 = vmatpush2.bf16.msra.mxu0 %v563
        %681 = vmatprep.subr.bf16.mxu0 0
        %682 = vmatpush2.bf16.msra.mxu0 %v562
        %683 = vmatprep.subr.bf16.mxu0 0
        %684 = vmatpush2.bf16.msra.mxu0 %v561
        %685 = vmatprep.subr.bf16.mxu0 0
        %686 = vmatpush2.bf16.msra.mxu0 %v560
        %687 = vmatprep.subr.bf16.mxu0 0
        %688 = vmatpush2.bf16.msra.mxu0 %v559
        %689 = vmatprep.subr.bf16.mxu0 0
        %690 = vmatpush2.bf16.msra.mxu0 %v558
        %691 = vmatprep.subr.bf16.mxu0 0
        %692 = vmatpush2.bf16.msra.mxu0 %v557
        %693 = vmatprep.mubr.bf16.mxu0 %v376
        %694 = vmatmul.mubr.bf16.gmra.mxu0 %v375
        %v695 = vpop.f32.mrf.mxu0
        %v696 = vadd.f32 %v632, %v695
        %v697 = vpop.f32.mrf.mxu0
        %v698 = vpop.f32.mrf.mxu0
        %v699 = vadd.f32 %v635, %v698
        %v700 = vpop.f32.mrf.mxu0
        %701 = vmatprep.mubr.bf16.mxu0 %v380
        %702 = vmatmul.mubr.bf16.gmra.mxu0 %v379
        %v703 = vpop.f32.mrf.mxu0
        %v704 = vadd.f32 %v640, %v703
        %v705 = vpop.f32.mrf.mxu0
        %v706 = vpop.f32.mrf.mxu0
        %v707 = vadd.f32 %v643, %v706
        %v708 = vpop.f32.mrf.mxu0
        %709 = vmatprep.mubr.bf16.mxu0 %v384
        %710 = vmatmul.mubr.bf16.gmra.mxu0 %v383
        %v711 = vpop.f32.mrf.mxu0
        %v712 = vadd.f32 %v648, %v711
        %v713 = vpop.f32.mrf.mxu0
        %v714 = vpop.f32.mrf.mxu0
        %v715 = vadd.f32 %v651, %v714
        %v716 = vpop.f32.mrf.mxu0
        %717 = vmatprep.mubr.bf16.mxu0 %v388
        %718 = vmatmul.mubr.bf16.gmra.mxu0 %v387
        %v719 = vpop.f32.mrf.mxu0
        %v720 = vadd.f32 %v656, %v719
        %v721 = vpop.f32.mrf.mxu0
        %v722 = vpop.f32.mrf.mxu0
        %v723 = vpop.f32.mrf.mxu0
        %724 = vdwg.mxu0
        %v725 = vadd.f32 %v246, %v696
        %v726 = vadd.f32 %v247, %v699
        %v727 = vadd.f32 %v248, %v704
        %v728 = vadd.f32 %v249, %v707
        %v729 = vadd.f32 %v250, %v712
        %v730 = vadd.f32 %v251, %v715
        %v731 = vadd.f32 %v252, %v720
        %732 = vst [vmem:[#allocation2] sm:$0xff] %v725
        %733 = vst [vmem:[#allocation2 + $0x8] sm:$0xff] %v726
        %734 = vst [vmem:[#allocation2 + $0x10] sm:$0xff] %v727
        %735 = vst [vmem:[#allocation2 + $0x18] sm:$0xff] %v728
        %736 = vst [vmem:[#allocation2 + $0x20] sm:$0xff] %v729
        %737 = vst [vmem:[#allocation2 + $0x28] sm:$0xff] %v730
        %738 = vst [vmem:[#allocation2 + $0x30] sm:$0x3] %v731
        %p739 = scmp.eq.s32.totalorder %s18, 15
        // Predicated region
        $region56: #{discriminator_forward.9} parent=46 // pred_check
          %p740 = pneg %p739
        $region57: #{discriminator_forward.9} parent=46 // pred_check_branch
          %742 = sbr.rel (%p740) target = $region59
        $region58: #{discriminator_forward.9} parent=46 // pred_region
          %v743 = vld [vmem:[#allocation2] sm:$0xff]
          %v744 = vld [vmem:[#allocation2 + $0x8] sm:$0xff]
          %v745 = vld [vmem:[#allocation2 + $0x10] sm:$0xff]
          %v746 = vld [vmem:[#allocation2 + $0x18] sm:$0xff]
          %v747 = vld [vmem:[#allocation2 + $0x20] sm:$0xff]
          %v748 = vld [vmem:[#allocation2 + $0x28] sm:$0xff]
          %v749 = vld [vmem:[#allocation2 + $0x30] sm:$0x3]
          %750 = vst [vmem:[%s233] sm:$0xff] %v743
          %751 = vst [vmem:[%s233 + $0x8] sm:$0xff] %v744
          %752 = vst [vmem:[%s233 + $0x10] sm:$0xff] %v745
          %753 = vst [vmem:[%s233 + $0x18] sm:$0xff] %v746
          %754 = vst [vmem:[%s233 + $0x20] sm:$0xff] %v747
          %755 = vst [vmem:[%s233 + $0x28] sm:$0xff] %v748
          %756 = vst [vmem:[%s233 + $0x30] sm:$0x3] %v749
        $region59: #{discriminator_forward.9} parent=46 // pred_fallthru
          _
        %p757 = scmp.lt.s32.totalorder %s17, 0
        %s758 = scalar_select %p757, %s17, 0
        %s759 = smul.addr %s758, 8
        %s760 = scalar_lea.vmem %s2, %s759
        // Predicated region
        $region60: #{discriminator_forward.9} parent=46 // pred_check
          %p761 = pneg %p97
        $region61: #{discriminator_forward.9} parent=46 // pred_check_branch
          %763 = sbr.rel (%p761) target = $region63
        $region62: #{discriminator_forward.9} parent=46 // pred_region
          _
        $region63: #{discriminator_forward.9} parent=46 // pred_fallthru
          _
        // Predicated region
        $region64: #{discriminator_forward.9} parent=46 // pred_check
          %p764 = pneg %p97
        $region65: #{discriminator_forward.9} parent=46 // pred_check_branch
          %766 = sbr.rel (%p764) target = $region67
        $region66: #{discriminator_forward.9} parent=46 // pred_region
          %p767 = scmp.lt.s32.totalorder %s17, 0
          %s768 = scalar_select %p767, %s17, 0
          %s769 = smul.addr %s768, 8
          %s770 = scalar_lea.vmem %s2, %s769
        $region67: #{discriminator_forward.9} parent=46 // pred_fallthru
          _
      $region47: #{discriminator_forward.9} parent=5 // pred_fallthru
        _
      %p771 = scmp.le.s32.totalorder 2, %s8
      // Predicated region
      $region68: #{discriminator_forward.9} parent=5 // pred_check
        %p772 = pneg %p771
      $region69: #{discriminator_forward.9} parent=5 // pred_check_branch
        %774 = sbr.rel (%p772) target = $region71
      $region70: #{discriminator_forward.9} parent=5 // pred_region
        %s775 = ssub.s32 %s8, 2
      $region71: #{discriminator_forward.9} parent=5 // pred_fallthru
        _
    $region6: #{discriminator_forward.9} parent=1 // loop_footer
      %s12 = sadd.s32 1, %s8
    $region7: #{discriminator_forward.9} parent=1 // loop_footer_branch
      %7 = sbr.rel target = $region3
    $region8: #{discriminator_forward.9} parent=1 // loop_exit
      _

</llo_original>
